<compile_context>
chip_gen: v7x
topology: tpu7x:2x2x1
jax: 0.10.0
libtpu: 0.0.40
codegen_flags: <defaults>
</compile_context>

<pallas_src>
import functools
import math

import jax
import jax.numpy as jnp
from jax.experimental import pallas as pl
from jax.experimental.pallas import tpu as pltpu


# ----------------------------------------------------------------------------
# helpers
# ----------------------------------------------------------------------------
def _round_up(a, m):
    return (a + m - 1) // m * m


def _pick_tile(dim, target, align):
    """Largest tile t <= target with dim % t == 0 and t % align == 0, else full dim.

    Returning the full dim is always legal (block == array extent), which also
    covers dims that are not multiples of the alignment.
    """
    if dim <= target:
        return dim
    t = (target // align) * align
    while t >= align:
        if dim % t == 0:
            return t
        t -= align
    return dim


@functools.lru_cache(maxsize=None)
def _vmem_limit_bytes():
    """Scoped-VMEM request: ~half of physical VMEM, generation-aware (v7x: 64 MiB)."""
    try:
        cap = pltpu.get_tpu_info().vmem_capacity_bytes
    except Exception:
        cap = 64 * 1024 * 1024
    return int(min(max(cap // 2, 32 * 1024 * 1024), 64 * 1024 * 1024))


def _erf(x):
    # Abramowitz & Stegun 7.1.26, |err| < 1.5e-7 -> matches exact-GELU within f32.
    # exp() rides the EUP slot; the short polynomial is filler under MXU slack.
    a1, a2, a3, a4, a5 = 0.254829592, -0.284496736, 1.421413741, -1.453152027, 1.061405429
    p = 0.3275911
    sgn = jnp.where(x >= 0.0, 1.0, -1.0)
    z = jnp.abs(x)
    t = 1.0 / (1.0 + p * z)
    poly = ((((a5 * t + a4) * t + a3) * t + a2) * t + a1) * t
    return sgn * (1.0 - poly * jnp.exp(-z * z))


def _gelu(x):
    return 0.5 * x * (1.0 + _erf(x * (1.0 / math.sqrt(2.0))))


def _layernorm_f32(xf, g_ref, b_ref, eps):
    mean = jnp.mean(xf, axis=-1, keepdims=True)
    xc = xf - mean
    var = jnp.mean(xc * xc, axis=-1, keepdims=True)
    y = xc * jax.lax.rsqrt(var + eps)
    return y * g_ref[...].astype(jnp.float32) + b_ref[...].astype(jnp.float32)


# ----------------------------------------------------------------------------
# Pallas kernels
# ----------------------------------------------------------------------------
def _mm_kernel(*refs, activation, has_residual, fuse_ln, eps):
    it = iter(refs)
    x_ref = next(it)
    g_ref = next(it) if fuse_ln else None
    bln_ref = next(it) if fuse_ln else None
    w_ref = next(it)
    b_ref = next(it)
    r_ref = next(it) if has_residual else None
    o_ref = next(it)

    x = x_ref[...]
    if fuse_ln:  # LN prologue in f32, cast back to the MXU storage dtype
        x = _layernorm_f32(x.astype(jnp.float32), g_ref, bln_ref, eps).astype(w_ref.dtype)
    acc = jnp.dot(x, w_ref[...], preferred_element_type=jnp.float32)
    acc = acc + b_ref[...].astype(jnp.float32)
    if activation == "gelu":
        acc = _gelu(acc)
    if has_residual:                              # residual add in f32
        acc = acc + r_ref[...].astype(jnp.float32)
    o_ref[...] = acc.astype(o_ref.dtype)


def matmul_bias(x, w, b, *, residual=None, ln_gamma=None, ln_beta=None,
                activation=None, eps=1e-12, tm_target=256, tn_target=512):
    """Full-K fused (optional-LayerNorm) x @ w + b (+ GELU) (+ residual).

    Grid is (N/tn, M/tm) with M innermost so the (K, tn) weight tile is
    resident in VMEM across the whole M sweep.  MXU operands stay in their
    storage dtype (bf16); the epilogue runs on the f32 accumulator.
    """
    M, K = x.shape
    _, N = w.shape
    fuse_ln = ln_gamma is not None
    has_res = residual is not None
    tm = _pick_tile(M, tm_target, 8)
    tn = _pick_tile(N, tn_target, 128)
    grid = (N // tn, M // tm)                     # M innermost -> weight stays resident

    in_specs = [pl.BlockSpec((tm, K), lambda j, i: (i, 0))]
    args = [x]
    if fuse_ln:
        in_specs += [pl.BlockSpec((1, K), lambda j, i: (0, 0)),
                     pl.BlockSpec((1, K), lambda j, i: (0, 0))]
        args += [ln_gamma.reshape(1, K), ln_beta.reshape(1, K)]
    in_specs += [pl.BlockSpec((K, tn), lambda j, i: (0, j)),
                 pl.BlockSpec((1, tn), lambda j, i: (0, j))]
    args += [w, b.reshape(1, N)]
    if has_res:
        in_specs.append(pl.BlockSpec((tm, tn), lambda j, i: (i, j)))
        args.append(residual)

    kernel = functools.partial(_mm_kernel, activation=activation,
                               has_residual=has_res, fuse_ln=fuse_ln, eps=eps)
    return pl.pallas_call(
        kernel,
        grid=grid,
        out_shape=jax.ShapeDtypeStruct((M, N), x.dtype),
        in_specs=in_specs,
        out_specs=pl.BlockSpec((tm, tn), lambda j, i: (i, j)),
        compiler_params=pltpu.CompilerParams(
            dimension_semantics=("parallel", "parallel"),
            vmem_limit_bytes=_vmem_limit_bytes()),
    )(*args)


def _mlp_kernel(x_ref, g_ref, bln_ref, w1_ref, b1_ref, w2_ref, b2_ref, o_ref, *, eps):
    xf = x_ref[...].astype(jnp.float32)
    xln = _layernorm_f32(xf, g_ref, bln_ref, eps).astype(w1_ref.dtype)
    mid = jnp.dot(xln, w1_ref[...], preferred_element_type=jnp.float32)
    mid = _gelu(mid + b1_ref[...].astype(jnp.float32))
    out = jnp.dot(mid.astype(w2_ref.dtype), w2_ref[...],
                  preferred_element_type=jnp.float32)
    out = out + b2_ref[...].astype(jnp.float32) + xf      # residual in f32
    o_ref[...] = out.astype(o_ref.dtype)


def mlp_block(x, ln_g, ln_b, w1, b1, w2, b2, *, eps=1e-12, tm_target=256):
    """Fused pre-LN MLP: x + FC2(GELU(FC1(LN(x)))).  `mid` never touches HBM."""
    M, D = x.shape
    F = w1.shape[1]
    tm = _pick_tile(M, tm_target, 8)
    kernel = functools.partial(_mlp_kernel, eps=eps)
    return pl.pallas_call(
        kernel,
        grid=(M // tm,),
        out_shape=jax.ShapeDtypeStruct((M, D), x.dtype),
        in_specs=[
            pl.BlockSpec((tm, D), lambda i: (i, 0)),
            pl.BlockSpec((1, D), lambda i: (0, 0)),
            pl.BlockSpec((1, D), lambda i: (0, 0)),
            pl.BlockSpec((D, F), lambda i: (0, 0)),   # w1 resident across M tiles
            pl.BlockSpec((1, F), lambda i: (0, 0)),
            pl.BlockSpec((F, D), lambda i: (0, 0)),   # w2 resident across M tiles
            pl.BlockSpec((1, D), lambda i: (0, 0)),
        ],
        out_specs=pl.BlockSpec((tm, D), lambda i: (i, 0)),
        compiler_params=pltpu.CompilerParams(
            dimension_semantics=("parallel",),
            vmem_limit_bytes=_vmem_limit_bytes()),
    )(x, ln_g.reshape(1, D), ln_b.reshape(1, D), w1, b1.reshape(1, F),
      w2, b2.reshape(1, D))


def _layernorm_kernel(x_ref, g_ref, b_ref, o_ref, *, eps):
    y = _layernorm_f32(x_ref[...].astype(jnp.float32), g_ref, b_ref, eps)
    o_ref[...] = y.astype(o_ref.dtype)


def layernorm(x, g, b, eps=1e-12, *, tm_target=512):
    """Row-tiled LayerNorm (only used for the final ViTModel.layernorm)."""
    M, D = x.shape
    tm = _pick_tile(M, tm_target, 8)
    kernel = functools.partial(_layernorm_kernel, eps=eps)
    return pl.pallas_call(
        kernel,
        grid=(M // tm,),
        out_shape=jax.ShapeDtypeStruct((M, D), x.dtype),
        in_specs=[pl.BlockSpec((tm, D), lambda i: (i, 0)),
                  pl.BlockSpec((1, D), lambda i: (0, 0)),
                  pl.BlockSpec((1, D), lambda i: (0, 0))],
        out_specs=pl.BlockSpec((tm, D), lambda i: (i, 0)),
        compiler_params=pltpu.CompilerParams(dimension_semantics=("parallel",)),
    )(x, g.reshape(1, D), b.reshape(1, D))


def _attention_kernel(qkv_ref, o_ref, ctx_sc, *, num_heads, head_dim, hidden, valid_len):
    qkv = qkv_ref[0]                              # (Sp, 3*hidden), bf16
    sp = qkv.shape[0]
    q_all = qkv[:, :hidden]                       # 128-lane-aligned static slices
    k_all = qkv[:, hidden:2 * hidden]
    v_all = qkv[:, 2 * hidden:]
    if valid_len < sp:                            # mask padded key rows (computed once)
        col = jax.lax.broadcasted_iota(jnp.int32, (sp, sp), 1)
        kmask = jnp.where(col < valid_len, 0.0, -1e30).astype(jnp.float32)
    else:
        kmask = None
    # TODO(synk): flash-style KV-tiled online softmax (and a head/query-tile
    # parallel grid axis for v7x when B == 1) is needed once S reaches thousands;
    # whole-sequence (Sp, Sp) scores are fine at ViT-encoder token counts.
    for h in range(num_heads):                    # static unroll over heads
        lo = h * head_dim
        qh = q_all[:, lo:lo + head_dim]           # softmax scale already folded into W_q
        kh = k_all[:, lo:lo + head_dim]
        vh = v_all[:, lo:lo + head_dim]
        s = jax.lax.dot_general(qh, kh, (((1,), (1,)), ((), ())),
                                preferred_element_type=jnp.float32)
        if kmask is not None:
            s = s + kmask
        s = s - jnp.max(s, axis=-1, keepdims=True)
        p = jnp.exp(s)
        inv = pl.reciprocal(jnp.sum(p, axis=-1, keepdims=True), approx=True)
        ctx = jnp.dot(p.astype(vh.dtype), vh, preferred_element_type=jnp.float32)
        # write each head into VMEM scratch as it is produced (bounds live ranges)
        ctx_sc[:, lo:lo + head_dim] = ctx * inv
    o_ref[0] = ctx_sc[...].astype(o_ref.dtype)    # one lane-dense full-hidden store


def multihead_attention(qkv, *, num_heads, hidden, valid_len):
    """qkv: (B, Sp, 3*hidden) packed Q|K|V with heads along the hidden axis."""
    B, Sp, _ = qkv.shape
    head_dim = hidden // num_heads
    kernel = functools.partial(_attention_kernel, num_heads=num_heads,
                               head_dim=head_dim, hidden=hidden, valid_len=valid_len)
    return pl.pallas_call(
        kernel,
        grid=(B,),
        out_shape=jax.ShapeDtypeStruct((B, Sp, hidden), qkv.dtype),
        in_specs=[pl.BlockSpec((1, Sp, 3 * hidden), lambda b: (b, 0, 0))],
        out_specs=pl.BlockSpec((1, Sp, hidden), lambda b: (b, 0, 0)),
        scratch_shapes=[pltpu.VMEM((Sp, hidden), jnp.float32)],
        compiler_params=pltpu.CompilerParams(
            dimension_semantics=("parallel",),
            vmem_limit_bytes=_vmem_limit_bytes()),
    )(qkv)


# ----------------------------------------------------------------------------
# ViTEncoder forward (glue in plain JAX, hot paths in Pallas)
# ----------------------------------------------------------------------------
def vit_encoder_forward(params, x, *, patch_size, num_heads, eps=1e-12,
                        compute_dtype=jnp.bfloat16):
    B, C, H, W = x.shape
    p = patch_size
    gh, gw = H // p, W // p
    N = gh * gw
    hidden = params["patch_b"].shape[-1]
    S = N + 1
    Sp = _round_up(S, 8)

    # --- patch embedding: Conv2d(k=p, stride=p) == patchify + matmul ---------
    patches = x.astype(compute_dtype).reshape(B, C, gh, p, gw, p)
    patches = patches.transpose(0, 2, 4, 1, 3, 5).reshape(B * N, C * p * p)
    emb = matmul_bias(patches, params["patch_w"], params["patch_b"])
    emb = emb.reshape(B, N, hidden)

    # --- prepend CLS token + position embeddings -----------------------------
    # interpolate_pos_encoding=True is an identity at the configured resolution.
    cls = jnp.broadcast_to(params["cls"], (B, 1, hidden)).astype(compute_dtype)
    tokens = jnp.concatenate([cls, emb], axis=1) + params["pos"].astype(compute_dtype)

    # Pad the per-image sequence to a multiple of 8 ONCE; keep the (B*Sp, hidden)
    # layout for the whole stack (all later reshapes are contiguous / free).
    # Padded key rows are masked inside the attention kernel; padded query rows
    # carry finite garbage and are sliced away at the end.
    tokens = jnp.pad(tokens, ((0, 0), (0, Sp - S), (0, 0)))
    x2 = tokens.reshape(B * Sp, hidden)

    # --- transformer encoder layers (pre-LN, HF ViT style) -------------------
    # Dropout / attention-dropout / drop-path are inference no-ops.
    for lyr in params["layers"]:
        # LN1 fused into the QKV projection prologue; softmax scale folded into W_q.
        qkv = matmul_bias(x2, lyr["w_qkv"], lyr["b_qkv"],
                          ln_gamma=lyr["ln1_g"], ln_beta=lyr["ln1_b"], eps=eps)
        ctx = multihead_attention(qkv.reshape(B, Sp, 3 * hidden),
                                  num_heads=num_heads, hidden=hidden, valid_len=S)
        # attention output projection + residual 1 (epilogue-fused)
        x2 = matmul_bias(ctx.reshape(B * Sp, hidden), lyr["wo"], lyr["bo"],
                         residual=x2)
        # LN2 + FC1 + GELU + FC2 + residual 2, all in one kernel
        x2 = mlp_block(x2, lyr["ln2_g"], lyr["ln2_b"],
                       lyr["w1"], lyr["b1"], lyr["w2"], lyr["b2"], eps=eps)

    # --- final LayerNorm (ViTModel.layernorm) --------------------------------
    x2 = layernorm(x2, params["ln_g"], params["ln_b"], eps)
    last_hidden = x2.reshape(B, Sp, hidden)[:, :S].astype(jnp.float32)

    # --- ViTEncoder.forward tail: drop CLS, permute, reshape to (H/8, W/8) ---
    out = last_hidden[:, 1:, :]                  # (B, N, hidden)
    out = jnp.transpose(out, (0, 2, 1))          # (B, hidden, N)
    return out.reshape(B, hidden, H // 8, W // 8)


# ----------------------------------------------------------------------------
# Deterministic parameter initialization + kernel-friendly packing
# ----------------------------------------------------------------------------
def init_params(key, *, in_channels, hidden, num_layers, intermediate, patch,
                num_patches, num_heads, param_dtype=jnp.bfloat16):
    """Synthetic weights, pre-packed for the kernels:
      * patch conv weight reshaped to (C*p*p, hidden)
      * Q|K|V fused along the output dim; 1/sqrt(head_dim) folded into the Q third
      * matmul weights stored in bf16 (MXU operands); LN params & biases in f32
    """
    def nrm(k, shape, std=0.02):
        return jax.random.normal(k, shape, jnp.float32) * std

    head_dim = hidden // num_heads
    scale = 1.0 / math.sqrt(head_dim)
    keys = iter(jax.random.split(key, 4 + num_layers * 6))

    patch_w = nrm(next(keys), (hidden, in_channels, patch, patch))
    params = {
        "patch_w": patch_w.reshape(hidden, in_channels * patch * patch).T.astype(param_dtype),
        "patch_b": jnp.zeros((hidden,), jnp.float32),
        "cls": nrm(next(keys), (1, 1, hidden)),
        "pos": nrm(next(keys), (1, num_patches + 1, hidden)),
        "ln_g": jnp.ones((hidden,), jnp.float32),
        "ln_b": jnp.zeros((hidden,), jnp.float32),
        "layers": [],
    }
    for _ in range(num_layers):
        wq = nrm(next(keys), (hidden, hidden))
        wk = nrm(next(keys), (hidden, hidden))
        wv = nrm(next(keys), (hidden, hidden))
        bq = jnp.zeros((hidden,), jnp.float32)
        bk = jnp.zeros((hidden,), jnp.float32)
        bv = jnp.zeros((hidden,), jnp.float32)
        w_qkv = jnp.concatenate([wq * scale, wk, wv], axis=1)   # fold softmax scale into Q
        b_qkv = jnp.concatenate([bq * scale, bk, bv], axis=0)
        lyr = {
            "ln1_g": jnp.ones((hidden,), jnp.float32),
            "ln1_b": jnp.zeros((hidden,), jnp.float32),
            "w_qkv": w_qkv.astype(param_dtype),
            "b_qkv": b_qkv,
            "wo": nrm(next(keys), (hidden, hidden)).astype(param_dtype),
            "bo": jnp.zeros((hidden,), jnp.float32),
            "ln2_g": jnp.ones((hidden,), jnp.float32),
            "ln2_b": jnp.zeros((hidden,), jnp.float32),
            "w1": nrm(next(keys), (hidden, intermediate)).astype(param_dtype),
            "b1": jnp.zeros((intermediate,), jnp.float32),
            "w2": nrm(next(keys), (intermediate, hidden)).astype(param_dtype),
            "b2": jnp.zeros((hidden,), jnp.float32),
        }
        params["layers"].append(lyr)
    return params


if __name__ == "__main__":
    # Small, shape-consistent configuration.
    B, C, H, W = 2, 3, 32, 32
    patch_size = 8            # makes the module's hard-coded (H/8, W/8) reshape valid
    hidden = 128              # embedding_channels (multiple of 128 -> lane-dense stores)
    num_heads = 2
    num_layers = 2
    intermediate = 512
    num_patches = (H // patch_size) * (W // patch_size)

    key = jax.random.PRNGKey(0)
    kx, kp = jax.random.split(key)
    x = jax.random.normal(kx, (B, C, H, W), jnp.float32)     # NCHW, like PyTorch
    params = init_params(
        kp, in_channels=C, hidden=hidden, num_layers=num_layers,
        intermediate=intermediate, patch=patch_size,
        num_patches=num_patches, num_heads=num_heads)

    fwd = jax.jit(functools.partial(
        vit_encoder_forward, patch_size=patch_size, num_heads=num_heads))
    out = jax.block_until_ready(fwd(params, x))

    assert out.shape == (B, hidden, H // 8, W // 8), out.shape
    assert out.dtype == jnp.float32
    assert bool(jnp.all(jnp.isfinite(out)))
    print("KERNEL_OK")
</pallas_src>

<mosaic_0001>
module attributes {stable_mosaic.version = 11 : i64} {
  func.func @_attention_kernel(%arg0: i32, %arg1: memref<1x24x384xbf16, #tpu.memory_space<vmem>>, %arg2: memref<1x24x128xbf16, #tpu.memory_space<vmem>>, %arg3: memref<24x128xf32, #tpu.memory_space<vmem>>) attributes {dimension_semantics = [#tpu.dimension_semantics<parallel>], iteration_bounds = array<i64: 2>, scalar_prefetch = 0 : i64, scratch_operands = 1 : i64, tpu.core_type = #tpu.core_type<tc>, window_params = [{transform_indices = @transform_0, window_bounds = array<i64: 1, 24, 384>}, {transform_indices = @transform_1, window_bounds = array<i64: 1, 24, 128>}]} {
    %c0 = arith.constant 0 : index
    %c0_0 = arith.constant 0 : index
    %c0_1 = arith.constant 0 : index
    %0 = vector.load %arg1[%c0, %c0_0, %c0_1] : memref<1x24x384xbf16, #tpu.memory_space<vmem>>, vector<1x24x384xbf16>
    %1 = vector.shape_cast %0 : vector<1x24x384xbf16> to vector<24x384xbf16>
    %2 = vector.extract_strided_slice %1 {offsets = [0, 0], sizes = [24, 128], strides = [1, 1]} : vector<24x384xbf16> to vector<24x128xbf16>
    %3 = vector.extract_strided_slice %1 {offsets = [0, 128], sizes = [24, 128], strides = [1, 1]} : vector<24x384xbf16> to vector<24x128xbf16>
    %4 = vector.extract_strided_slice %1 {offsets = [0, 256], sizes = [24, 128], strides = [1, 1]} : vector<24x384xbf16> to vector<24x128xbf16>
    %5 = tpu.iota {dimensions = array<i32: 1>} : vector<24x24xi32>
    %c17_i32 = arith.constant 17 : i32
    %6 = vector.broadcast %c17_i32 : i32 to vector<24x24xi32>
    %7 = arith.cmpi slt, %5, %6 : vector<24x24xi32>
    %cst = arith.constant 0.000000e+00 : f32
    %cst_2 = arith.constant -1.000000e+30 : f32
    %8 = vector.broadcast %cst : f32 to vector<24x24xf32>
    %9 = vector.broadcast %cst_2 : f32 to vector<24x24xf32>
    %10 = arith.select %7, %8, %9 : vector<24x24xi1>, vector<24x24xf32>
    %11 = vector.extract_strided_slice %2 {offsets = [0, 0], sizes = [24, 64], strides = [1, 1]} : vector<24x128xbf16> to vector<24x64xbf16>
    %12 = vector.extract_strided_slice %3 {offsets = [0, 0], sizes = [24, 64], strides = [1, 1]} : vector<24x128xbf16> to vector<24x64xbf16>
    %13 = vector.extract_strided_slice %4 {offsets = [0, 0], sizes = [24, 64], strides = [1, 1]} : vector<24x128xbf16> to vector<24x64xbf16>
    %cst_3 = arith.constant dense<0.000000e+00> : vector<24x24xf32>
    %14 = tpu.matmul %11, %12, %cst_3 {dimension_numbers = #tpu.dot_dimension_numbers<[1], [1], [0], [0], [0, 0, 1, 0], [], []>} : vector<24x64xbf16>, vector<24x64xbf16>, vector<24x24xf32> -> vector<24x24xf32>
    %15 = arith.addf %14, %10 : vector<24x24xf32>
    %cst_4 = arith.constant dense<0xFF800000> : vector<24xf32>
    %16 = vector.multi_reduction <maximumf>, %15, %cst_4 [1] : vector<24x24xf32> to vector<24xf32>
    %17 = vector.shape_cast %16 : vector<24xf32> to vector<24x1xf32>
    %18 = vector.broadcast %17 : vector<24x1xf32> to vector<24x24xf32>
    %19 = arith.subf %15, %18 : vector<24x24xf32>
    %20 = math.exp %19 : vector<24x24xf32>
    %cst_5 = arith.constant dense<0.000000e+00> : vector<24xf32>
    %21 = vector.multi_reduction <add>, %20, %cst_5 [1] : vector<24x24xf32> to vector<24xf32>
    %22 = vector.shape_cast %21 : vector<24xf32> to vector<24x1xf32>
    %23 = tpu.reciprocal %22 {approx = true} : vector<24x1xf32> -> vector<24x1xf32>
    %24 = arith.truncf %20 : vector<24x24xf32> to vector<24x24xbf16>
    %cst_6 = arith.constant dense<0.000000e+00> : vector<24x64xf32>
    %25 = tpu.matmul %24, %13, %cst_6 {dimension_numbers = #tpu.dot_dimension_numbers<[1], [0], [0], [1], [0, 0, 1, 1], [], []>} : vector<24x24xbf16>, vector<24x64xbf16>, vector<24x64xf32> -> vector<24x64xf32>
    %26 = vector.broadcast %23 : vector<24x1xf32> to vector<24x64xf32>
    %27 = arith.mulf %25, %26 : vector<24x64xf32>
    %c0_7 = arith.constant 0 : index
    %c0_8 = arith.constant 0 : index
    %28 = vector.load %arg3[%c0_7, %c0_8] : memref<24x128xf32, #tpu.memory_space<vmem>>, vector<24x64xf32>
    tpu.vector_store %arg3[%c0_7, %c0_8], %27 {strides = array<i32>} : memref<24x128xf32, #tpu.memory_space<vmem>>, vector<24x64xf32>,
    %29 = vector.extract_strided_slice %2 {offsets = [0, 64], sizes = [24, 64], strides = [1, 1]} : vector<24x128xbf16> to vector<24x64xbf16>
    %30 = vector.extract_strided_slice %3 {offsets = [0, 64], sizes = [24, 64], strides = [1, 1]} : vector<24x128xbf16> to vector<24x64xbf16>
    %31 = vector.extract_strided_slice %4 {offsets = [0, 64], sizes = [24, 64], strides = [1, 1]} : vector<24x128xbf16> to vector<24x64xbf16>
    %cst_9 = arith.constant dense<0.000000e+00> : vector<24x24xf32>
    %32 = tpu.matmul %29, %30, %cst_9 {dimension_numbers = #tpu.dot_dimension_numbers<[1], [1], [0], [0], [0, 0, 1, 0], [], []>} : vector<24x64xbf16>, vector<24x64xbf16>, vector<24x24xf32> -> vector<24x24xf32>
    %33 = arith.addf %32, %10 : vector<24x24xf32>
    %cst_10 = arith.constant dense<0xFF800000> : vector<24xf32>
    %34 = vector.multi_reduction <maximumf>, %33, %cst_10 [1] : vector<24x24xf32> to vector<24xf32>
    %35 = vector.shape_cast %34 : vector<24xf32> to vector<24x1xf32>
    %36 = vector.broadcast %35 : vector<24x1xf32> to vector<24x24xf32>
    %37 = arith.subf %33, %36 : vector<24x24xf32>
    %38 = math.exp %37 : vector<24x24xf32>
    %cst_11 = arith.constant dense<0.000000e+00> : vector<24xf32>
    %39 = vector.multi_reduction <add>, %38, %cst_11 [1] : vector<24x24xf32> to vector<24xf32>
    %40 = vector.shape_cast %39 : vector<24xf32> to vector<24x1xf32>
    %41 = tpu.reciprocal %40 {approx = true} : vector<24x1xf32> -> vector<24x1xf32>
    %42 = arith.truncf %38 : vector<24x24xf32> to vector<24x24xbf16>
    %cst_12 = arith.constant dense<0.000000e+00> : vector<24x64xf32>
    %43 = tpu.matmul %42, %31, %cst_12 {dimension_numbers = #tpu.dot_dimension_numbers<[1], [0], [0], [1], [0, 0, 1, 1], [], []>} : vector<24x24xbf16>, vector<24x64xbf16>, vector<24x64xf32> -> vector<24x64xf32>
    %44 = vector.broadcast %41 : vector<24x1xf32> to vector<24x64xf32>
    %45 = arith.mulf %43, %44 : vector<24x64xf32>
    %c0_13 = arith.constant 0 : index
    %c64 = arith.constant 64 : index
    %46 = vector.load %arg3[%c0_13, %c64] : memref<24x128xf32, #tpu.memory_space<vmem>>, vector<24x64xf32>
    tpu.vector_store %arg3[%c0_13, %c64], %45 {strides = array<i32>} : memref<24x128xf32, #tpu.memory_space<vmem>>, vector<24x64xf32>,
    %c0_14 = arith.constant 0 : index
    %c0_15 = arith.constant 0 : index
    %47 = vector.load %arg3[%c0_14, %c0_15] : memref<24x128xf32, #tpu.memory_space<vmem>>, vector<24x128xf32>
    %48 = arith.truncf %47 : vector<24x128xf32> to vector<24x128xbf16>
    %c0_16 = arith.constant 0 : index
    %c0_17 = arith.constant 0 : index
    %c0_18 = arith.constant 0 : index
    %49 = vector.load %arg2[%c0_16, %c0_17, %c0_18] : memref<1x24x128xbf16, #tpu.memory_space<vmem>>, vector<1x24x128xbf16>
    %50 = vector.shape_cast %49 : vector<1x24x128xbf16> to vector<24x128xbf16>
    %51 = vector.shape_cast %48 : vector<24x128xbf16> to vector<1x24x128xbf16>
    tpu.vector_store %arg2[%c0_16, %c0_17, %c0_18], %51 {strides = array<i32>} : memref<1x24x128xbf16, #tpu.memory_space<vmem>>, vector<1x24x128xbf16>,
    return
  }
  func.func @transform_0(%arg0: i32) -> (i32, i32, i32) {
    %c0_i32 = arith.constant 0 : i32
    %c0_i32_0 = arith.constant 0 : i32
    %c0_i32_1 = arith.constant 0 : i32
    return %arg0, %c0_i32, %c0_i32_0 : i32, i32, i32
  }
  func.func @transform_1(%arg0: i32) -> (i32, i32, i32) {
    %c0_i32 = arith.constant 0 : i32
    %c0_i32_0 = arith.constant 0 : i32
    %c0_i32_1 = arith.constant 0 : i32
    return %arg0, %c0_i32, %c0_i32_0 : i32, i32, i32
  }
}

module attributes {stable_mosaic.version = 11 : i64} {
  func.func @_mm_kernel(%arg0: i32, %arg1: i32, %arg2: memref<32x192xbf16, #tpu.memory_space<vmem>>, %arg3: memref<192x128xbf16, #tpu.memory_space<vmem>>, %arg4: memref<1x128xf32, #tpu.memory_space<vmem>>, %arg5: memref<32x128xbf16, #tpu.memory_space<vmem>>) attributes {dimension_semantics = [#tpu.dimension_semantics<parallel>, #tpu.dimension_semantics<parallel>], iteration_bounds = array<i64: 1, 1>, scalar_prefetch = 0 : i64, scratch_operands = 0 : i64, tpu.core_type = #tpu.core_type<tc>, window_params = [{transform_indices = @transform_0, window_bounds = array<i64: 32, 192>}, {transform_indices = @transform_1, window_bounds = array<i64: 192, 128>}, {transform_indices = @transform_2, window_bounds = array<i64: 1, 128>}, {transform_indices = @transform_3, window_bounds = array<i64: 32, 128>}]} {
    %c0 = arith.constant 0 : index
    %c0_0 = arith.constant 0 : index
    %0 = vector.load %arg2[%c0, %c0_0] : memref<32x192xbf16, #tpu.memory_space<vmem>>, vector<32x192xbf16>
    %c0_1 = arith.constant 0 : index
    %c0_2 = arith.constant 0 : index
    %1 = vector.load %arg3[%c0_1, %c0_2] : memref<192x128xbf16, #tpu.memory_space<vmem>>, vector<192x128xbf16>
    %cst = arith.constant dense<0.000000e+00> : vector<32x128xf32>
    %2 = tpu.matmul %0, %1, %cst {dimension_numbers = #tpu.dot_dimension_numbers<[1], [0], [0], [1], [0, 0, 1, 1], [], []>} : vector<32x192xbf16>, vector<192x128xbf16>, vector<32x128xf32> -> vector<32x128xf32>
    %c0_3 = arith.constant 0 : index
    %c0_4 = arith.constant 0 : index
    %3 = vector.load %arg4[%c0_3, %c0_4] : memref<1x128xf32, #tpu.memory_space<vmem>>, vector<1x128xf32>
    %4 = vector.broadcast %3 : vector<1x128xf32> to vector<32x128xf32>
    %5 = arith.addf %2, %4 : vector<32x128xf32>
    %6 = arith.truncf %5 : vector<32x128xf32> to vector<32x128xbf16>
    %c0_5 = arith.constant 0 : index
    %c0_6 = arith.constant 0 : index
    %7 = vector.load %arg5[%c0_5, %c0_6] : memref<32x128xbf16, #tpu.memory_space<vmem>>, vector<32x128xbf16>
    tpu.vector_store %arg5[%c0_5, %c0_6], %6 {strides = array<i32>} : memref<32x128xbf16, #tpu.memory_space<vmem>>, vector<32x128xbf16>,
    return
  }
  func.func @transform_0(%arg0: i32, %arg1: i32) -> (i32, i32) {
    %c0_i32 = arith.constant 0 : i32
    %c0_i32_0 = arith.constant 0 : i32
    return %arg1, %c0_i32 : i32, i32
  }
  func.func @transform_1(%arg0: i32, %arg1: i32) -> (i32, i32) {
    %c0_i32 = arith.constant 0 : i32
    %c0_i32_0 = arith.constant 0 : i32
    return %c0_i32, %arg0 : i32, i32
  }
  func.func @transform_2(%arg0: i32, %arg1: i32) -> (i32, i32) {
    %c0_i32 = arith.constant 0 : i32
    %c0_i32_0 = arith.constant 0 : i32
    return %c0_i32, %arg0 : i32, i32
  }
  func.func @transform_3(%arg0: i32, %arg1: i32) -> (i32, i32) {
    %c0_i32 = arith.constant 0 : i32
    return %arg1, %arg0 : i32, i32
  }
}

module attributes {stable_mosaic.version = 11 : i64} {
  func.func @_mm_kernel(%arg0: i32, %arg1: i32, %arg2: memref<48x128xbf16, #tpu.memory_space<vmem>>, %arg3: memref<128x128xbf16, #tpu.memory_space<vmem>>, %arg4: memref<1x128xf32, #tpu.memory_space<vmem>>, %arg5: memref<48x128xbf16, #tpu.memory_space<vmem>>, %arg6: memref<48x128xbf16, #tpu.memory_space<vmem>>) attributes {dimension_semantics = [#tpu.dimension_semantics<parallel>, #tpu.dimension_semantics<parallel>], iteration_bounds = array<i64: 1, 1>, scalar_prefetch = 0 : i64, scratch_operands = 0 : i64, tpu.core_type = #tpu.core_type<tc>, window_params = [{transform_indices = @transform_0, window_bounds = array<i64: 48, 128>}, {transform_indices = @transform_1, window_bounds = array<i64: 128, 128>}, {transform_indices = @transform_2, window_bounds = array<i64: 1, 128>}, {transform_indices = @transform_3, window_bounds = array<i64: 48, 128>}, {transform_indices = @transform_4, window_bounds = array<i64: 48, 128>}]} {
    %c0 = arith.constant 0 : index
    %c0_0 = arith.constant 0 : index
    %0 = vector.load %arg2[%c0, %c0_0] : memref<48x128xbf16, #tpu.memory_space<vmem>>, vector<48x128xbf16>
    %c0_1 = arith.constant 0 : index
    %c0_2 = arith.constant 0 : index
    %1 = vector.load %arg3[%c0_1, %c0_2] : memref<128x128xbf16, #tpu.memory_space<vmem>>, vector<128x128xbf16>
    %cst = arith.constant dense<0.000000e+00> : vector<48x128xf32>
    %2 = tpu.matmul %0, %1, %cst {dimension_numbers = #tpu.dot_dimension_numbers<[1], [0], [0], [1], [0, 0, 1, 1], [], []>} : vector<48x128xbf16>, vector<128x128xbf16>, vector<48x128xf32> -> vector<48x128xf32>
    %c0_3 = arith.constant 0 : index
    %c0_4 = arith.constant 0 : index
    %3 = vector.load %arg4[%c0_3, %c0_4] : memref<1x128xf32, #tpu.memory_space<vmem>>, vector<1x128xf32>
    %4 = vector.broadcast %3 : vector<1x128xf32> to vector<48x128xf32>
    %5 = arith.addf %2, %4 : vector<48x128xf32>
    %c0_5 = arith.constant 0 : index
    %c0_6 = arith.constant 0 : index
    %6 = vector.load %arg5[%c0_5, %c0_6] : memref<48x128xbf16, #tpu.memory_space<vmem>>, vector<48x128xbf16>
    %7 = arith.extf %6 : vector<48x128xbf16> to vector<48x128xf32>
    %8 = arith.addf %5, %7 : vector<48x128xf32>
    %9 = arith.truncf %8 : vector<48x128xf32> to vector<48x128xbf16>
    %c0_7 = arith.constant 0 : index
    %c0_8 = arith.constant 0 : index
    %10 = vector.load %arg6[%c0_7, %c0_8] : memref<48x128xbf16, #tpu.memory_space<vmem>>, vector<48x128xbf16>
    tpu.vector_store %arg6[%c0_7, %c0_8], %9 {strides = array<i32>} : memref<48x128xbf16, #tpu.memory_space<vmem>>, vector<48x128xbf16>,
    return
  }
  func.func @transform_0(%arg0: i32, %arg1: i32) -> (i32, i32) {
    %c0_i32 = arith.constant 0 : i32
    %c0_i32_0 = arith.constant 0 : i32
    return %arg1, %c0_i32 : i32, i32
  }
  func.func @transform_1(%arg0: i32, %arg1: i32) -> (i32, i32) {
    %c0_i32 = arith.constant 0 : i32
    %c0_i32_0 = arith.constant 0 : i32
    return %c0_i32, %arg0 : i32, i32
  }
  func.func @transform_2(%arg0: i32, %arg1: i32) -> (i32, i32) {
    %c0_i32 = arith.constant 0 : i32
    %c0_i32_0 = arith.constant 0 : i32
    return %c0_i32, %arg0 : i32, i32
  }
  func.func @transform_3(%arg0: i32, %arg1: i32) -> (i32, i32) {
    %c0_i32 = arith.constant 0 : i32
    return %arg1, %arg0 : i32, i32
  }
  func.func @transform_4(%arg0: i32, %arg1: i32) -> (i32, i32) {
    %c0_i32 = arith.constant 0 : i32
    return %arg1, %arg0 : i32, i32
  }
}

module attributes {stable_mosaic.version = 11 : i64} {
  func.func @_mm_kernel(%arg0: i32, %arg1: i32, %arg2: memref<48x128xbf16, #tpu.memory_space<vmem>>, %arg3: memref<1x128xf32, #tpu.memory_space<vmem>>, %arg4: memref<1x128xf32, #tpu.memory_space<vmem>>, %arg5: memref<128x384xbf16, #tpu.memory_space<vmem>>, %arg6: memref<1x384xf32, #tpu.memory_space<vmem>>, %arg7: memref<48x384xbf16, #tpu.memory_space<vmem>>) attributes {dimension_semantics = [#tpu.dimension_semantics<parallel>, #tpu.dimension_semantics<parallel>], iteration_bounds = array<i64: 1, 1>, scalar_prefetch = 0 : i64, scratch_operands = 0 : i64, tpu.core_type = #tpu.core_type<tc>, window_params = [{transform_indices = @transform_0, window_bounds = array<i64: 48, 128>}, {pipeline_mode = #tpu.pipeline_mode<synchronous>, transform_indices = @transform_1, window_bounds = array<i64: 1, 128>}, {pipeline_mode = #tpu.pipeline_mode<synchronous>, transform_indices = @transform_2, window_bounds = array<i64: 1, 128>}, {transform_indices = @transform_3, window_bounds = array<i64: 128, 384>}, {transform_indices = @transform_4, window_bounds = array<i64: 1, 384>}, {transform_indices = @transform_5, window_bounds = array<i64: 48, 384>}]} {
    %c0 = arith.constant 0 : index
    %c0_0 = arith.constant 0 : index
    %0 = vector.load %arg2[%c0, %c0_0] : memref<48x128xbf16, #tpu.memory_space<vmem>>, vector<48x128xbf16>
    %1 = arith.extf %0 : vector<48x128xbf16> to vector<48x128xf32>
    %cst = arith.constant dense<0.000000e+00> : vector<48xf32>
    %2 = vector.multi_reduction <add>, %1, %cst [1] : vector<48x128xf32> to vector<48xf32>
    %3 = vector.shape_cast %2 : vector<48xf32> to vector<48x1xf32>
    %cst_1 = arith.constant 1.280000e+02 : f32
    %4 = vector.broadcast %cst_1 : f32 to vector<48x1xf32>
    %5 = arith.divf %3, %4 : vector<48x1xf32>
    %6 = vector.broadcast %5 : vector<48x1xf32> to vector<48x128xf32>
    %7 = arith.subf %1, %6 : vector<48x128xf32>
    %8 = arith.mulf %7, %7 : vector<48x128xf32>
    %cst_2 = arith.constant dense<0.000000e+00> : vector<48xf32>
    %9 = vector.multi_reduction <add>, %8, %cst_2 [1] : vector<48x128xf32> to vector<48xf32>
    %10 = vector.shape_cast %9 : vector<48xf32> to vector<48x1xf32>
    %cst_3 = arith.constant 1.280000e+02 : f32
    %11 = vector.broadcast %cst_3 : f32 to vector<48x1xf32>
    %12 = arith.divf %10, %11 : vector<48x1xf32>
    %cst_4 = arith.constant 9.99999996E-13 : f32
    %13 = vector.broadcast %cst_4 : f32 to vector<48x1xf32>
    %14 = arith.addf %12, %13 : vector<48x1xf32>
    %15 = math.rsqrt %14 : vector<48x1xf32>
    %16 = vector.broadcast %15 : vector<48x1xf32> to vector<48x128xf32>
    %17 = arith.mulf %7, %16 : vector<48x128xf32>
    %c0_5 = arith.constant 0 : index
    %c0_6 = arith.constant 0 : index
    %18 = vector.load %arg3[%c0_5, %c0_6] : memref<1x128xf32, #tpu.memory_space<vmem>>, vector<1x128xf32>
    %19 = vector.broadcast %18 : vector<1x128xf32> to vector<48x128xf32>
    %20 = arith.mulf %17, %19 : vector<48x128xf32>
    %c0_7 = arith.constant 0 : index
    %c0_8 = arith.constant 0 : index
    %21 = vector.load %arg4[%c0_7, %c0_8] : memref<1x128xf32, #tpu.memory_space<vmem>>, vector<1x128xf32>
    %22 = vector.broadcast %21 : vector<1x128xf32> to vector<48x128xf32>
    %23 = arith.addf %20, %22 : vector<48x128xf32>
    %24 = arith.truncf %23 : vector<48x128xf32> to vector<48x128xbf16>
    %c0_9 = arith.constant 0 : index
    %c0_10 = arith.constant 0 : index
    %25 = vector.load %arg5[%c0_9, %c0_10] : memref<128x384xbf16, #tpu.memory_space<vmem>>, vector<128x384xbf16>
    %cst_11 = arith.constant dense<0.000000e+00> : vector<48x384xf32>
    %26 = tpu.matmul %24, %25, %cst_11 {dimension_numbers = #tpu.dot_dimension_numbers<[1], [0], [0], [1], [0, 0, 1, 1], [], []>} : vector<48x128xbf16>, vector<128x384xbf16>, vector<48x384xf32> -> vector<48x384xf32>
    %c0_12 = arith.constant 0 : index
    %c0_13 = arith.constant 0 : index
    %27 = vector.load %arg6[%c0_12, %c0_13] : memref<1x384xf32, #tpu.memory_space<vmem>>, vector<1x384xf32>
    %28 = vector.broadcast %27 : vector<1x384xf32> to vector<48x384xf32>
    %29 = arith.addf %26, %28 : vector<48x384xf32>
    %30 = arith.truncf %29 : vector<48x384xf32> to vector<48x384xbf16>
    %c0_14 = arith.constant 0 : index
    %c0_15 = arith.constant 0 : index
    %31 = vector.load %arg7[%c0_14, %c0_15] : memref<48x384xbf16, #tpu.memory_space<vmem>>, vector<48x384xbf16>
    tpu.vector_store %arg7[%c0_14, %c0_15], %30 {strides = array<i32>} : memref<48x384xbf16, #tpu.memory_space<vmem>>, vector<48x384xbf16>,
    return
  }
  func.func @transform_0(%arg0: i32, %arg1: i32) -> (i32, i32) {
    %c0_i32 = arith.constant 0 : i32
    %c0_i32_0 = arith.constant 0 : i32
    return %arg1, %c0_i32 : i32, i32
  }
  func.func @transform_1(%arg0: i32, %arg1: i32) -> (i32, i32) {
    %c0_i32 = arith.constant 0 : i32
    %c0_i32_0 = arith.constant 0 : i32
    %c0_i32_1 = arith.constant 0 : i32
    return %c0_i32, %c0_i32_0 : i32, i32
  }
  func.func @transform_2(%arg0: i32, %arg1: i32) -> (i32, i32) {
    %c0_i32 = arith.constant 0 : i32
    %c0_i32_0 = arith.constant 0 : i32
    %c0_i32_1 = arith.constant 0 : i32
    return %c0_i32, %c0_i32_0 : i32, i32
  }
  func.func @transform_3(%arg0: i32, %arg1: i32) -> (i32, i32) {
    %c0_i32 = arith.constant 0 : i32
    %c0_i32_0 = arith.constant 0 : i32
    return %c0_i32, %arg0 : i32, i32
  }
  func.func @transform_4(%arg0: i32, %arg1: i32) -> (i32, i32) {
    %c0_i32 = arith.constant 0 : i32
    %c0_i32_0 = arith.constant 0 : i32
    return %c0_i32, %arg0 : i32, i32
  }
  func.func @transform_5(%arg0: i32, %arg1: i32) -> (i32, i32) {
    %c0_i32 = arith.constant 0 : i32
    return %arg1, %arg0 : i32, i32
  }
}

module attributes {stable_mosaic.version = 11 : i64} {
  func.func @_mlp_kernel(%arg0: i32, %arg1: memref<48x128xbf16, #tpu.memory_space<vmem>>, %arg2: memref<1x128xf32, #tpu.memory_space<vmem>>, %arg3: memref<1x128xf32, #tpu.memory_space<vmem>>, %arg4: memref<128x512xbf16, #tpu.memory_space<vmem>>, %arg5: memref<1x512xf32, #tpu.memory_space<vmem>>, %arg6: memref<512x128xbf16, #tpu.memory_space<vmem>>, %arg7: memref<1x128xf32, #tpu.memory_space<vmem>>, %arg8: memref<48x128xbf16, #tpu.memory_space<vmem>>) attributes {dimension_semantics = [#tpu.dimension_semantics<parallel>], iteration_bounds = array<i64: 1>, scalar_prefetch = 0 : i64, scratch_operands = 0 : i64, tpu.core_type = #tpu.core_type<tc>, window_params = [{transform_indices = @transform_0, window_bounds = array<i64: 48, 128>}, {pipeline_mode = #tpu.pipeline_mode<synchronous>, transform_indices = @transform_1, window_bounds = array<i64: 1, 128>}, {pipeline_mode = #tpu.pipeline_mode<synchronous>, transform_indices = @transform_2, window_bounds = array<i64: 1, 128>}, {pipeline_mode = #tpu.pipeline_mode<synchronous>, transform_indices = @transform_3, window_bounds = array<i64: 128, 512>}, {pipeline_mode = #tpu.pipeline_mode<synchronous>, transform_indices = @transform_4, window_bounds = array<i64: 1, 512>}, {pipeline_mode = #tpu.pipeline_mode<synchronous>, transform_indices = @transform_5, window_bounds = array<i64: 512, 128>}, {pipeline_mode = #tpu.pipeline_mode<synchronous>, transform_indices = @transform_6, window_bounds = array<i64: 1, 128>}, {transform_indices = @transform_7, window_bounds = array<i64: 48, 128>}]} {
    %c0 = arith.constant 0 : index
    %c0_0 = arith.constant 0 : index
    %0 = vector.load %arg1[%c0, %c0_0] : memref<48x128xbf16, #tpu.memory_space<vmem>>, vector<48x128xbf16>
    %1 = arith.extf %0 : vector<48x128xbf16> to vector<48x128xf32>
    %cst = arith.constant dense<0.000000e+00> : vector<48xf32>
    %2 = vector.multi_reduction <add>, %1, %cst [1] : vector<48x128xf32> to vector<48xf32>
    %3 = vector.shape_cast %2 : vector<48xf32> to vector<48x1xf32>
    %cst_1 = arith.constant 1.280000e+02 : f32
    %4 = vector.broadcast %cst_1 : f32 to vector<48x1xf32>
    %5 = arith.divf %3, %4 : vector<48x1xf32>
    %6 = vector.broadcast %5 : vector<48x1xf32> to vector<48x128xf32>
    %7 = arith.subf %1, %6 : vector<48x128xf32>
    %8 = arith.mulf %7, %7 : vector<48x128xf32>
    %cst_2 = arith.constant dense<0.000000e+00> : vector<48xf32>
    %9 = vector.multi_reduction <add>, %8, %cst_2 [1] : vector<48x128xf32> to vector<48xf32>
    %10 = vector.shape_cast %9 : vector<48xf32> to vector<48x1xf32>
    %cst_3 = arith.constant 1.280000e+02 : f32
    %11 = vector.broadcast %cst_3 : f32 to vector<48x1xf32>
    %12 = arith.divf %10, %11 : vector<48x1xf32>
    %cst_4 = arith.constant 9.99999996E-13 : f32
    %13 = vector.broadcast %cst_4 : f32 to vector<48x1xf32>
    %14 = arith.addf %12, %13 : vector<48x1xf32>
    %15 = math.rsqrt %14 : vector<48x1xf32>
    %16 = vector.broadcast %15 : vector<48x1xf32> to vector<48x128xf32>
    %17 = arith.mulf %7, %16 : vector<48x128xf32>
    %c0_5 = arith.constant 0 : index
    %c0_6 = arith.constant 0 : index
    %18 = vector.load %arg2[%c0_5, %c0_6] : memref<1x128xf32, #tpu.memory_space<vmem>>, vector<1x128xf32>
    %19 = vector.broadcast %18 : vector<1x128xf32> to vector<48x128xf32>
    %20 = arith.mulf %17, %19 : vector<48x128xf32>
    %c0_7 = arith.constant 0 : index
    %c0_8 = arith.constant 0 : index
    %21 = vector.load %arg3[%c0_7, %c0_8] : memref<1x128xf32, #tpu.memory_space<vmem>>, vector<1x128xf32>
    %22 = vector.broadcast %21 : vector<1x128xf32> to vector<48x128xf32>
    %23 = arith.addf %20, %22 : vector<48x128xf32>
    %24 = arith.truncf %23 : vector<48x128xf32> to vector<48x128xbf16>
    %c0_9 = arith.constant 0 : index
    %c0_10 = arith.constant 0 : index
    %25 = vector.load %arg4[%c0_9, %c0_10] : memref<128x512xbf16, #tpu.memory_space<vmem>>, vector<128x512xbf16>
    %cst_11 = arith.constant dense<0.000000e+00> : vector<48x512xf32>
    %26 = tpu.matmul %24, %25, %cst_11 {dimension_numbers = #tpu.dot_dimension_numbers<[1], [0], [0], [1], [0, 0, 1, 1], [], []>} : vector<48x128xbf16>, vector<128x512xbf16>, vector<48x512xf32> -> vector<48x512xf32>
    %c0_12 = arith.constant 0 : index
    %c0_13 = arith.constant 0 : index
    %27 = vector.load %arg5[%c0_12, %c0_13] : memref<1x512xf32, #tpu.memory_space<vmem>>, vector<1x512xf32>
    %28 = vector.broadcast %27 : vector<1x512xf32> to vector<48x512xf32>
    %29 = arith.addf %26, %28 : vector<48x512xf32>
    %cst_14 = arith.constant 5.000000e-01 : f32
    %30 = vector.broadcast %cst_14 : f32 to vector<48x512xf32>
    %31 = arith.mulf %30, %29 : vector<48x512xf32>
    %cst_15 = arith.constant 0.707106769 : f32
    %32 = vector.broadcast %cst_15 : f32 to vector<48x512xf32>
    %33 = arith.mulf %29, %32 : vector<48x512xf32>
    %cst_16 = arith.constant 0.000000e+00 : f32
    %34 = vector.broadcast %cst_16 : f32 to vector<48x512xf32>
    %35 = arith.cmpf oge, %33, %34 : vector<48x512xf32>
    %cst_17 = arith.constant 1.000000e+00 : f32
    %cst_18 = arith.constant -1.000000e+00 : f32
    %36 = vector.broadcast %cst_17 : f32 to vector<48x512xf32>
    %37 = vector.broadcast %cst_18 : f32 to vector<48x512xf32>
    %38 = arith.select %35, %36, %37 : vector<48x512xi1>, vector<48x512xf32>
    %39 = math.absf %33 : vector<48x512xf32>
    %cst_19 = arith.constant 0.327591091 : f32
    %40 = vector.broadcast %cst_19 : f32 to vector<48x512xf32>
    %41 = arith.mulf %40, %39 : vector<48x512xf32>
    %cst_20 = arith.constant 1.000000e+00 : f32
    %42 = vector.broadcast %cst_20 : f32 to vector<48x512xf32>
    %43 = arith.addf %42, %41 : vector<48x512xf32>
    %cst_21 = arith.constant 1.000000e+00 : f32
    %44 = vector.broadcast %cst_21 : f32 to vector<48x512xf32>
    %45 = arith.divf %44, %43 : vector<48x512xf32>
    %cst_22 = arith.constant 1.06140542 : f32
    %46 = vector.broadcast %cst_22 : f32 to vector<48x512xf32>
    %47 = arith.mulf %46, %45 : vector<48x512xf32>
    %cst_23 = arith.constant -1.45315206 : f32
    %48 = vector.broadcast %cst_23 : f32 to vector<48x512xf32>
    %49 = arith.addf %47, %48 : vector<48x512xf32>
    %50 = arith.mulf %49, %45 : vector<48x512xf32>
    %cst_24 = arith.constant 1.42141378 : f32
    %51 = vector.broadcast %cst_24 : f32 to vector<48x512xf32>
    %52 = arith.addf %50, %51 : vector<48x512xf32>
    %53 = arith.mulf %52, %45 : vector<48x512xf32>
    %cst_25 = arith.constant -0.284496725 : f32
    %54 = vector.broadcast %cst_25 : f32 to vector<48x512xf32>
    %55 = arith.addf %53, %54 : vector<48x512xf32>
    %56 = arith.mulf %55, %45 : vector<48x512xf32>
    %cst_26 = arith.constant 0.254829586 : f32
    %57 = vector.broadcast %cst_26 : f32 to vector<48x512xf32>
    %58 = arith.addf %56, %57 : vector<48x512xf32>
    %59 = arith.mulf %58, %45 : vector<48x512xf32>
    %cst_27 = arith.constant 0.000000e+00 : f32
    %60 = vector.broadcast %cst_27 : f32 to vector<48x512xf32>
    %61 = arith.subf %60, %39 : vector<48x512xf32>
    %62 = arith.mulf %61, %39 : vector<48x512xf32>
    %63 = math.exp %62 : vector<48x512xf32>
    %64 = arith.mulf %59, %63 : vector<48x512xf32>
    %cst_28 = arith.constant 1.000000e+00 : f32
    %65 = vector.broadcast %cst_28 : f32 to vector<48x512xf32>
    %66 = arith.subf %65, %64 : vector<48x512xf32>
    %67 = arith.mulf %38, %66 : vector<48x512xf32>
    %cst_29 = arith.constant 1.000000e+00 : f32
    %68 = vector.broadcast %cst_29 : f32 to vector<48x512xf32>
    %69 = arith.addf %68, %67 : vector<48x512xf32>
    %70 = arith.mulf %31, %69 : vector<48x512xf32>
    %71 = arith.truncf %70 : vector<48x512xf32> to vector<48x512xbf16>
    %c0_30 = arith.constant 0 : index
    %c0_31 = arith.constant 0 : index
    %72 = vector.load %arg6[%c0_30, %c0_31] : memref<512x128xbf16, #tpu.memory_space<vmem>>, vector<512x128xbf16>
    %cst_32 = arith.constant dense<0.000000e+00> : vector<48x128xf32>
    %73 = tpu.matmul %71, %72, %cst_32 {dimension_numbers = #tpu.dot_dimension_numbers<[1], [0], [0], [1], [0, 0, 1, 1], [], []>} : vector<48x512xbf16>, vector<512x128xbf16>, vector<48x128xf32> -> vector<48x128xf32>
    %c0_33 = arith.constant 0 : index
    %c0_34 = arith.constant 0 : index
    %74 = vector.load %arg7[%c0_33, %c0_34] : memref<1x128xf32, #tpu.memory_space<vmem>>, vector<1x128xf32>
    %75 = vector.broadcast %74 : vector<1x128xf32> to vector<48x128xf32>
    %76 = arith.addf %73, %75 : vector<48x128xf32>
    %77 = arith.addf %76, %1 : vector<48x128xf32>
    %78 = arith.truncf %77 : vector<48x128xf32> to vector<48x128xbf16>
    %c0_35 = arith.constant 0 : index
    %c0_36 = arith.constant 0 : index
    %79 = vector.load %arg8[%c0_35, %c0_36] : memref<48x128xbf16, #tpu.memory_space<vmem>>, vector<48x128xbf16>
    tpu.vector_store %arg8[%c0_35, %c0_36], %78 {strides = array<i32>} : memref<48x128xbf16, #tpu.memory_space<vmem>>, vector<48x128xbf16>,
    return
  }
  func.func @transform_0(%arg0: i32) -> (i32, i32) {
    %c0_i32 = arith.constant 0 : i32
    %c0_i32_0 = arith.constant 0 : i32
    return %arg0, %c0_i32 : i32, i32
  }
  func.func @transform_1(%arg0: i32) -> (i32, i32) {
    %c0_i32 = arith.constant 0 : i32
    %c0_i32_0 = arith.constant 0 : i32
    %c0_i32_1 = arith.constant 0 : i32
    return %c0_i32, %c0_i32_0 : i32, i32
  }
  func.func @transform_2(%arg0: i32) -> (i32, i32) {
    %c0_i32 = arith.constant 0 : i32
    %c0_i32_0 = arith.constant 0 : i32
    %c0_i32_1 = arith.constant 0 : i32
    return %c0_i32, %c0_i32_0 : i32, i32
  }
  func.func @transform_3(%arg0: i32) -> (i32, i32) {
    %c0_i32 = arith.constant 0 : i32
    %c0_i32_0 = arith.constant 0 : i32
    %c0_i32_1 = arith.constant 0 : i32
    return %c0_i32, %c0_i32_0 : i32, i32
  }
  func.func @transform_4(%arg0: i32) -> (i32, i32) {
    %c0_i32 = arith.constant 0 : i32
    %c0_i32_0 = arith.constant 0 : i32
    %c0_i32_1 = arith.constant 0 : i32
    return %c0_i32, %c0_i32_0 : i32, i32
  }
  func.func @transform_5(%arg0: i32) -> (i32, i32) {
    %c0_i32 = arith.constant 0 : i32
    %c0_i32_0 = arith.constant 0 : i32
    %c0_i32_1 = arith.constant 0 : i32
    return %c0_i32, %c0_i32_0 : i32, i32
  }
  func.func @transform_6(%arg0: i32) -> (i32, i32) {
    %c0_i32 = arith.constant 0 : i32
    %c0_i32_0 = arith.constant 0 : i32
    %c0_i32_1 = arith.constant 0 : i32
    return %c0_i32, %c0_i32_0 : i32, i32
  }
  func.func @transform_7(%arg0: i32) -> (i32, i32) {
    %c0_i32 = arith.constant 0 : i32
    %c0_i32_0 = arith.constant 0 : i32
    return %arg0, %c0_i32 : i32, i32
  }
}

module attributes {stable_mosaic.version = 11 : i64} {
  func.func @_layernorm_kernel(%arg0: i32, %arg1: memref<48x128xbf16, #tpu.memory_space<vmem>>, %arg2: memref<1x128xf32, #tpu.memory_space<vmem>>, %arg3: memref<1x128xf32, #tpu.memory_space<vmem>>, %arg4: memref<48x128xbf16, #tpu.memory_space<vmem>>) attributes {dimension_semantics = [#tpu.dimension_semantics<parallel>], iteration_bounds = array<i64: 1>, scalar_prefetch = 0 : i64, scratch_operands = 0 : i64, tpu.core_type = #tpu.core_type<tc>, window_params = [{transform_indices = @transform_0, window_bounds = array<i64: 48, 128>}, {pipeline_mode = #tpu.pipeline_mode<synchronous>, transform_indices = @transform_1, window_bounds = array<i64: 1, 128>}, {pipeline_mode = #tpu.pipeline_mode<synchronous>, transform_indices = @transform_2, window_bounds = array<i64: 1, 128>}, {transform_indices = @transform_3, window_bounds = array<i64: 48, 128>}]} {
    %c0 = arith.constant 0 : index
    %c0_0 = arith.constant 0 : index
    %0 = vector.load %arg1[%c0, %c0_0] : memref<48x128xbf16, #tpu.memory_space<vmem>>, vector<48x128xbf16>
    %1 = arith.extf %0 : vector<48x128xbf16> to vector<48x128xf32>
    %cst = arith.constant dense<0.000000e+00> : vector<48xf32>
    %2 = vector.multi_reduction <add>, %1, %cst [1] : vector<48x128xf32> to vector<48xf32>
    %3 = vector.shape_cast %2 : vector<48xf32> to vector<48x1xf32>
    %cst_1 = arith.constant 1.280000e+02 : f32
    %4 = vector.broadcast %cst_1 : f32 to vector<48x1xf32>
    %5 = arith.divf %3, %4 : vector<48x1xf32>
    %6 = vector.broadcast %5 : vector<48x1xf32> to vector<48x128xf32>
    %7 = arith.subf %1, %6 : vector<48x128xf32>
    %8 = arith.mulf %7, %7 : vector<48x128xf32>
    %cst_2 = arith.constant dense<0.000000e+00> : vector<48xf32>
    %9 = vector.multi_reduction <add>, %8, %cst_2 [1] : vector<48x128xf32> to vector<48xf32>
    %10 = vector.shape_cast %9 : vector<48xf32> to vector<48x1xf32>
    %cst_3 = arith.constant 1.280000e+02 : f32
    %11 = vector.broadcast %cst_3 : f32 to vector<48x1xf32>
    %12 = arith.divf %10, %11 : vector<48x1xf32>
    %cst_4 = arith.constant 9.99999996E-13 : f32
    %13 = vector.broadcast %cst_4 : f32 to vector<48x1xf32>
    %14 = arith.addf %12, %13 : vector<48x1xf32>
    %15 = math.rsqrt %14 : vector<48x1xf32>
    %16 = vector.broadcast %15 : vector<48x1xf32> to vector<48x128xf32>
    %17 = arith.mulf %7, %16 : vector<48x128xf32>
    %c0_5 = arith.constant 0 : index
    %c0_6 = arith.constant 0 : index
    %18 = vector.load %arg2[%c0_5, %c0_6] : memref<1x128xf32, #tpu.memory_space<vmem>>, vector<1x128xf32>
    %19 = vector.broadcast %18 : vector<1x128xf32> to vector<48x128xf32>
    %20 = arith.mulf %17, %19 : vector<48x128xf32>
    %c0_7 = arith.constant 0 : index
    %c0_8 = arith.constant 0 : index
    %21 = vector.load %arg3[%c0_7, %c0_8] : memref<1x128xf32, #tpu.memory_space<vmem>>, vector<1x128xf32>
    %22 = vector.broadcast %21 : vector<1x128xf32> to vector<48x128xf32>
    %23 = arith.addf %20, %22 : vector<48x128xf32>
    %24 = arith.truncf %23 : vector<48x128xf32> to vector<48x128xbf16>
    %c0_9 = arith.constant 0 : index
    %c0_10 = arith.constant 0 : index
    %25 = vector.load %arg4[%c0_9, %c0_10] : memref<48x128xbf16, #tpu.memory_space<vmem>>, vector<48x128xbf16>
    tpu.vector_store %arg4[%c0_9, %c0_10], %24 {strides = array<i32>} : memref<48x128xbf16, #tpu.memory_space<vmem>>, vector<48x128xbf16>,
    return
  }
  func.func @transform_0(%arg0: i32) -> (i32, i32) {
    %c0_i32 = arith.constant 0 : i32
    %c0_i32_0 = arith.constant 0 : i32
    return %arg0, %c0_i32 : i32, i32
  }
  func.func @transform_1(%arg0: i32) -> (i32, i32) {
    %c0_i32 = arith.constant 0 : i32
    %c0_i32_0 = arith.constant 0 : i32
    %c0_i32_1 = arith.constant 0 : i32
    return %c0_i32, %c0_i32_0 : i32, i32
  }
  func.func @transform_2(%arg0: i32) -> (i32, i32) {
    %c0_i32 = arith.constant 0 : i32
    %c0_i32_0 = arith.constant 0 : i32
    %c0_i32_1 = arith.constant 0 : i32
    return %c0_i32, %c0_i32_0 : i32, i32
  }
  func.func @transform_3(%arg0: i32) -> (i32, i32) {
    %c0_i32 = arith.constant 0 : i32
    %c0_i32_0 = arith.constant 0 : i32
    return %arg0, %c0_i32 : i32, i32
  }
}

</mosaic_0001>

<llo_original>
// kernel: vit_encoder_forward.13
$region0: #{vit_encoder_forward.13}
  #allocation0 [shape = 'u32[]', space=smem, size = 0x4, offset = 0x4, fixed_abs, tag = 'smem constant byte address 0x4 - core index']
  #allocation1 [shape = 'u32[144,128]{1,0:T(1,128)}', space=vmem, size = 0x12000, scoped, tag = 'internal scratch']
  %s0 = inlined_call_operand.vmem [shape: bf16[48,128], index: 0, kind: input, shape index: {}]
  %s1 = inlined_call_operand.vmem [shape: bf16[128,128], index: 1, kind: input, shape index: {}]
  %s2 = inlined_call_operand.vmem [shape: f32[1,128], index: 2, kind: input, shape index: {}]
  %s3 = inlined_call_operand.vmem [shape: bf16[48,128], index: 3, kind: input, shape index: {}]
  %s4 = inlined_call_operand.vmem [shape: bf16[48,128], index: 4, kind: output, shape index: {}]
  %s5 = sld [smem:[#allocation0]]
  $region26: #{vit_encoder_forward.13} parent=0
    _
  %s7 = ssub.s32 1, %s5
  %s8 = scalar_select 0, %s7, %s5
  // Predicated region
  $region2: #{vit_encoder_forward.13} parent=0 // pred_check
    _
  $region3: #{vit_encoder_forward.13} parent=0 // pred_check_branch
    %10 = sbr.rel (0) target = $region5
  $region4: #{vit_encoder_forward.13} parent=0 // pred_region
    _
  $region5: #{vit_encoder_forward.13} parent=0 // pred_fallthru
    _
  // Predicated region
  $region6: #{vit_encoder_forward.13} parent=0 // pred_check
    _
  $region7: #{vit_encoder_forward.13} parent=0 // pred_check_branch
    %12 = sbr.rel (0) target = $region9
  $region8: #{vit_encoder_forward.13} parent=0 // pred_region
    _
  $region9: #{vit_encoder_forward.13} parent=0 // pred_fallthru
    _
  // Predicated region
  $region10: #{vit_encoder_forward.13} parent=0 // pred_check
    _
  $region11: #{vit_encoder_forward.13} parent=0 // pred_check_branch
    %14 = sbr.rel (0) target = $region13
  $region12: #{vit_encoder_forward.13} parent=0 // pred_region
    _
  $region13: #{vit_encoder_forward.13} parent=0 // pred_fallthru
    _
  // Predicated region
  $region14: #{vit_encoder_forward.13} parent=0 // pred_check
    _
  $region15: #{vit_encoder_forward.13} parent=0 // pred_check_branch
    %16 = sbr.rel (0) target = $region17
  $region16: #{vit_encoder_forward.13} parent=0 // pred_region
    _
  $region17: #{vit_encoder_forward.13} parent=0 // pred_fallthru
    _
  %v18 = vld [vmem:[%s0] sm:$0xf]
  %v19 = vld [vmem:[%s0 + $0x4] sm:$0xf]
  %v20 = vld [vmem:[%s0 + $0x8] sm:$0xf]
  %v21 = vld [vmem:[%s0 + $0xc] sm:$0xf]
  %v22 = vld [vmem:[%s0 + $0x10] sm:$0xf]
  %v23 = vld [vmem:[%s0 + $0x14] sm:$0xf]
  %v24 = vld [vmem:[%s1] sm:$0xf]
  %v25 = vld [vmem:[%s1 + $0x4] sm:$0xf]
  %v26 = vld [vmem:[%s1 + $0x8] sm:$0xf]
  %v27 = vld [vmem:[%s1 + $0xc] sm:$0xf]
  %v28 = vld [vmem:[%s1 + $0x10] sm:$0xf]
  %v29 = vld [vmem:[%s1 + $0x14] sm:$0xf]
  %v30 = vld [vmem:[%s1 + $0x18] sm:$0xf]
  %v31 = vld [vmem:[%s1 + $0x1c] sm:$0xf]
  %v32 = vld [vmem:[%s1 + $0x20] sm:$0xf]
  %v33 = vld [vmem:[%s1 + $0x24] sm:$0xf]
  %v34 = vld [vmem:[%s1 + $0x28] sm:$0xf]
  %v35 = vld [vmem:[%s1 + $0x2c] sm:$0xf]
  %v36 = vld [vmem:[%s1 + $0x30] sm:$0xf]
  %v37 = vld [vmem:[%s1 + $0x34] sm:$0xf]
  %v38 = vld [vmem:[%s1 + $0x38] sm:$0xf]
  %v39 = vld [vmem:[%s1 + $0x3c] sm:$0xf]
  %v40 = vld [vmem:[%s2] sm:$0x1]
  %v42 = vlaneseq
  %v43 = vshrl.u32 %v42, 7
  %v44 = vsub.s32 0, %v43
  %v45 = vrot.slane %v40, %v44
  %v53 = vunpack.c.l.b16 %v18
  %v54 = vunpack.c.l.b16 %v19
  %v55 = vunpack.c.l.b16 %v20
  %v56 = vunpack.c.l.b16 %v21
  %v57 = vunpack.c.l.b16 %v22
  %v58 = vunpack.c.l.b16 %v23
  %v59 = vpack.c.b16 %v54, %v53
  %v60 = vpack.c.b16 %v56, %v55
  %v61 = vpack.c.b16 %v58, %v57
  %v81 = vunpack.c.l.b16 %v24
  %v82 = vunpack.c.l.b16 %v25
  %v83 = vunpack.c.l.b16 %v26
  %v84 = vunpack.c.l.b16 %v27
  %v85 = vunpack.c.l.b16 %v28
  %v86 = vunpack.c.l.b16 %v29
  %v87 = vunpack.c.l.b16 %v30
  %v88 = vunpack.c.l.b16 %v31
  %v89 = vunpack.c.l.b16 %v32
  %v90 = vunpack.c.l.b16 %v33
  %v91 = vunpack.c.l.b16 %v34
  %v92 = vunpack.c.l.b16 %v35
  %v93 = vunpack.c.l.b16 %v36
  %v94 = vunpack.c.l.b16 %v37
  %v95 = vunpack.c.l.b16 %v38
  %v96 = vunpack.c.l.b16 %v39
  %v97 = vpack.c.b16 %v82, %v81
  %v98 = vpack.c.b16 %v84, %v83
  %v99 = vpack.c.b16 %v86, %v85
  %v100 = vpack.c.b16 %v88, %v87
  %v101 = vpack.c.b16 %v90, %v89
  %v102 = vpack.c.b16 %v92, %v91
  %v103 = vpack.c.b16 %v94, %v93
  %v104 = vpack.c.b16 %v96, %v95
  %113 = vmatprep.subr.bf16.mxu0 0
  %114 = vmatpush1.bf16.msra.mxu0 %v97
  %115 = vmatprep.subr.bf16.mxu0 0
  %116 = vmatpush1.bf16.msra.mxu0 %v98
  %117 = vmatprep.subr.bf16.mxu0 0
  %118 = vmatpush1.bf16.msra.mxu0 %v99
  %119 = vmatprep.subr.bf16.mxu0 0
  %120 = vmatpush1.bf16.msra.mxu0 %v100
  %121 = vmatprep.subr.bf16.mxu0 0
  %122 = vmatpush1.bf16.msra.mxu0 %v101
  %123 = vmatprep.subr.bf16.mxu0 0
  %124 = vmatpush1.bf16.msra.mxu0 %v102
  %125 = vmatprep.subr.bf16.mxu0 0
  %126 = vmatpush1.bf16.msra.mxu0 %v103
  %127 = vmatprep.subr.bf16.mxu0 0
  %128 = vmatpush1.bf16.msra.mxu0 %v104
  %129 = vmatprep.subr.bf16.mxu0 0
  %130 = vmatpush1.bf16.msra.mxu0 0
  %131 = vmatprep.subr.bf16.mxu0 0
  %132 = vmatpush1.bf16.msra.mxu0 0
  %133 = vmatprep.subr.bf16.mxu0 0
  %134 = vmatpush1.bf16.msra.mxu0 0
  %135 = vmatprep.subr.bf16.mxu0 0
  %136 = vmatpush1.bf16.msra.mxu0 0
  %137 = vmatprep.subr.bf16.mxu0 0
  %138 = vmatpush1.bf16.msra.mxu0 0
  %139 = vmatprep.subr.bf16.mxu0 0
  %140 = vmatpush1.bf16.msra.mxu0 0
  %141 = vmatprep.subr.bf16.mxu0 0
  %142 = vmatpush1.bf16.msra.mxu0 0
  %143 = vmatprep.subr.bf16.mxu0 0
  %144 = vmatpush1.bf16.msra.mxu0 0
  %145 = vmatprep.mubr.bf16.mxu0 0
  %146 = vmatmul.mubr.bf16.gmra.mrb[0].mxu0 %v59
  %v147 = vpop.f32.mrb[0].mxu0
  %v148 = vadd.f32 %v45, %v147
  %v149 = vpop.f32.mrb[0].mxu0
  %v150 = vpop.f32.mrb[0].mxu0
  %v151 = vadd.f32 %v45, %v150
  %v152 = vpop.f32.mrb[0].mxu0
  %153 = vmatprep.mubr.bf16.mxu0 0
  %154 = vmatmul.mubr.bf16.gmra.mrb[0].mxu0 %v60
  %v155 = vpop.f32.mrb[0].mxu0
  %v156 = vadd.f32 %v45, %v155
  %v157 = vpop.f32.mrb[0].mxu0
  %v158 = vpop.f32.mrb[0].mxu0
  %v159 = vadd.f32 %v45, %v158
  %v160 = vpop.f32.mrb[0].mxu0
  %161 = vmatprep.mubr.bf16.mxu0 0
  %162 = vmatmul.mubr.bf16.gmra.mrb[0].mxu0 %v61
  %v163 = vpop.f32.mrb[0].mxu0
  %v164 = vadd.f32 %v45, %v163
  %v165 = vpop.f32.mrb[0].mxu0
  %v166 = vpop.f32.mrb[0].mxu0
  %v167 = vadd.f32 %v45, %v166
  %v168 = vpop.f32.mrb[0].mxu0
  %169 = vdwg.mxu0
  %v170 = vld [vmem:[%s3] sm:$0xf]
  %v171 = vld [vmem:[%s3 + $0x4] sm:$0xf]
  %v172 = vld [vmem:[%s3 + $0x8] sm:$0xf]
  %v173 = vld [vmem:[%s3 + $0xc] sm:$0xf]
  %v174 = vld [vmem:[%s3 + $0x10] sm:$0xf]
  %v175 = vld [vmem:[%s3 + $0x14] sm:$0xf]
  %v176 = vunpack.c.l.bf16 %v170
  %v177 = vunpack.c.l.bf16 %v171
  %v178 = vunpack.c.l.bf16 %v172
  %v179 = vunpack.c.l.bf16 %v173
  %v180 = vunpack.c.l.bf16 %v174
  %v181 = vunpack.c.l.bf16 %v175
  %v182 = vadd.f32 %v148, %v176
  %v183 = vadd.f32 %v151, %v177
  %v184 = vadd.f32 %v156, %v178
  %v185 = vadd.f32 %v159, %v179
  %v186 = vadd.f32 %v164, %v180
  %v187 = vadd.f32 %v167, %v181
  %v188 = vpack.c.bf16 %v183, %v182
  %v189 = vpack.c.bf16 %v185, %v184
  %v190 = vpack.c.bf16 %v187, %v186
  %v194 = vunpack.c.l.b16 %v188
  %v195 = vunpack.c.h.b16 %v188
  %v196 = vunpack.c.l.b16 %v189
  %v197 = vunpack.c.h.b16 %v189
  %v198 = vunpack.c.l.b16 %v190
  %v199 = vunpack.c.h.b16 %v190
  %v200 = vpack.c.b16 %v194, %v194
  %v201 = vpack.c.b16 %v195, %v195
  %v202 = vpack.c.b16 %v196, %v196
  %v203 = vpack.c.b16 %v197, %v197
  %v204 = vpack.c.b16 %v198, %v198
  %v205 = vpack.c.b16 %v199, %v199
  %212 = vst [vmem:[%s4] sm:$0xf] %v200
  %213 = vst [vmem:[%s4 + $0x4] sm:$0xf] %v201
  %214 = vst [vmem:[%s4 + $0x8] sm:$0xf] %v202
  %215 = vst [vmem:[%s4 + $0xc] sm:$0xf] %v203
  %216 = vst [vmem:[%s4 + $0x10] sm:$0xf] %v204
  %217 = vst [vmem:[%s4 + $0x14] sm:$0xf] %v205
  // Predicated region
  $region18: #{vit_encoder_forward.13} parent=0 // pred_check
    _
  $region19: #{vit_encoder_forward.13} parent=0 // pred_check_branch
    %219 = sbr.rel (0) target = $region21
  $region20: #{vit_encoder_forward.13} parent=0 // pred_region
    _
  $region21: #{vit_encoder_forward.13} parent=0 // pred_fallthru
    _
  // Predicated region
  $region22: #{vit_encoder_forward.13} parent=0 // pred_check
    _
  $region23: #{vit_encoder_forward.13} parent=0 // pred_check_branch
    %221 = sbr.rel (0) target = $region25
  $region24: #{vit_encoder_forward.13} parent=0 // pred_region
    _
  $region25: #{vit_encoder_forward.13} parent=0 // pred_fallthru
    _

// kernel: vit_encoder_forward.12
$region0: #{vit_encoder_forward.12}
  #allocation0 [shape = 'u32[]', space=smem, size = 0x4, offset = 0x4, fixed_abs, tag = 'smem constant byte address 0x4 - core index']
  #allocation1 [shape = 'u32[144,128]{1,0:T(1,128)}', space=vmem, size = 0x12000, scoped, tag = 'internal scratch']
  #allocation2 [shape = 'f32[24,128]{1,0:T(8,128)}', space=vmem, size = 0x3000, scoped, tag = 'scratch operand']
  %s0 = inlined_call_operand.vmem [shape: bf16[2,24,384], index: 0, kind: input, shape index: {}]
  %s1 = inlined_call_operand.vmem [shape: bf16[2,24,128], index: 1, kind: output, shape index: {}]
  %s2 = sld [smem:[#allocation0]]
  $region37: #{vit_encoder_forward.12} parent=0
    _
  %s4 = ssub.s32 1, %s2
  %s5 = scalar_select 0, %s4, %s2
  loop: start=0, step=1, limit=4
  $region2: #{vit_encoder_forward.12} parent=0 // loop_pre_header
    _
  $region3: #{vit_encoder_forward.12} parent=0 // loop_header
    %s7 = sphi 0, %s11
    %p8 = scmp.ge.s32.totalorder %s7, 4
    %s17 = sphi 0, %s19
    %s20 = sphi 0, %s17
    %s21 = sphi 0, %s20
    %s37 = sphi 0, %s21
    %s43 = sphi 0, %s45
    %s46 = sphi 0, %s43
    %s47 = sphi 0, %s46
    %s63 = sphi 0, %s47
  $region4: #{vit_encoder_forward.12} parent=0 // loop_header_branch
    %10 = sbr.rel (%p8) target = $region8
  $region5: #{vit_encoder_forward.12} parent=0 // loop_body
    %s12 = ssub.s32 %s7, 1
    %s13 = ssub.s32 %s7, 2
    %s14 = sadd.s32 %s7, 1
    %s15 = ssub.s32 %s7, %s14
    %p16 = scmp.eq.s32.totalorder %s15, 0
    %s18 = sadd.s32 %s17, 1
    %s19 = scalar_select %p16, %s17, %s18
    %p22 = pneg %p16
    %p23 = scmp.eq.s32.totalorder %s7, 1
    %p24 = por %p22, %p23
    %p25 = scmp.ne.s32.totalorder %s17, %s20
    %p26 = scmp.eq.s32.totalorder %s7, 0
    %p27 = por %p25, %p26
    %p28 = scmp.ne.s32.totalorder %s17, %s20
    %p29 = scmp.eq.s32.totalorder %s12, 1
    %p30 = por %p28, %p29
    %p31 = scmp.ne.s32.totalorder %s20, %s21
    %p32 = scmp.eq.s32.totalorder %s12, 0
    %p33 = por %p31, %p32
    %p34 = scmp.ne.s32.totalorder %s20, %s21
    %p35 = scmp.eq.s32.totalorder %s13, 1
    %p36 = por %p34, %p35
    %p38 = scmp.ne.s32.totalorder %s21, %s37
    %p39 = scmp.eq.s32.totalorder %s13, 0
    %p40 = por %p38, %p39
    %s41 = ssub.s32 %s7, %s14
    %p42 = scmp.eq.s32.totalorder %s41, 0
    %s44 = sadd.s32 %s43, 1
    %s45 = scalar_select %p42, %s43, %s44
    %p48 = pneg %p42
    %p49 = scmp.eq.s32.totalorder %s7, 1
    %p50 = por %p48, %p49
    %p51 = scmp.ne.s32.totalorder %s43, %s46
    %p52 = scmp.eq.s32.totalorder %s7, 0
    %p53 = por %p51, %p52
    %p54 = scmp.ne.s32.totalorder %s43, %s46
    %p55 = scmp.eq.s32.totalorder %s12, 1
    %p56 = por %p54, %p55
    %p57 = scmp.ne.s32.totalorder %s46, %s47
    %p58 = scmp.eq.s32.totalorder %s12, 0
    %p59 = por %p57, %p58
    %p60 = scmp.ne.s32.totalorder %s46, %s47
    %p61 = scmp.eq.s32.totalorder %s13, 1
    %p62 = por %p60, %p61
    %p64 = scmp.ne.s32.totalorder %s47, %s63
    %p65 = scmp.eq.s32.totalorder %s13, 0
    %p66 = por %p64, %p65
    %p67 = scmp.le.s32.totalorder 1, %s7
    %p68 = scmp.lt.s32.totalorder %s7, 3
    %p69 = pnand %p67, %p68
    %p70 = pneg %p69
    // Predicated region
    $region9: #{vit_encoder_forward.12} parent=5 // pred_check
      _
    $region10: #{vit_encoder_forward.12} parent=5 // pred_check_branch
      %72 = sbr.rel (%p69) target = $region12
    $region11: #{vit_encoder_forward.12} parent=5 // pred_region
      %s73 = ssub.s32 %s7, 1
    $region12: #{vit_encoder_forward.12} parent=5 // pred_fallthru
      _
    %p74 = scmp.lt.s32.totalorder %s7, 2
    // Predicated region
    $region13: #{vit_encoder_forward.12} parent=5 // pred_check
      %p75 = pneg %p74
    $region14: #{vit_encoder_forward.12} parent=5 // pred_check_branch
      %77 = sbr.rel (%p75) target = $region16
    $region15: #{vit_encoder_forward.12} parent=5 // pred_region
      // Predicated region
      $region17: #{vit_encoder_forward.12} parent=15 // pred_check
        %p78 = pneg %p27
      $region18: #{vit_encoder_forward.12} parent=15 // pred_check_branch
        %80 = sbr.rel (%p78) target = $region20
      $region19: #{vit_encoder_forward.12} parent=15 // pred_region
        %p81 = scmp.lt.s32.totalorder %s7, 1
        %s82 = scalar_select %p81, %s7, 1
        %s83 = smul.addr %s82, 9
        %s84 = smul.addr %s83, 4
        %s85 = scalar_lea.vmem %s0, %s84
      $region20: #{vit_encoder_forward.12} parent=15 // pred_fallthru
        _
    $region16: #{vit_encoder_forward.12} parent=5 // pred_fallthru
      _
    %p86 = scmp.le.s32.totalorder 1, %s7
    %p87 = scmp.lt.s32.totalorder %s7, 3
    %p88 = pnand %p86, %p87
    %p89 = pneg %p88
    // Predicated region
    $region21: #{vit_encoder_forward.12} parent=5 // pred_check
      _
    $region22: #{vit_encoder_forward.12} parent=5 // pred_check_branch
      %91 = sbr.rel (%p88) target = $region24
    $region23: #{vit_encoder_forward.12} parent=5 // pred_region
      %s92 = ssub.s32 %s7, 1
      %p93 = scmp.lt.s32.totalorder %s12, 1
      %s94 = scalar_select %p93, %s12, 1
      %s95 = smul.addr %s94, 9
      %s96 = smul.addr %s95, 4
      %s97 = scalar_lea.vmem %s0, %s96
      %p98 = pneg %p33
      %p99 = pneg %p30
      %p100 = pneg %p59
      %p101 = pneg %p56
      %p102 = scmp.lt.s32.totalorder %s12, 1
      %s103 = scalar_select %p102, %s12, 1
      %s104 = smul.addr %s103, 3
      %s105 = smul.addr %s104, 4
      %s106 = scalar_lea.vmem %s1, %s105
      %p107 = scmp.lt.s32.totalorder %s12, 1
      %s108 = scalar_select %p107, %s12, 1
      %s109 = smul.addr %s108, 9
      %s110 = smul.addr %s109, 4
      %s111 = scalar_lea.vmem %s0, %s110
      %p112 = scmp.lt.s32.totalorder %s12, 1
      %s113 = scalar_select %p112, %s12, 1
      %s114 = smul.addr %s113, 3
      %s115 = smul.addr %s114, 4
      %s116 = scalar_lea.vmem %s1, %s115
      %v118 = vld [vmem:[%s111] sm:$0xff]
      %v119 = vld [vmem:[%s111 + $0x8] sm:$0xf]
      %v120 = vld [vmem:[%s111 + $0xc] sm:$0xff]
      %v121 = vld [vmem:[%s111 + $0x14] sm:$0xf]
      %v122 = vld [vmem:[%s111 + $0x18] sm:$0xff]
      %v123 = vld [vmem:[%s111 + $0x20] sm:$0xf]
      %v124 = vlaneseq
      %v125 = vand.u32 %v124, 127
      %vm126 = vcmp.lt.s32.totalorder %v125, 17
      %v127 = vsel %vm126, 0.0, -1e+30
      %v131 = vunpack.c.l.b16 %v118
      %v132 = vunpack.c.l.b16 %v120
      %v133 = vunpack.c.l.b16 %v122
      %v134 = vpack.c.b16 %v132, %v131
      %v135 = vpack.c.b16 %v133, %v133
      %v136 = vunpack.c.h.b16 %v118
      %v137 = vunpack.c.h.b16 %v120
      %v138 = vunpack.c.h.b16 %v122
      %v139 = vpack.c.b16 %v137, %v136
      %v140 = vpack.c.b16 %v138, %v138
      %vm141 = vcmask 523264
      %v143 = vsel %vm141, %v134, 0
      %v146 = vsel %vm141, %v135, 0
      %v149 = vsel %vm141, %v139, 0
      %v152 = vsel %vm141, %v140, 0
      %154 = vmatprep.subr.bf16.mxu0 0
      %155 = vmatpush1.bf16.xpose.msra.mxu0 %v149
      %156 = vmatprep.subr.bf16.mxu0 0
      %157 = vmatpush1.bf16.xpose.msra.mxu0 %v152
      %158 = vmatprep.subr.bf16.mxu0 0
      %159 = vmatpush1.bf16.xpose.msra.mxu0 0
      %160 = vmatprep.subr.bf16.mxu0 0
      %161 = vmatpush1.bf16.xpose.msra.mxu0 0
      %162 = vmatprep.subr.bf16.mxu0 0
      %163 = vmatpush1.bf16.xpose.msra.mxu0 0
      %164 = vmatprep.subr.bf16.mxu0 0
      %165 = vmatpush1.bf16.xpose.msra.mxu0 0
      %166 = vmatprep.subr.bf16.mxu0 0
      %167 = vmatpush1.bf16.xpose.msra.mxu0 0
      %168 = vmatprep.subr.bf16.mxu0 0
      %169 = vmatpush1.bf16.xpose.msra.mxu0 0
      %170 = vmatprep.subr.bf16.mxu0 0
      %171 = vmatpush1.bf16.xpose.msra.mxu0 0
      %172 = vmatprep.subr.bf16.mxu0 0
      %173 = vmatpush1.bf16.xpose.msra.mxu0 0
      %174 = vmatprep.subr.bf16.mxu0 0
      %175 = vmatpush1.bf16.xpose.msra.mxu0 0
      %176 = vmatprep.subr.bf16.mxu0 0
      %177 = vmatpush1.bf16.xpose.msra.mxu0 0
      %178 = vmatprep.subr.bf16.mxu0 0
      %179 = vmatpush1.bf16.xpose.msra.mxu0 0
      %180 = vmatprep.subr.bf16.mxu0 0
      %181 = vmatpush1.bf16.xpose.msra.mxu0 0
      %182 = vmatprep.subr.bf16.mxu0 0
      %183 = vmatpush1.bf16.xpose.msra.mxu0 0
      %184 = vmatprep.subr.bf16.mxu0 0
      %185 = vmatpush1.bf16.xpose.msra.mxu0 0
      %186 = vmatprep.mubr.bf16.mxu0 0
      %187 = vmatmul.mubr.bf16.gmra.mrb[0].mxu0 %v143
      %v188 = vpop.f32.mrb[0].mxu0
      %v189 = vadd.f32 %v127, %v188
      %v190 = vpop.f32.mrb[0].mxu0
      %v191 = vpop.f32.mrb[0].mxu0
      %v192 = vadd.f32 %v127, %v191
      %v193 = vpop.f32.mrb[0].mxu0
      %194 = vmatprep.mubr.bf16.mxu0 0
      %195 = vmatmul.mubr.bf16.gmra.mrb[0].mxu0 %v146
      %v196 = vpop.f32.mrb[0].mxu0
      %v197 = vadd.f32 %v127, %v196
      %v198 = vpop.f32.mrb[0].mxu0
      %v199 = vpop.f32.mrb[0].mxu0
      %v200 = vpop.f32.mrb[0].mxu0
      %201 = vdwg.mxu0
      %vm202 = vcmask 195584
      %v203 = vsel %vm202, %v189, -inf
      %204 = vmax.xlane.f32.xlu0 %v203
      %v205 = vpop.xlane.xlu0 %204
      %v206 = vsel %vm202, %v192, -inf
      %207 = vmax.xlane.f32.xlu0 %v206
      %v208 = vpop.xlane.xlu0 %207
      %v209 = vsel %vm202, %v197, -inf
      %210 = vmax.xlane.f32.xlu0 %v209
      %v211 = vpop.xlane.xlu0 %210
      %v212 = vsub.f32 %v189, %v205
      %v213 = vsub.f32 %v192, %v208
      %v214 = vsub.f32 %v197, %v211
      %v215 = vmul.f32 %v212, 1.442695
      %v216 = vpow.pop %v215
      %v217 = vmul.f32 %v213, 1.442695
      %v218 = vpow.pop %v217
      %v219 = vmul.f32 %v214, 1.442695
      %v220 = vpow.pop %v219
      %v221 = vsel %vm202, %v216, 0.0
      %222 = vadd.xlane.f32.xlu0 %v221
      %v223 = vpop.xlane.xlu0 %222
      %v224 = vsel %vm202, %v218, 0.0
      %225 = vadd.xlane.f32.xlu0 %v224
      %v226 = vpop.xlane.xlu0 %225
      %v227 = vsel %vm202, %v220, 0.0
      %228 = vadd.xlane.f32.xlu0 %v227
      %v229 = vpop.xlane.xlu0 %228
      %v230 = vrcp.pop %v223
      %v231 = vrcp.pop %v226
      %v232 = vrcp.pop %v229
      %v233 = vpack.c.bf16 %v218, %v216
      %v234 = vpack.c.bf16 %v220, %v220
      %v238 = vunpack.c.l.b16 %v119
      %v239 = vunpack.c.l.b16 %v121
      %v240 = vunpack.c.l.b16 %v123
      %v241 = vpack.c.b16 %v239, %v238
      %v242 = vpack.c.b16 %v240, %v240
      %v245 = vsel %vm202, %v233, 0
      %v248 = vsel %vm202, %v234, 0
      %vm250 = vcmask 1043456
      %v252 = vsel %vm250, %v242, 0
      %254 = vmatprep.subr.bf16.mxu0 0
      %255 = vmatpush1.bf16.msra.mxu0 %v241
      %256 = vmatprep.subr.bf16.mxu0 0
      %257 = vmatpush1.bf16.msra.mxu0 %v252
      %258 = vmatprep.subr.bf16.mxu0 0
      %259 = vmatpush1.bf16.msra.mxu0 0
      %260 = vmatprep.subr.bf16.mxu0 0
      %261 = vmatpush1.bf16.msra.mxu0 0
      %262 = vmatprep.subr.bf16.mxu0 0
      %263 = vmatpush1.bf16.msra.mxu0 0
      %264 = vmatprep.subr.bf16.mxu0 0
      %265 = vmatpush1.bf16.msra.mxu0 0
      %266 = vmatprep.subr.bf16.mxu0 0
      %267 = vmatpush1.bf16.msra.mxu0 0
      %268 = vmatprep.subr.bf16.mxu0 0
      %269 = vmatpush1.bf16.msra.mxu0 0
      %270 = vmatprep.subr.bf16.mxu0 0
      %271 = vmatpush1.bf16.msra.mxu0 0
      %272 = vmatprep.subr.bf16.mxu0 0
      %273 = vmatpush1.bf16.msra.mxu0 0
      %274 = vmatprep.subr.bf16.mxu0 0
      %275 = vmatpush1.bf16.msra.mxu0 0
      %276 = vmatprep.subr.bf16.mxu0 0
      %277 = vmatpush1.bf16.msra.mxu0 0
      %278 = vmatprep.subr.bf16.mxu0 0
      %279 = vmatpush1.bf16.msra.mxu0 0
      %280 = vmatprep.subr.bf16.mxu0 0
      %281 = vmatpush1.bf16.msra.mxu0 0
      %282 = vmatprep.subr.bf16.mxu0 0
      %283 = vmatpush1.bf16.msra.mxu0 0
      %284 = vmatprep.subr.bf16.mxu0 0
      %285 = vmatpush1.bf16.msra.mxu0 0
      %286 = vmatprep.mubr.bf16.mxu0 0
      %287 = vmatmul.mubr.bf16.gmra.mrb[0].mxu0 %v245
      %v288 = vpop.f32.mrb[0].mxu0
      %v289 = vadd.f32 0.0, %v288
      %v290 = vpop.f32.mrb[0].mxu0
      %v291 = vpop.f32.mrb[0].mxu0
      %v292 = vadd.f32 0.0, %v291
      %v293 = vpop.f32.mrb[0].mxu0
      %294 = vmatprep.mubr.bf16.mxu0 0
      %295 = vmatmul.mubr.bf16.gmra.mrb[0].mxu0 %v248
      %v296 = vpop.f32.mrb[0].mxu0
      %v297 = vadd.f32 0.0, %v296
      %v298 = vpop.f32.mrb[0].mxu0
      %v299 = vpop.f32.mrb[0].mxu0
      %v300 = vpop.f32.mrb[0].mxu0
      %301 = vdwg.mxu0
      %v302 = vmul.f32 %v289, %v230
      %v303 = vmul.f32 %v292, %v231
      %v304 = vmul.f32 %v297, %v232
      %305 = vst.msk [vmem:[#allocation2] sm:$0xff] %vm141, %v302
      %306 = vst.msk [vmem:[#allocation2 + $0x8] sm:$0xff] %vm141, %v303
      %307 = vst.msk [vmem:[#allocation2 + $0x10] sm:$0xff] %vm141, %v304
      %308 = vrot.lane.b32.xlu0 %v134, 64
      %v309 = vpop.permute.xlu0 %308
      %310 = vrot.lane.b32.xlu0 %v135, 64
      %v311 = vpop.permute.xlu0 %310
      %312 = vrot.lane.b32.xlu0 %v139, 64
      %v313 = vpop.permute.xlu0 %312
      %314 = vrot.lane.b32.xlu0 %v140, 64
      %v315 = vpop.permute.xlu0 %314
      %v317 = vsel %vm141, %v309, 0
      %v320 = vsel %vm141, %v311, 0
      %v323 = vsel %vm141, %v313, 0
      %v326 = vsel %vm141, %v315, 0
      %328 = vmatprep.subr.bf16.mxu0 0
      %329 = vmatpush1.bf16.xpose.msra.mxu0 %v323
      %330 = vmatprep.subr.bf16.mxu0 0
      %331 = vmatpush1.bf16.xpose.msra.mxu0 %v326
      %332 = vmatprep.subr.bf16.mxu0 0
      %333 = vmatpush1.bf16.xpose.msra.mxu0 0
      %334 = vmatprep.subr.bf16.mxu0 0
      %335 = vmatpush1.bf16.xpose.msra.mxu0 0
      %336 = vmatprep.subr.bf16.mxu0 0
      %337 = vmatpush1.bf16.xpose.msra.mxu0 0
      %338 = vmatprep.subr.bf16.mxu0 0
      %339 = vmatpush1.bf16.xpose.msra.mxu0 0
      %340 = vmatprep.subr.bf16.mxu0 0
      %341 = vmatpush1.bf16.xpose.msra.mxu0 0
      %342 = vmatprep.subr.bf16.mxu0 0
      %343 = vmatpush1.bf16.xpose.msra.mxu0 0
      %344 = vmatprep.subr.bf16.mxu0 0
      %345 = vmatpush1.bf16.xpose.msra.mxu0 0
      %346 = vmatprep.subr.bf16.mxu0 0
      %347 = vmatpush1.bf16.xpose.msra.mxu0 0
      %348 = vmatprep.subr.bf16.mxu0 0
      %349 = vmatpush1.bf16.xpose.msra.mxu0 0
      %350 = vmatprep.subr.bf16.mxu0 0
      %351 = vmatpush1.bf16.xpose.msra.mxu0 0
      %352 = vmatprep.subr.bf16.mxu0 0
      %353 = vmatpush1.bf16.xpose.msra.mxu0 0
      %354 = vmatprep.subr.bf16.mxu0 0
      %355 = vmatpush1.bf16.xpose.msra.mxu0 0
      %356 = vmatprep.subr.bf16.mxu0 0
      %357 = vmatpush1.bf16.xpose.msra.mxu0 0
      %358 = vmatprep.subr.bf16.mxu0 0
      %359 = vmatpush1.bf16.xpose.msra.mxu0 0
      %360 = vmatprep.mubr.bf16.mxu0 0
      %361 = vmatmul.mubr.bf16.gmra.mrb[0].mxu0 %v317
      %v362 = vpop.f32.mrb[0].mxu0
      %v363 = vadd.f32 %v127, %v362
      %v364 = vpop.f32.mrb[0].mxu0
      %v365 = vpop.f32.mrb[0].mxu0
      %v366 = vadd.f32 %v127, %v365
      %v367 = vpop.f32.mrb[0].mxu0
      %368 = vmatprep.mubr.bf16.mxu0 0
      %369 = vmatmul.mubr.bf16.gmra.mrb[0].mxu0 %v320
      %v370 = vpop.f32.mrb[0].mxu0
      %v371 = vadd.f32 %v127, %v370
      %v372 = vpop.f32.mrb[0].mxu0
      %v373 = vpop.f32.mrb[0].mxu0
      %v374 = vpop.f32.mrb[0].mxu0
      %375 = vdwg.mxu0
      %v376 = vsel %vm202, %v363, -inf
      %377 = vmax.xlane.f32.xlu0 %v376
      %v378 = vpop.xlane.xlu0 %377
      %v379 = vsel %vm202, %v366, -inf
      %380 = vmax.xlane.f32.xlu0 %v379
      %v381 = vpop.xlane.xlu0 %380
      %v382 = vsel %vm202, %v371, -inf
      %383 = vmax.xlane.f32.xlu0 %v382
      %v384 = vpop.xlane.xlu0 %383
      %v385 = vsub.f32 %v363, %v378
      %v386 = vsub.f32 %v366, %v381
      %v387 = vsub.f32 %v371, %v384
      %v388 = vmul.f32 %v385, 1.442695
      %v389 = vpow.pop %v388
      %v390 = vmul.f32 %v386, 1.442695
      %v391 = vpow.pop %v390
      %v392 = vmul.f32 %v387, 1.442695
      %v393 = vpow.pop %v392
      %v394 = vsel %vm202, %v389, 0.0
      %395 = vadd.xlane.f32.xlu0 %v394
      %v396 = vpop.xlane.xlu0 %395
      %v397 = vsel %vm202, %v391, 0.0
      %398 = vadd.xlane.f32.xlu0 %v397
      %v399 = vpop.xlane.xlu0 %398
      %v400 = vsel %vm202, %v393, 0.0
      %401 = vadd.xlane.f32.xlu0 %v400
      %v402 = vpop.xlane.xlu0 %401
      %v403 = vrcp.pop %v396
      %v404 = vrcp.pop %v399
      %v405 = vrcp.pop %v402
      %v406 = vpack.c.bf16 %v391, %v389
      %v407 = vpack.c.bf16 %v393, %v393
      %408 = vrot.lane.b32.xlu0 %v241, 64
      %v409 = vpop.permute.xlu0 %408
      %410 = vrot.lane.b32.xlu0 %v242, 64
      %v411 = vpop.permute.xlu0 %410
      %v414 = vsel %vm202, %v406, 0
      %v417 = vsel %vm202, %v407, 0
      %v420 = vsel %vm250, %v411, 0
      %422 = vmatprep.subr.bf16.mxu0 0
      %423 = vmatpush1.bf16.msra.mxu0 %v409
      %424 = vmatprep.subr.bf16.mxu0 0
      %425 = vmatpush1.bf16.msra.mxu0 %v420
      %426 = vmatprep.subr.bf16.mxu0 0
      %427 = vmatpush1.bf16.msra.mxu0 0
      %428 = vmatprep.subr.bf16.mxu0 0
      %429 = vmatpush1.bf16.msra.mxu0 0
      %430 = vmatprep.subr.bf16.mxu0 0
      %431 = vmatpush1.bf16.msra.mxu0 0
      %432 = vmatprep.subr.bf16.mxu0 0
      %433 = vmatpush1.bf16.msra.mxu0 0
      %434 = vmatprep.subr.bf16.mxu0 0
      %435 = vmatpush1.bf16.msra.mxu0 0
      %436 = vmatprep.subr.bf16.mxu0 0
      %437 = vmatpush1.bf16.msra.mxu0 0
      %438 = vmatprep.subr.bf16.mxu0 0
      %439 = vmatpush1.bf16.msra.mxu0 0
      %440 = vmatprep.subr.bf16.mxu0 0
      %441 = vmatpush1.bf16.msra.mxu0 0
      %442 = vmatprep.subr.bf16.mxu0 0
      %443 = vmatpush1.bf16.msra.mxu0 0
      %444 = vmatprep.subr.bf16.mxu0 0
      %445 = vmatpush1.bf16.msra.mxu0 0
      %446 = vmatprep.subr.bf16.mxu0 0
      %447 = vmatpush1.bf16.msra.mxu0 0
      %448 = vmatprep.subr.bf16.mxu0 0
      %449 = vmatpush1.bf16.msra.mxu0 0
      %450 = vmatprep.subr.bf16.mxu0 0
      %451 = vmatpush1.bf16.msra.mxu0 0
      %452 = vmatprep.subr.bf16.mxu0 0
      %453 = vmatpush1.bf16.msra.mxu0 0
      %454 = vmatprep.mubr.bf16.mxu0 0
      %455 = vmatmul.mubr.bf16.gmra.mrb[0].mxu0 %v414
      %v456 = vpop.f32.mrb[0].mxu0
      %v457 = vadd.f32 0.0, %v456
      %v458 = vpop.f32.mrb[0].mxu0
      %v459 = vpop.f32.mrb[0].mxu0
      %v460 = vadd.f32 0.0, %v459
      %v461 = vpop.f32.mrb[0].mxu0
      %462 = vmatprep.mubr.bf16.mxu0 0
      %463 = vmatmul.mubr.bf16.gmra.mrb[0].mxu0 %v417
      %v464 = vpop.f32.mrb[0].mxu0
      %v465 = vadd.f32 0.0, %v464
      %v466 = vpop.f32.mrb[0].mxu0
      %v467 = vpop.f32.mrb[0].mxu0
      %v468 = vpop.f32.mrb[0].mxu0
      %469 = vdwg.mxu0
      %v470 = vmul.f32 %v457, %v403
      %v471 = vmul.f32 %v460, %v404
      %v472 = vmul.f32 %v465, %v405
      %476 = vrot.lane.b32.xlu0 %v470, 64
      %v477 = vpop.permute.xlu0 %476
      %478 = vrot.lane.b32.xlu0 %v471, 64
      %v479 = vpop.permute.xlu0 %478
      %480 = vrot.lane.b32.xlu0 %v472, 64
      %v481 = vpop.permute.xlu0 %480
      %vm485 = vcmask 1048064
      %486 = vst.msk [vmem:[#allocation2] sm:$0xff] %vm485, %v477
      %487 = vst.msk [vmem:[#allocation2 + $0x8] sm:$0xff] %vm485, %v479
      %488 = vst.msk [vmem:[#allocation2 + $0x10] sm:$0xff] %vm485, %v481
      %v489 = vld [vmem:[#allocation2] sm:$0xff]
      %v490 = vld [vmem:[#allocation2 + $0x8] sm:$0xff]
      %v491 = vld [vmem:[#allocation2 + $0x10] sm:$0xff]
      %v492 = vpack.c.bf16 %v490, %v489
      %v493 = vpack.c.bf16 %v491, %v491
      %v496 = vunpack.c.l.b16 %v492
      %v497 = vunpack.c.h.b16 %v492
      %v498 = vunpack.c.l.b16 %v493
      %v499 = vpack.c.b16 %v496, %v496
      %v500 = vpack.c.b16 %v497, %v497
      %v501 = vpack.c.b16 %v498, %v498
      %505 = vst [vmem:[%s116] sm:$0xf] %v499
      %506 = vst [vmem:[%s116 + $0x4] sm:$0xf] %v500
      %507 = vst [vmem:[%s116 + $0x8] sm:$0xf] %v501
      %p508 = scmp.lt.s32.totalorder %s12, 1
      %s509 = scalar_select %p508, %s12, 1
      %s510 = smul.addr %s509, 3
      %s511 = smul.addr %s510, 4
      %s512 = scalar_lea.vmem %s1, %s511
      // Predicated region
      $region25: #{vit_encoder_forward.12} parent=23 // pred_check
        %p513 = pneg %p56
      $region26: #{vit_encoder_forward.12} parent=23 // pred_check_branch
        %515 = sbr.rel (%p513) target = $region28
      $region27: #{vit_encoder_forward.12} parent=23 // pred_region
        _
      $region28: #{vit_encoder_forward.12} parent=23 // pred_fallthru
        _
    $region24: #{vit_encoder_forward.12} parent=5 // pred_fallthru
      _
    %p516 = scmp.le.s32.totalorder 2, %s7
    // Predicated region
    $region29: #{vit_encoder_forward.12} parent=5 // pred_check
      %p517 = pneg %p516
    $region30: #{vit_encoder_forward.12} parent=5 // pred_check_branch
      %519 = sbr.rel (%p517) target = $region32
    $region31: #{vit_encoder_forward.12} parent=5 // pred_region
      %s520 = ssub.s32 %s7, 2
      // Predicated region
      $region33: #{vit_encoder_forward.12} parent=31 // pred_check
        %p521 = pneg %p62
      $region34: #{vit_encoder_forward.12} parent=31 // pred_check_branch
        %523 = sbr.rel (%p521) target = $region36
      $region35: #{vit_encoder_forward.12} parent=31 // pred_region
        %p524 = scmp.lt.s32.totalorder %s13, 1
        %s525 = scalar_select %p524, %s13, 1
        %s526 = smul.addr %s525, 3
        %s527 = smul.addr %s526, 4
        %s528 = scalar_lea.vmem %s1, %s527
      $region36: #{vit_encoder_forward.12} parent=31 // pred_fallthru
        _
    $region32: #{vit_encoder_forward.12} parent=5 // pred_fallthru
      _
  $region6: #{vit_encoder_forward.12} parent=0 // loop_footer
    %s11 = sadd.s32 1, %s7
  $region7: #{vit_encoder_forward.12} parent=0 // loop_footer_branch
    %6 = sbr.rel target = $region3
  $region8: #{vit_encoder_forward.12} parent=0 // loop_exit
    _

// kernel: vit_encoder_forward.10
$region0: #{vit_encoder_forward.10}
  #allocation0 [shape = 'u32[]', space=smem, size = 0x4, offset = 0x4, fixed_abs, tag = 'smem constant byte address 0x4 - core index']
  #allocation1 [shape = 'u32[144,128]{1,0:T(1,128)}', space=vmem, size = 0x12000, scoped, tag = 'internal scratch']
  %s0 = inlined_call_operand.vmem [shape: bf16[32,192], index: 0, kind: input, shape index: {}]
  %s1 = inlined_call_operand.vmem [shape: bf16[192,128], index: 1, kind: input, shape index: {}]
  %s2 = inlined_call_operand.vmem [shape: f32[1,128], index: 2, kind: input, shape index: {}]
  %s3 = inlined_call_operand.vmem [shape: bf16[32,128], index: 3, kind: output, shape index: {}]
  %s4 = sld [smem:[#allocation0]]
  $region22: #{vit_encoder_forward.10} parent=0
    _
  %s6 = ssub.s32 1, %s4
  %s7 = scalar_select 0, %s6, %s4
  // Predicated region
  $region2: #{vit_encoder_forward.10} parent=0 // pred_check
    _
  $region3: #{vit_encoder_forward.10} parent=0 // pred_check_branch
    %9 = sbr.rel (0) target = $region5
  $region4: #{vit_encoder_forward.10} parent=0 // pred_region
    _
  $region5: #{vit_encoder_forward.10} parent=0 // pred_fallthru
    _
  // Predicated region
  $region6: #{vit_encoder_forward.10} parent=0 // pred_check
    _
  $region7: #{vit_encoder_forward.10} parent=0 // pred_check_branch
    %11 = sbr.rel (0) target = $region9
  $region8: #{vit_encoder_forward.10} parent=0 // pred_region
    _
  $region9: #{vit_encoder_forward.10} parent=0 // pred_fallthru
    _
  // Predicated region
  $region10: #{vit_encoder_forward.10} parent=0 // pred_check
    _
  $region11: #{vit_encoder_forward.10} parent=0 // pred_check_branch
    %13 = sbr.rel (0) target = $region13
  $region12: #{vit_encoder_forward.10} parent=0 // pred_region
    _
  $region13: #{vit_encoder_forward.10} parent=0 // pred_fallthru
    _
  %v15 = vld [vmem:[%s0] sm:$0xff]
  %v16 = vld [vmem:[%s0 + $0x8] sm:$0xff]
  %v17 = vld [vmem:[%s0 + $0x10] sm:$0xff]
  %v18 = vld [vmem:[%s0 + $0x18] sm:$0xff]
  %v19 = vld [vmem:[%s1] sm:$0xf]
  %v20 = vld [vmem:[%s1 + $0x4] sm:$0xf]
  %v21 = vld [vmem:[%s1 + $0x8] sm:$0xf]
  %v22 = vld [vmem:[%s1 + $0xc] sm:$0xf]
  %v23 = vld [vmem:[%s1 + $0x10] sm:$0xf]
  %v24 = vld [vmem:[%s1 + $0x14] sm:$0xf]
  %v25 = vld [vmem:[%s1 + $0x18] sm:$0xf]
  %v26 = vld [vmem:[%s1 + $0x1c] sm:$0xf]
  %v27 = vld [vmem:[%s1 + $0x20] sm:$0xf]
  %v28 = vld [vmem:[%s1 + $0x24] sm:$0xf]
  %v29 = vld [vmem:[%s1 + $0x28] sm:$0xf]
  %v30 = vld [vmem:[%s1 + $0x2c] sm:$0xf]
  %v31 = vld [vmem:[%s1 + $0x30] sm:$0xf]
  %v32 = vld [vmem:[%s1 + $0x34] sm:$0xf]
  %v33 = vld [vmem:[%s1 + $0x38] sm:$0xf]
  %v34 = vld [vmem:[%s1 + $0x3c] sm:$0xf]
  %v35 = vld [vmem:[%s1 + $0x40] sm:$0xf]
  %v36 = vld [vmem:[%s1 + $0x44] sm:$0xf]
  %v37 = vld [vmem:[%s1 + $0x48] sm:$0xf]
  %v38 = vld [vmem:[%s1 + $0x4c] sm:$0xf]
  %v39 = vld [vmem:[%s1 + $0x50] sm:$0xf]
  %v40 = vld [vmem:[%s1 + $0x54] sm:$0xf]
  %v41 = vld [vmem:[%s1 + $0x58] sm:$0xf]
  %v42 = vld [vmem:[%s1 + $0x5c] sm:$0xf]
  %v43 = vld [vmem:[%s2] sm:$0x1]
  %v45 = vlaneseq
  %v46 = vshrl.u32 %v45, 7
  %v47 = vsub.s32 0, %v46
  %v48 = vrot.slane %v43, %v47
  %v54 = vunpack.c.l.b16 %v15
  %v55 = vunpack.c.h.b16 %v15
  %v56 = vunpack.c.l.b16 %v16
  %v57 = vunpack.c.h.b16 %v16
  %v58 = vunpack.c.l.b16 %v17
  %v59 = vunpack.c.h.b16 %v17
  %v60 = vunpack.c.l.b16 %v18
  %v61 = vunpack.c.h.b16 %v18
  %v62 = vpack.c.b16 %v56, %v54
  %v63 = vpack.c.b16 %v57, %v55
  %v64 = vpack.c.b16 %v60, %v58
  %v65 = vpack.c.b16 %v61, %v59
  %v92 = vunpack.c.l.b16 %v19
  %v93 = vunpack.c.l.b16 %v20
  %v94 = vunpack.c.l.b16 %v21
  %v95 = vunpack.c.l.b16 %v22
  %v96 = vunpack.c.l.b16 %v23
  %v97 = vunpack.c.l.b16 %v24
  %v98 = vunpack.c.l.b16 %v25
  %v99 = vunpack.c.l.b16 %v26
  %v100 = vunpack.c.l.b16 %v27
  %v101 = vunpack.c.l.b16 %v28
  %v102 = vunpack.c.l.b16 %v29
  %v103 = vunpack.c.l.b16 %v30
  %v104 = vunpack.c.l.b16 %v31
  %v105 = vunpack.c.l.b16 %v32
  %v106 = vunpack.c.l.b16 %v33
  %v107 = vunpack.c.l.b16 %v34
  %v108 = vunpack.c.l.b16 %v35
  %v109 = vunpack.c.l.b16 %v36
  %v110 = vunpack.c.l.b16 %v37
  %v111 = vunpack.c.l.b16 %v38
  %v112 = vunpack.c.l.b16 %v39
  %v113 = vunpack.c.l.b16 %v40
  %v114 = vunpack.c.l.b16 %v41
  %v115 = vunpack.c.l.b16 %v42
  %v116 = vpack.c.b16 %v93, %v92
  %v117 = vpack.c.b16 %v95, %v94
  %v118 = vpack.c.b16 %v97, %v96
  %v119 = vpack.c.b16 %v99, %v98
  %v120 = vpack.c.b16 %v101, %v100
  %v121 = vpack.c.b16 %v103, %v102
  %v122 = vpack.c.b16 %v105, %v104
  %v123 = vpack.c.b16 %v107, %v106
  %v124 = vpack.c.b16 %v109, %v108
  %v125 = vpack.c.b16 %v111, %v110
  %v126 = vpack.c.b16 %v113, %v112
  %v127 = vpack.c.b16 %v115, %v114
  %vm140 = vcmask 523264
  %v142 = vsel %vm140, %v63, 0
  %v145 = vsel %vm140, %v65, 0
  %147 = vmatprep.subr.bf16.mxu0 0
  %148 = vmatpush1.bf16.msra.mxu0 %v116
  %149 = vmatprep.subr.bf16.mxu0 0
  %150 = vmatpush1.bf16.msra.mxu0 %v117
  %151 = vmatprep.subr.bf16.mxu0 0
  %152 = vmatpush1.bf16.msra.mxu0 %v118
  %153 = vmatprep.subr.bf16.mxu0 0
  %154 = vmatpush1.bf16.msra.mxu0 %v119
  %155 = vmatprep.subr.bf16.mxu0 0
  %156 = vmatpush1.bf16.msra.mxu0 %v120
  %157 = vmatprep.subr.bf16.mxu0 0
  %158 = vmatpush1.bf16.msra.mxu0 %v121
  %159 = vmatprep.subr.bf16.mxu0 0
  %160 = vmatpush1.bf16.msra.mxu0 %v122
  %161 = vmatprep.subr.bf16.mxu0 0
  %162 = vmatpush1.bf16.msra.mxu0 %v123
  %163 = vmatprep.subr.bf16.mxu0 0
  %164 = vmatpush1.bf16.msra.mxu0 %v124
  %165 = vmatprep.subr.bf16.mxu0 0
  %166 = vmatpush1.bf16.msra.mxu0 %v125
  %167 = vmatprep.subr.bf16.mxu0 0
  %168 = vmatpush1.bf16.msra.mxu0 %v126
  %169 = vmatprep.subr.bf16.mxu0 0
  %170 = vmatpush1.bf16.msra.mxu0 %v127
  %171 = vmatprep.subr.bf16.mxu0 0
  %172 = vmatpush1.bf16.msra.mxu0 0
  %173 = vmatprep.subr.bf16.mxu0 0
  %174 = vmatpush1.bf16.msra.mxu0 0
  %175 = vmatprep.subr.bf16.mxu0 0
  %176 = vmatpush1.bf16.msra.mxu0 0
  %177 = vmatprep.subr.bf16.mxu0 0
  %178 = vmatpush1.bf16.msra.mxu0 0
  %179 = vmatprep.mubr.bf16.mxu0 %v142
  %180 = vmatmul.mubr.bf16.gmra.mrb[0].mxu0 %v62
  %v181 = vpop.f32.mrb[0].mxu0
  %v182 = vadd.f32 %v48, %v181
  %v183 = vpop.f32.mrb[0].mxu0
  %v184 = vpop.f32.mrb[0].mxu0
  %v185 = vadd.f32 %v48, %v184
  %v186 = vpop.f32.mrb[0].mxu0
  %187 = vmatprep.mubr.bf16.mxu0 %v145
  %188 = vmatmul.mubr.bf16.gmra.mrb[0].mxu0 %v64
  %v189 = vpop.f32.mrb[0].mxu0
  %v190 = vadd.f32 %v48, %v189
  %v191 = vpop.f32.mrb[0].mxu0
  %v192 = vpop.f32.mrb[0].mxu0
  %v193 = vadd.f32 %v48, %v192
  %v194 = vpop.f32.mrb[0].mxu0
  %195 = vdwg.mxu0
  %v196 = vpack.c.bf16 %v185, %v182
  %v197 = vpack.c.bf16 %v193, %v190
  %v200 = vunpack.c.l.b16 %v196
  %v201 = vunpack.c.h.b16 %v196
  %v202 = vunpack.c.l.b16 %v197
  %v203 = vunpack.c.h.b16 %v197
  %v204 = vpack.c.b16 %v200, %v200
  %v205 = vpack.c.b16 %v201, %v201
  %v206 = vpack.c.b16 %v202, %v202
  %v207 = vpack.c.b16 %v203, %v203
  %212 = vst [vmem:[%s3] sm:$0xf] %v204
  %213 = vst [vmem:[%s3 + $0x4] sm:$0xf] %v205
  %214 = vst [vmem:[%s3 + $0x8] sm:$0xf] %v206
  %215 = vst [vmem:[%s3 + $0xc] sm:$0xf] %v207
  // Predicated region
  $region14: #{vit_encoder_forward.10} parent=0 // pred_check
    _
  $region15: #{vit_encoder_forward.10} parent=0 // pred_check_branch
    %217 = sbr.rel (0) target = $region17
  $region16: #{vit_encoder_forward.10} parent=0 // pred_region
    _
  $region17: #{vit_encoder_forward.10} parent=0 // pred_fallthru
    _
  // Predicated region
  $region18: #{vit_encoder_forward.10} parent=0 // pred_check
    _
  $region19: #{vit_encoder_forward.10} parent=0 // pred_check_branch
    %219 = sbr.rel (0) target = $region21
  $region20: #{vit_encoder_forward.10} parent=0 // pred_region
    _
  $region21: #{vit_encoder_forward.10} parent=0 // pred_fallthru
    _

// kernel: vit_encoder_forward.11
$region0: #{vit_encoder_forward.11}
  #allocation0 [shape = 'u32[]', space=smem, size = 0x4, offset = 0x4, fixed_abs, tag = 'smem constant byte address 0x4 - core index']
  #allocation1 [shape = 'u32[144,128]{1,0:T(1,128)}', space=vmem, size = 0x12000, scoped, tag = 'internal scratch']
  %s0 = inlined_call_operand.vmem [shape: bf16[48,128], index: 0, kind: input, shape index: {}]
  %s1 = inlined_call_operand.vmem [shape: f32[1,128], index: 1, kind: input, shape index: {}]
  %s2 = inlined_call_operand.vmem [shape: f32[1,128], index: 2, kind: input, shape index: {}]
  %s3 = inlined_call_operand.vmem [shape: bf16[128,384], index: 3, kind: input, shape index: {}]
  %s4 = inlined_call_operand.vmem [shape: f32[1,384], index: 4, kind: input, shape index: {}]
  %s5 = inlined_call_operand.vmem [shape: bf16[48,384], index: 5, kind: output, shape index: {}]
  %s6 = sld [smem:[#allocation0]]
  $region30: #{vit_encoder_forward.11} parent=0
    _
  %s8 = ssub.s32 1, %s6
  %s9 = scalar_select 0, %s8, %s6
  // Predicated region
  $region2: #{vit_encoder_forward.11} parent=0 // pred_check
    _
  $region3: #{vit_encoder_forward.11} parent=0 // pred_check_branch
    %11 = sbr.rel (0) target = $region5
  $region4: #{vit_encoder_forward.11} parent=0 // pred_region
    _
  $region5: #{vit_encoder_forward.11} parent=0 // pred_fallthru
    _
  // Predicated region
  $region6: #{vit_encoder_forward.11} parent=0 // pred_check
    _
  $region7: #{vit_encoder_forward.11} parent=0 // pred_check_branch
    %13 = sbr.rel (0) target = $region9
  $region8: #{vit_encoder_forward.11} parent=0 // pred_region
    _
  $region9: #{vit_encoder_forward.11} parent=0 // pred_fallthru
    _
  // Predicated region
  $region10: #{vit_encoder_forward.11} parent=0 // pred_check
    _
  $region11: #{vit_encoder_forward.11} parent=0 // pred_check_branch
    %15 = sbr.rel (0) target = $region13
  $region12: #{vit_encoder_forward.11} parent=0 // pred_region
    _
  $region13: #{vit_encoder_forward.11} parent=0 // pred_fallthru
    _
  // Predicated region
  $region14: #{vit_encoder_forward.11} parent=0 // pred_check
    _
  $region15: #{vit_encoder_forward.11} parent=0 // pred_check_branch
    %17 = sbr.rel (0) target = $region17
  $region16: #{vit_encoder_forward.11} parent=0 // pred_region
    _
  $region17: #{vit_encoder_forward.11} parent=0 // pred_fallthru
    _
  // Predicated region
  $region18: #{vit_encoder_forward.11} parent=0 // pred_check
    _
  $region19: #{vit_encoder_forward.11} parent=0 // pred_check_branch
    %19 = sbr.rel (0) target = $region21
  $region20: #{vit_encoder_forward.11} parent=0 // pred_region
    _
  $region21: #{vit_encoder_forward.11} parent=0 // pred_fallthru
    _
  %v21 = vld [vmem:[%s0] sm:$0xf]
  %v22 = vld [vmem:[%s0 + $0x4] sm:$0xf]
  %v23 = vld [vmem:[%s0 + $0x8] sm:$0xf]
  %v24 = vld [vmem:[%s0 + $0xc] sm:$0xf]
  %v25 = vld [vmem:[%s0 + $0x10] sm:$0xf]
  %v26 = vld [vmem:[%s0 + $0x14] sm:$0xf]
  %v27 = vunpack.c.l.bf16 %v21
  %v28 = vunpack.c.l.bf16 %v22
  %v29 = vunpack.c.l.bf16 %v23
  %v30 = vunpack.c.l.bf16 %v24
  %v31 = vunpack.c.l.bf16 %v25
  %v32 = vunpack.c.l.bf16 %v26
  %33 = vadd.xlane.f32.xlu0 %v27
  %v34 = vpop.xlane.xlu0 %33
  %35 = vadd.xlane.f32.xlu0 %v28
  %v36 = vpop.xlane.xlu0 %35
  %37 = vadd.xlane.f32.xlu0 %v29
  %v38 = vpop.xlane.xlu0 %37
  %39 = vadd.xlane.f32.xlu0 %v30
  %v40 = vpop.xlane.xlu0 %39
  %41 = vadd.xlane.f32.xlu0 %v31
  %v42 = vpop.xlane.xlu0 %41
  %43 = vadd.xlane.f32.xlu0 %v32
  %v44 = vpop.xlane.xlu0 %43
  %v45 = vrcp.pop 128.0
  %v46 = vmul.f32 %v34, %v45
  %v47 = vmul.f32 %v36, %v45
  %v48 = vmul.f32 %v38, %v45
  %v49 = vmul.f32 %v40, %v45
  %v50 = vmul.f32 %v42, %v45
  %v51 = vmul.f32 %v44, %v45
  %v52 = vsub.f32 %v27, %v46
  %v53 = vsub.f32 %v28, %v47
  %v54 = vsub.f32 %v29, %v48
  %v55 = vsub.f32 %v30, %v49
  %v56 = vsub.f32 %v31, %v50
  %v57 = vsub.f32 %v32, %v51
  %v58 = vmul.f32 %v52, %v52
  %v59 = vmul.f32 %v53, %v53
  %v60 = vmul.f32 %v54, %v54
  %v61 = vmul.f32 %v55, %v55
  %v62 = vmul.f32 %v56, %v56
  %v63 = vmul.f32 %v57, %v57
  %64 = vadd.xlane.f32.xlu0 %v58
  %v65 = vpop.xlane.xlu0 %64
  %66 = vadd.xlane.f32.xlu0 %v59
  %v67 = vpop.xlane.xlu0 %66
  %68 = vadd.xlane.f32.xlu0 %v60
  %v69 = vpop.xlane.xlu0 %68
  %70 = vadd.xlane.f32.xlu0 %v61
  %v71 = vpop.xlane.xlu0 %70
  %72 = vadd.xlane.f32.xlu0 %v62
  %v73 = vpop.xlane.xlu0 %72
  %74 = vadd.xlane.f32.xlu0 %v63
  %v75 = vpop.xlane.xlu0 %74
  %v76 = vmul.f32 %v65, %v45
  %v77 = vmul.f32 %v67, %v45
  %v78 = vmul.f32 %v69, %v45
  %v79 = vmul.f32 %v71, %v45
  %v80 = vmul.f32 %v73, %v45
  %v81 = vmul.f32 %v75, %v45
  %v82 = vadd.f32 %v76, 1e-12
  %v83 = vadd.f32 %v77, 1e-12
  %v84 = vadd.f32 %v78, 1e-12
  %v85 = vadd.f32 %v79, 1e-12
  %v86 = vadd.f32 %v80, 1e-12
  %v87 = vadd.f32 %v81, 1e-12
  %v88 = vrsqrt.pop %v82
  %v89 = vrsqrt.pop %v83
  %v90 = vrsqrt.pop %v84
  %v91 = vrsqrt.pop %v85
  %v92 = vrsqrt.pop %v86
  %v93 = vrsqrt.pop %v87
  %v94 = vmul.f32 %v52, %v88
  %v95 = vmul.f32 %v53, %v89
  %v96 = vmul.f32 %v54, %v90
  %v97 = vmul.f32 %v55, %v91
  %v98 = vmul.f32 %v56, %v92
  %v99 = vmul.f32 %v57, %v93
  %v100 = vld [vmem:[%s1] sm:$0x1]
  %v102 = vlaneseq
  %v103 = vshrl.u32 %v102, 7
  %v104 = vsub.s32 0, %v103
  %v105 = vrot.slane %v100, %v104
  %v107 = vmul.f32 %v94, %v105
  %v108 = vmul.f32 %v95, %v105
  %v109 = vmul.f32 %v96, %v105
  %v110 = vmul.f32 %v97, %v105
  %v111 = vmul.f32 %v98, %v105
  %v112 = vmul.f32 %v99, %v105
  %v113 = vld [vmem:[%s2] sm:$0x1]
  %v115 = vlaneseq
  %v116 = vshrl.u32 %v115, 7
  %v117 = vsub.s32 0, %v116
  %v118 = vrot.slane %v113, %v117
  %v120 = vadd.f32 %v107, %v118
  %v121 = vadd.f32 %v108, %v118
  %v122 = vadd.f32 %v109, %v118
  %v123 = vadd.f32 %v110, %v118
  %v124 = vadd.f32 %v111, %v118
  %v125 = vadd.f32 %v112, %v118
  %v126 = vpack.c.bf16 %v121, %v120
  %v127 = vpack.c.bf16 %v123, %v122
  %v128 = vpack.c.bf16 %v125, %v124
  %v129 = vld [vmem:[%s3] sm:$0xff]
  %v130 = vld [vmem:[%s3 + $0x8] sm:$0xf]
  %v131 = vld [vmem:[%s3 + $0xc] sm:$0xff]
  %v132 = vld [vmem:[%s3 + $0x14] sm:$0xf]
  %v133 = vld [vmem:[%s3 + $0x18] sm:$0xff]
  %v134 = vld [vmem:[%s3 + $0x20] sm:$0xf]
  %v135 = vld [vmem:[%s3 + $0x24] sm:$0xff]
  %v136 = vld [vmem:[%s3 + $0x2c] sm:$0xf]
  %v137 = vld [vmem:[%s3 + $0x30] sm:$0xff]
  %v138 = vld [vmem:[%s3 + $0x38] sm:$0xf]
  %v139 = vld [vmem:[%s3 + $0x3c] sm:$0xff]
  %v140 = vld [vmem:[%s3 + $0x44] sm:$0xf]
  %v141 = vld [vmem:[%s3 + $0x48] sm:$0xff]
  %v142 = vld [vmem:[%s3 + $0x50] sm:$0xf]
  %v143 = vld [vmem:[%s3 + $0x54] sm:$0xff]
  %v144 = vld [vmem:[%s3 + $0x5c] sm:$0xf]
  %v145 = vld [vmem:[%s3 + $0x60] sm:$0xff]
  %v146 = vld [vmem:[%s3 + $0x68] sm:$0xf]
  %v147 = vld [vmem:[%s3 + $0x6c] sm:$0xff]
  %v148 = vld [vmem:[%s3 + $0x74] sm:$0xf]
  %v149 = vld [vmem:[%s3 + $0x78] sm:$0xff]
  %v150 = vld [vmem:[%s3 + $0x80] sm:$0xf]
  %v151 = vld [vmem:[%s3 + $0x84] sm:$0xff]
  %v152 = vld [vmem:[%s3 + $0x8c] sm:$0xf]
  %v153 = vld [vmem:[%s3 + $0x90] sm:$0xff]
  %v154 = vld [vmem:[%s3 + $0x98] sm:$0xf]
  %v155 = vld [vmem:[%s3 + $0x9c] sm:$0xff]
  %v156 = vld [vmem:[%s3 + $0xa4] sm:$0xf]
  %v157 = vld [vmem:[%s3 + $0xa8] sm:$0xff]
  %v158 = vld [vmem:[%s3 + $0xb0] sm:$0xf]
  %v159 = vld [vmem:[%s3 + $0xb4] sm:$0xff]
  %v160 = vld [vmem:[%s3 + $0xbc] sm:$0xf]
  %v161 = vld [vmem:[%s4] sm:$0x7]
  %v163 = vlaneseq
  %v164 = vshrl.u32 %v163, 7
  %v165 = vsub.s32 0, %v164
  %v166 = vrot.slane %v161, %v165
  %v167 = vlaneseq
  %v168 = vshrl.u32 %v167, 7
  %v169 = vsub.s32 1, %v168
  %v170 = vrot.slane %v161, %v169
  %v171 = vlaneseq
  %v172 = vshrl.u32 %v171, 7
  %v173 = vsub.s32 2, %v172
  %v174 = vrot.slane %v161, %v173
  %v210 = vunpack.c.l.b16 %v129
  %v211 = vunpack.c.h.b16 %v129
  %v212 = vunpack.c.l.b16 %v130
  %v213 = vunpack.c.l.b16 %v131
  %v214 = vunpack.c.h.b16 %v131
  %v215 = vunpack.c.l.b16 %v132
  %v216 = vunpack.c.l.b16 %v133
  %v217 = vunpack.c.h.b16 %v133
  %v218 = vunpack.c.l.b16 %v134
  %v219 = vunpack.c.l.b16 %v135
  %v220 = vunpack.c.h.b16 %v135
  %v221 = vunpack.c.l.b16 %v136
  %v222 = vunpack.c.l.b16 %v137
  %v223 = vunpack.c.h.b16 %v137
  %v224 = vunpack.c.l.b16 %v138
  %v225 = vunpack.c.l.b16 %v139
  %v226 = vunpack.c.h.b16 %v139
  %v227 = vunpack.c.l.b16 %v140
  %v228 = vunpack.c.l.b16 %v141
  %v229 = vunpack.c.h.b16 %v141
  %v230 = vunpack.c.l.b16 %v142
  %v231 = vunpack.c.l.b16 %v143
  %v232 = vunpack.c.h.b16 %v143
  %v233 = vunpack.c.l.b16 %v144
  %v234 = vunpack.c.l.b16 %v145
  %v235 = vunpack.c.h.b16 %v145
  %v236 = vunpack.c.l.b16 %v146
  %v237 = vunpack.c.l.b16 %v147
  %v238 = vunpack.c.h.b16 %v147
  %v239 = vunpack.c.l.b16 %v148
  %v240 = vunpack.c.l.b16 %v149
  %v241 = vunpack.c.h.b16 %v149
  %v242 = vunpack.c.l.b16 %v150
  %v243 = vunpack.c.l.b16 %v151
  %v244 = vunpack.c.h.b16 %v151
  %v245 = vunpack.c.l.b16 %v152
  %v246 = vunpack.c.l.b16 %v153
  %v247 = vunpack.c.h.b16 %v153
  %v248 = vunpack.c.l.b16 %v154
  %v249 = vunpack.c.l.b16 %v155
  %v250 = vunpack.c.h.b16 %v155
  %v251 = vunpack.c.l.b16 %v156
  %v252 = vunpack.c.l.b16 %v157
  %v253 = vunpack.c.h.b16 %v157
  %v254 = vunpack.c.l.b16 %v158
  %v255 = vunpack.c.l.b16 %v159
  %v256 = vunpack.c.h.b16 %v159
  %v257 = vunpack.c.l.b16 %v160
  %v258 = vpack.c.b16 %v213, %v210
  %v259 = vpack.c.b16 %v214, %v211
  %v260 = vpack.c.b16 %v215, %v212
  %v261 = vpack.c.b16 %v219, %v216
  %v262 = vpack.c.b16 %v220, %v217
  %v263 = vpack.c.b16 %v221, %v218
  %v264 = vpack.c.b16 %v225, %v222
  %v265 = vpack.c.b16 %v226, %v223
  %v266 = vpack.c.b16 %v227, %v224
  %v267 = vpack.c.b16 %v231, %v228
  %v268 = vpack.c.b16 %v232, %v229
  %v269 = vpack.c.b16 %v233, %v230
  %v270 = vpack.c.b16 %v237, %v234
  %v271 = vpack.c.b16 %v238, %v235
  %v272 = vpack.c.b16 %v239, %v236
  %v273 = vpack.c.b16 %v243, %v240
  %v274 = vpack.c.b16 %v244, %v241
  %v275 = vpack.c.b16 %v245, %v242
  %v276 = vpack.c.b16 %v249, %v246
  %v277 = vpack.c.b16 %v250, %v247
  %v278 = vpack.c.b16 %v251, %v248
  %v279 = vpack.c.b16 %v255, %v252
  %v280 = vpack.c.b16 %v256, %v253
  %v281 = vpack.c.b16 %v257, %v254
  %306 = vmatprep.subr.bf16.mxu0 %v259
  %307 = vmatpush1.bf16.msra.mxu0 %v258
  %308 = vmatprep.subr.bf16.mxu0 %v262
  %309 = vmatpush1.bf16.msra.mxu0 %v261
  %310 = vmatprep.subr.bf16.mxu0 %v265
  %311 = vmatpush1.bf16.msra.mxu0 %v264
  %312 = vmatprep.subr.bf16.mxu0 %v268
  %313 = vmatpush1.bf16.msra.mxu0 %v267
  %314 = vmatprep.subr.bf16.mxu0 %v271
  %315 = vmatpush1.bf16.msra.mxu0 %v270
  %316 = vmatprep.subr.bf16.mxu0 %v274
  %317 = vmatpush1.bf16.msra.mxu0 %v273
  %318 = vmatprep.subr.bf16.mxu0 %v277
  %319 = vmatpush1.bf16.msra.mxu0 %v276
  %320 = vmatprep.subr.bf16.mxu0 %v280
  %321 = vmatpush1.bf16.msra.mxu0 %v279
  %322 = vmatprep.subr.bf16.mxu0 0
  %323 = vmatpush1.bf16.msra.mxu0 0
  %324 = vmatprep.subr.bf16.mxu0 0
  %325 = vmatpush1.bf16.msra.mxu0 0
  %326 = vmatprep.subr.bf16.mxu0 0
  %327 = vmatpush1.bf16.msra.mxu0 0
  %328 = vmatprep.subr.bf16.mxu0 0
  %329 = vmatpush1.bf16.msra.mxu0 0
  %330 = vmatprep.subr.bf16.mxu0 0
  %331 = vmatpush1.bf16.msra.mxu0 0
  %332 = vmatprep.subr.bf16.mxu0 0
  %333 = vmatpush1.bf16.msra.mxu0 0
  %334 = vmatprep.subr.bf16.mxu0 0
  %335 = vmatpush1.bf16.msra.mxu0 0
  %336 = vmatprep.subr.bf16.mxu0 0
  %337 = vmatpush1.bf16.msra.mxu0 0
  %338 = vmatprep.mubr.bf16.mxu0 0
  %339 = vmatmul.mubr.bf16.gmra.mrb[0].mxu0 %v126
  %v340 = vpop.f32.mrb[0].mxu0
  %v341 = vadd.f32 %v166, %v340
  %v342 = vpop.f32.mrb[0].mxu0
  %v343 = vadd.f32 %v170, %v342
  %v344 = vpop.f32.mrb[0].mxu0
  %v345 = vadd.f32 %v166, %v344
  %v346 = vpop.f32.mrb[0].mxu0
  %v347 = vadd.f32 %v170, %v346
  %348 = vmatprep.mubr.bf16.mxu0 0
  %349 = vmatmul.mubr.bf16.gmra.mrb[0].mxu0 %v127
  %v350 = vpop.f32.mrb[0].mxu0
  %v351 = vadd.f32 %v166, %v350
  %v352 = vpop.f32.mrb[0].mxu0
  %v353 = vadd.f32 %v170, %v352
  %v354 = vpop.f32.mrb[0].mxu0
  %v355 = vadd.f32 %v166, %v354
  %v356 = vpop.f32.mrb[0].mxu0
  %v357 = vadd.f32 %v170, %v356
  %358 = vmatprep.mubr.bf16.mxu0 0
  %359 = vmatmul.mubr.bf16.gmra.mrb[0].mxu0 %v128
  %v360 = vpop.f32.mrb[0].mxu0
  %v361 = vadd.f32 %v166, %v360
  %v362 = vpop.f32.mrb[0].mxu0
  %v363 = vadd.f32 %v170, %v362
  %v364 = vpop.f32.mrb[0].mxu0
  %v365 = vadd.f32 %v166, %v364
  %v366 = vpop.f32.mrb[0].mxu0
  %v367 = vadd.f32 %v170, %v366
  %368 = vdwg.mxu0
  %369 = vmatprep.subr.bf16.mxu0 0
  %370 = vmatpush1.bf16.msra.mxu0 %v260
  %371 = vmatprep.subr.bf16.mxu0 0
  %372 = vmatpush1.bf16.msra.mxu0 %v263
  %373 = vmatprep.subr.bf16.mxu0 0
  %374 = vmatpush1.bf16.msra.mxu0 %v266
  %375 = vmatprep.subr.bf16.mxu0 0
  %376 = vmatpush1.bf16.msra.mxu0 %v269
  %377 = vmatprep.subr.bf16.mxu0 0
  %378 = vmatpush1.bf16.msra.mxu0 %v272
  %379 = vmatprep.subr.bf16.mxu0 0
  %380 = vmatpush1.bf16.msra.mxu0 %v275
  %381 = vmatprep.subr.bf16.mxu0 0
  %382 = vmatpush1.bf16.msra.mxu0 %v278
  %383 = vmatprep.subr.bf16.mxu0 0
  %384 = vmatpush1.bf16.msra.mxu0 %v281
  %385 = vmatprep.subr.bf16.mxu0 0
  %386 = vmatpush1.bf16.msra.mxu0 0
  %387 = vmatprep.subr.bf16.mxu0 0
  %388 = vmatpush1.bf16.msra.mxu0 0
  %389 = vmatprep.subr.bf16.mxu0 0
  %390 = vmatpush1.bf16.msra.mxu0 0
  %391 = vmatprep.subr.bf16.mxu0 0
  %392 = vmatpush1.bf16.msra.mxu0 0
  %393 = vmatprep.subr.bf16.mxu0 0
  %394 = vmatpush1.bf16.msra.mxu0 0
  %395 = vmatprep.subr.bf16.mxu0 0
  %396 = vmatpush1.bf16.msra.mxu0 0
  %397 = vmatprep.subr.bf16.mxu0 0
  %398 = vmatpush1.bf16.msra.mxu0 0
  %399 = vmatprep.subr.bf16.mxu0 0
  %400 = vmatpush1.bf16.msra.mxu0 0
  %401 = vmatprep.mubr.bf16.mxu0 0
  %402 = vmatmul.mubr.bf16.gmra.mrb[0].mxu0 %v126
  %v403 = vpop.f32.mrb[0].mxu0
  %v404 = vadd.f32 %v174, %v403
  %v405 = vpop.f32.mrb[0].mxu0
  %v406 = vpop.f32.mrb[0].mxu0
  %v407 = vadd.f32 %v174, %v406
  %v408 = vpop.f32.mrb[0].mxu0
  %409 = vmatprep.mubr.bf16.mxu0 0
  %410 = vmatmul.mubr.bf16.gmra.mrb[0].mxu0 %v127
  %v411 = vpop.f32.mrb[0].mxu0
  %v412 = vadd.f32 %v174, %v411
  %v413 = vpop.f32.mrb[0].mxu0
  %v414 = vpop.f32.mrb[0].mxu0
  %v415 = vadd.f32 %v174, %v414
  %v416 = vpop.f32.mrb[0].mxu0
  %417 = vmatprep.mubr.bf16.mxu0 0
  %418 = vmatmul.mubr.bf16.gmra.mrb[0].mxu0 %v128
  %v419 = vpop.f32.mrb[0].mxu0
  %v420 = vadd.f32 %v174, %v419
  %v421 = vpop.f32.mrb[0].mxu0
  %v422 = vpop.f32.mrb[0].mxu0
  %v423 = vadd.f32 %v174, %v422
  %v424 = vpop.f32.mrb[0].mxu0
  %425 = vdwg.mxu0
  %v426 = vpack.c.bf16 %v345, %v341
  %v427 = vpack.c.bf16 %v347, %v343
  %v428 = vpack.c.bf16 %v407, %v404
  %v429 = vpack.c.bf16 %v355, %v351
  %v430 = vpack.c.bf16 %v357, %v353
  %v431 = vpack.c.bf16 %v415, %v412
  %v432 = vpack.c.bf16 %v365, %v361
  %v433 = vpack.c.bf16 %v367, %v363
  %v434 = vpack.c.bf16 %v423, %v420
  %v444 = vunpack.c.l.b16 %v426
  %v445 = vunpack.c.l.b16 %v427
  %v446 = vunpack.c.l.b16 %v428
  %v447 = vunpack.c.h.b16 %v426
  %v448 = vunpack.c.h.b16 %v427
  %v449 = vunpack.c.h.b16 %v428
  %v450 = vunpack.c.l.b16 %v429
  %v451 = vunpack.c.l.b16 %v430
  %v452 = vunpack.c.l.b16 %v431
  %v453 = vunpack.c.h.b16 %v429
  %v454 = vunpack.c.h.b16 %v430
  %v455 = vunpack.c.h.b16 %v431
  %v456 = vunpack.c.l.b16 %v432
  %v457 = vunpack.c.l.b16 %v433
  %v458 = vunpack.c.l.b16 %v434
  %v459 = vunpack.c.h.b16 %v432
  %v460 = vunpack.c.h.b16 %v433
  %v461 = vunpack.c.h.b16 %v434
  %v462 = vpack.c.b16 %v445, %v444
  %v463 = vpack.c.b16 %v446, %v446
  %v464 = vpack.c.b16 %v448, %v447
  %v465 = vpack.c.b16 %v449, %v449
  %v466 = vpack.c.b16 %v451, %v450
  %v467 = vpack.c.b16 %v452, %v452
  %v468 = vpack.c.b16 %v454, %v453
  %v469 = vpack.c.b16 %v455, %v455
  %v470 = vpack.c.b16 %v457, %v456
  %v471 = vpack.c.b16 %v458, %v458
  %v472 = vpack.c.b16 %v460, %v459
  %v473 = vpack.c.b16 %v461, %v461
  %486 = vst [vmem:[%s5] sm:$0xff] %v462
  %487 = vst [vmem:[%s5 + $0x8] sm:$0xf] %v463
  %488 = vst [vmem:[%s5 + $0xc] sm:$0xff] %v464
  %489 = vst [vmem:[%s5 + $0x14] sm:$0xf] %v465
  %490 = vst [vmem:[%s5 + $0x18] sm:$0xff] %v466
  %491 = vst [vmem:[%s5 + $0x20] sm:$0xf] %v467
  %492 = vst [vmem:[%s5 + $0x24] sm:$0xff] %v468
  %493 = vst [vmem:[%s5 + $0x2c] sm:$0xf] %v469
  %494 = vst [vmem:[%s5 + $0x30] sm:$0xff] %v470
  %495 = vst [vmem:[%s5 + $0x38] sm:$0xf] %v471
  %496 = vst [vmem:[%s5 + $0x3c] sm:$0xff] %v472
  %497 = vst [vmem:[%s5 + $0x44] sm:$0xf] %v473
  // Predicated region
  $region22: #{vit_encoder_forward.11} parent=0 // pred_check
    _
  $region23: #{vit_encoder_forward.11} parent=0 // pred_check_branch
    %499 = sbr.rel (0) target = $region25
  $region24: #{vit_encoder_forward.11} parent=0 // pred_region
    _
  $region25: #{vit_encoder_forward.11} parent=0 // pred_fallthru
    _
  // Predicated region
  $region26: #{vit_encoder_forward.11} parent=0 // pred_check
    _
  $region27: #{vit_encoder_forward.11} parent=0 // pred_check_branch
    %501 = sbr.rel (0) target = $region29
  $region28: #{vit_encoder_forward.11} parent=0 // pred_region
    _
  $region29: #{vit_encoder_forward.11} parent=0 // pred_fallthru
    _

// kernel: vit_encoder_forward.19
$region0: #{vit_encoder_forward.19}
  #allocation0 [shape = 'u32[]', space=smem, size = 0x4, offset = 0x4, fixed_abs, tag = 'smem constant byte address 0x4 - core index']
  #allocation1 [shape = 'u32[144,128]{1,0:T(1,128)}', space=vmem, size = 0x12000, scoped, tag = 'internal scratch']
  %s0 = inlined_call_operand.vmem [shape: bf16[48,128], index: 0, kind: input, shape index: {}]
  %s1 = inlined_call_operand.vmem [shape: f32[1,128], index: 1, kind: input, shape index: {}]
  %s2 = inlined_call_operand.vmem [shape: f32[1,128], index: 2, kind: input, shape index: {}]
  %s3 = inlined_call_operand.vmem [shape: bf16[48,128], index: 3, kind: output, shape index: {}]
  %s4 = sld [smem:[#allocation0]]
  $region22: #{vit_encoder_forward.19} parent=0
    _
  %s6 = ssub.s32 1, %s4
  %s7 = scalar_select 0, %s6, %s4
  // Predicated region
  $region2: #{vit_encoder_forward.19} parent=0 // pred_check
    _
  $region3: #{vit_encoder_forward.19} parent=0 // pred_check_branch
    %9 = sbr.rel (0) target = $region5
  $region4: #{vit_encoder_forward.19} parent=0 // pred_region
    _
  $region5: #{vit_encoder_forward.19} parent=0 // pred_fallthru
    _
  // Predicated region
  $region6: #{vit_encoder_forward.19} parent=0 // pred_check
    _
  $region7: #{vit_encoder_forward.19} parent=0 // pred_check_branch
    %11 = sbr.rel (0) target = $region9
  $region8: #{vit_encoder_forward.19} parent=0 // pred_region
    _
  $region9: #{vit_encoder_forward.19} parent=0 // pred_fallthru
    _
  // Predicated region
  $region10: #{vit_encoder_forward.19} parent=0 // pred_check
    _
  $region11: #{vit_encoder_forward.19} parent=0 // pred_check_branch
    %13 = sbr.rel (0) target = $region13
  $region12: #{vit_encoder_forward.19} parent=0 // pred_region
    _
  $region13: #{vit_encoder_forward.19} parent=0 // pred_fallthru
    _
  %v14 = vld [vmem:[%s0] sm:$0xf]
  %v15 = vld [vmem:[%s0 + $0x4] sm:$0xf]
  %v16 = vld [vmem:[%s0 + $0x8] sm:$0xf]
  %v17 = vld [vmem:[%s0 + $0xc] sm:$0xf]
  %v18 = vld [vmem:[%s0 + $0x10] sm:$0xf]
  %v19 = vld [vmem:[%s0 + $0x14] sm:$0xf]
  %v20 = vunpack.c.l.bf16 %v14
  %v21 = vunpack.c.l.bf16 %v15
  %v22 = vunpack.c.l.bf16 %v16
  %v23 = vunpack.c.l.bf16 %v17
  %v24 = vunpack.c.l.bf16 %v18
  %v25 = vunpack.c.l.bf16 %v19
  %26 = vadd.xlane.f32.xlu0 %v20
  %v27 = vpop.xlane.xlu0 %26
  %28 = vadd.xlane.f32.xlu0 %v21
  %v29 = vpop.xlane.xlu0 %28
  %30 = vadd.xlane.f32.xlu0 %v22
  %v31 = vpop.xlane.xlu0 %30
  %32 = vadd.xlane.f32.xlu0 %v23
  %v33 = vpop.xlane.xlu0 %32
  %34 = vadd.xlane.f32.xlu0 %v24
  %v35 = vpop.xlane.xlu0 %34
  %36 = vadd.xlane.f32.xlu0 %v25
  %v37 = vpop.xlane.xlu0 %36
  %v38 = vrcp.pop 128.0
  %v39 = vmul.f32 %v27, %v38
  %v40 = vmul.f32 %v29, %v38
  %v41 = vmul.f32 %v31, %v38
  %v42 = vmul.f32 %v33, %v38
  %v43 = vmul.f32 %v35, %v38
  %v44 = vmul.f32 %v37, %v38
  %v45 = vsub.f32 %v20, %v39
  %v46 = vsub.f32 %v21, %v40
  %v47 = vsub.f32 %v22, %v41
  %v48 = vsub.f32 %v23, %v42
  %v49 = vsub.f32 %v24, %v43
  %v50 = vsub.f32 %v25, %v44
  %v51 = vmul.f32 %v45, %v45
  %v52 = vmul.f32 %v46, %v46
  %v53 = vmul.f32 %v47, %v47
  %v54 = vmul.f32 %v48, %v48
  %v55 = vmul.f32 %v49, %v49
  %v56 = vmul.f32 %v50, %v50
  %57 = vadd.xlane.f32.xlu0 %v51
  %v58 = vpop.xlane.xlu0 %57
  %59 = vadd.xlane.f32.xlu0 %v52
  %v60 = vpop.xlane.xlu0 %59
  %61 = vadd.xlane.f32.xlu0 %v53
  %v62 = vpop.xlane.xlu0 %61
  %63 = vadd.xlane.f32.xlu0 %v54
  %v64 = vpop.xlane.xlu0 %63
  %65 = vadd.xlane.f32.xlu0 %v55
  %v66 = vpop.xlane.xlu0 %65
  %67 = vadd.xlane.f32.xlu0 %v56
  %v68 = vpop.xlane.xlu0 %67
  %v69 = vmul.f32 %v58, %v38
  %v70 = vmul.f32 %v60, %v38
  %v71 = vmul.f32 %v62, %v38
  %v72 = vmul.f32 %v64, %v38
  %v73 = vmul.f32 %v66, %v38
  %v74 = vmul.f32 %v68, %v38
  %v75 = vadd.f32 %v69, 1e-12
  %v76 = vadd.f32 %v70, 1e-12
  %v77 = vadd.f32 %v71, 1e-12
  %v78 = vadd.f32 %v72, 1e-12
  %v79 = vadd.f32 %v73, 1e-12
  %v80 = vadd.f32 %v74, 1e-12
  %v81 = vrsqrt.pop %v75
  %v82 = vrsqrt.pop %v76
  %v83 = vrsqrt.pop %v77
  %v84 = vrsqrt.pop %v78
  %v85 = vrsqrt.pop %v79
  %v86 = vrsqrt.pop %v80
  %v87 = vmul.f32 %v45, %v81
  %v88 = vmul.f32 %v46, %v82
  %v89 = vmul.f32 %v47, %v83
  %v90 = vmul.f32 %v48, %v84
  %v91 = vmul.f32 %v49, %v85
  %v92 = vmul.f32 %v50, %v86
  %v93 = vld [vmem:[%s1] sm:$0x1]
  %v95 = vlaneseq
  %v96 = vshrl.u32 %v95, 7
  %v97 = vsub.s32 0, %v96
  %v98 = vrot.slane %v93, %v97
  %v100 = vmul.f32 %v87, %v98
  %v101 = vmul.f32 %v88, %v98
  %v102 = vmul.f32 %v89, %v98
  %v103 = vmul.f32 %v90, %v98
  %v104 = vmul.f32 %v91, %v98
  %v105 = vmul.f32 %v92, %v98
  %v106 = vld [vmem:[%s2] sm:$0x1]
  %v108 = vlaneseq
  %v109 = vshrl.u32 %v108, 7
  %v110 = vsub.s32 0, %v109
  %v111 = vrot.slane %v106, %v110
  %v113 = vadd.f32 %v100, %v111
  %v114 = vadd.f32 %v101, %v111
  %v115 = vadd.f32 %v102, %v111
  %v116 = vadd.f32 %v103, %v111
  %v117 = vadd.f32 %v104, %v111
  %v118 = vadd.f32 %v105, %v111
  %v119 = vpack.c.bf16 %v114, %v113
  %v120 = vpack.c.bf16 %v116, %v115
  %v121 = vpack.c.bf16 %v118, %v117
  %v125 = vunpack.c.l.b16 %v119
  %v126 = vunpack.c.h.b16 %v119
  %v127 = vunpack.c.l.b16 %v120
  %v128 = vunpack.c.h.b16 %v120
  %v129 = vunpack.c.l.b16 %v121
  %v130 = vunpack.c.h.b16 %v121
  %v131 = vpack.c.b16 %v125, %v125
  %v132 = vpack.c.b16 %v126, %v126
  %v133 = vpack.c.b16 %v127, %v127
  %v134 = vpack.c.b16 %v128, %v128
  %v135 = vpack.c.b16 %v129, %v129
  %v136 = vpack.c.b16 %v130, %v130
  %143 = vst [vmem:[%s3] sm:$0xf] %v131
  %144 = vst [vmem:[%s3 + $0x4] sm:$0xf] %v132
  %145 = vst [vmem:[%s3 + $0x8] sm:$0xf] %v133
  %146 = vst [vmem:[%s3 + $0xc] sm:$0xf] %v134
  %147 = vst [vmem:[%s3 + $0x10] sm:$0xf] %v135
  %148 = vst [vmem:[%s3 + $0x14] sm:$0xf] %v136
  // Predicated region
  $region14: #{vit_encoder_forward.19} parent=0 // pred_check
    _
  $region15: #{vit_encoder_forward.19} parent=0 // pred_check_branch
    %150 = sbr.rel (0) target = $region17
  $region16: #{vit_encoder_forward.19} parent=0 // pred_region
    _
  $region17: #{vit_encoder_forward.19} parent=0 // pred_fallthru
    _
  // Predicated region
  $region18: #{vit_encoder_forward.19} parent=0 // pred_check
    _
  $region19: #{vit_encoder_forward.19} parent=0 // pred_check_branch
    %152 = sbr.rel (0) target = $region21
  $region20: #{vit_encoder_forward.19} parent=0 // pred_region
    _
  $region21: #{vit_encoder_forward.19} parent=0 // pred_fallthru
    _

// kernel: vit_encoder_forward.14
$region0: #{vit_encoder_forward.14}
  #allocation0 [shape = 'u32[]', space=smem, size = 0x4, offset = 0x4, fixed_abs, tag = 'smem constant byte address 0x4 - core index']
  #allocation1 [shape = 'u32[144,128]{1,0:T(1,128)}', space=vmem, size = 0x12000, scoped, tag = 'internal scratch']
  %s0 = inlined_call_operand.vmem [shape: bf16[48,128], index: 0, kind: input, shape index: {}]
  %s1 = inlined_call_operand.vmem [shape: f32[1,128], index: 1, kind: input, shape index: {}]
  %s2 = inlined_call_operand.vmem [shape: f32[1,128], index: 2, kind: input, shape index: {}]
  %s3 = inlined_call_operand.vmem [shape: bf16[128,512], index: 3, kind: input, shape index: {}]
  %s4 = inlined_call_operand.vmem [shape: f32[1,512], index: 4, kind: input, shape index: {}]
  %s5 = inlined_call_operand.vmem [shape: bf16[512,128], index: 5, kind: input, shape index: {}]
  %s6 = inlined_call_operand.vmem [shape: f32[1,128], index: 6, kind: input, shape index: {}]
  %s7 = inlined_call_operand.vmem [shape: bf16[48,128], index: 7, kind: output, shape index: {}]
  %s8 = sld [smem:[#allocation0]]
  $region38: #{vit_encoder_forward.14} parent=0
    _
  %s10 = ssub.s32 1, %s8
  %s11 = scalar_select 0, %s10, %s8
  // Predicated region
  $region2: #{vit_encoder_forward.14} parent=0 // pred_check
    _
  $region3: #{vit_encoder_forward.14} parent=0 // pred_check_branch
    %13 = sbr.rel (0) target = $region5
  $region4: #{vit_encoder_forward.14} parent=0 // pred_region
    _
  $region5: #{vit_encoder_forward.14} parent=0 // pred_fallthru
    _
  // Predicated region
  $region6: #{vit_encoder_forward.14} parent=0 // pred_check
    _
  $region7: #{vit_encoder_forward.14} parent=0 // pred_check_branch
    %15 = sbr.rel (0) target = $region9
  $region8: #{vit_encoder_forward.14} parent=0 // pred_region
    _
  $region9: #{vit_encoder_forward.14} parent=0 // pred_fallthru
    _
  // Predicated region
  $region10: #{vit_encoder_forward.14} parent=0 // pred_check
    _
  $region11: #{vit_encoder_forward.14} parent=0 // pred_check_branch
    %17 = sbr.rel (0) target = $region13
  $region12: #{vit_encoder_forward.14} parent=0 // pred_region
    _
  $region13: #{vit_encoder_forward.14} parent=0 // pred_fallthru
    _
  // Predicated region
  $region14: #{vit_encoder_forward.14} parent=0 // pred_check
    _
  $region15: #{vit_encoder_forward.14} parent=0 // pred_check_branch
    %19 = sbr.rel (0) target = $region17
  $region16: #{vit_encoder_forward.14} parent=0 // pred_region
    _
  $region17: #{vit_encoder_forward.14} parent=0 // pred_fallthru
    _
  // Predicated region
  $region18: #{vit_encoder_forward.14} parent=0 // pred_check
    _
  $region19: #{vit_encoder_forward.14} parent=0 // pred_check_branch
    %21 = sbr.rel (0) target = $region21
  $region20: #{vit_encoder_forward.14} parent=0 // pred_region
    _
  $region21: #{vit_encoder_forward.14} parent=0 // pred_fallthru
    _
  // Predicated region
  $region22: #{vit_encoder_forward.14} parent=0 // pred_check
    _
  $region23: #{vit_encoder_forward.14} parent=0 // pred_check_branch
    %23 = sbr.rel (0) target = $region25
  $region24: #{vit_encoder_forward.14} parent=0 // pred_region
    _
  $region25: #{vit_encoder_forward.14} parent=0 // pred_fallthru
    _
  // Predicated region
  $region26: #{vit_encoder_forward.14} parent=0 // pred_check
    _
  $region27: #{vit_encoder_forward.14} parent=0 // pred_check_branch
    %25 = sbr.rel (0) target = $region29
  $region28: #{vit_encoder_forward.14} parent=0 // pred_region
    _
  $region29: #{vit_encoder_forward.14} parent=0 // pred_fallthru
    _
  %v27 = vld [vmem:[%s0] sm:$0xf]
  %v28 = vld [vmem:[%s0 + $0x4] sm:$0xf]
  %v29 = vld [vmem:[%s0 + $0x8] sm:$0xf]
  %v30 = vld [vmem:[%s0 + $0xc] sm:$0xf]
  %v31 = vld [vmem:[%s0 + $0x10] sm:$0xf]
  %v32 = vld [vmem:[%s0 + $0x14] sm:$0xf]
  %v33 = vunpack.c.l.bf16 %v27
  %v34 = vunpack.c.l.bf16 %v28
  %v35 = vunpack.c.l.bf16 %v29
  %v36 = vunpack.c.l.bf16 %v30
  %v37 = vunpack.c.l.bf16 %v31
  %v38 = vunpack.c.l.bf16 %v32
  %39 = vadd.xlane.f32.xlu0 %v33
  %v40 = vpop.xlane.xlu0 %39
  %41 = vadd.xlane.f32.xlu0 %v34
  %v42 = vpop.xlane.xlu0 %41
  %43 = vadd.xlane.f32.xlu0 %v35
  %v44 = vpop.xlane.xlu0 %43
  %45 = vadd.xlane.f32.xlu0 %v36
  %v46 = vpop.xlane.xlu0 %45
  %47 = vadd.xlane.f32.xlu0 %v37
  %v48 = vpop.xlane.xlu0 %47
  %49 = vadd.xlane.f32.xlu0 %v38
  %v50 = vpop.xlane.xlu0 %49
  %v51 = vrcp.pop 128.0
  %v52 = vmul.f32 %v40, %v51
  %v53 = vmul.f32 %v42, %v51
  %v54 = vmul.f32 %v44, %v51
  %v55 = vmul.f32 %v46, %v51
  %v56 = vmul.f32 %v48, %v51
  %v57 = vmul.f32 %v50, %v51
  %v58 = vsub.f32 %v33, %v52
  %v59 = vsub.f32 %v34, %v53
  %v60 = vsub.f32 %v35, %v54
  %v61 = vsub.f32 %v36, %v55
  %v62 = vsub.f32 %v37, %v56
  %v63 = vsub.f32 %v38, %v57
  %v64 = vmul.f32 %v58, %v58
  %v65 = vmul.f32 %v59, %v59
  %v66 = vmul.f32 %v60, %v60
  %v67 = vmul.f32 %v61, %v61
  %v68 = vmul.f32 %v62, %v62
  %v69 = vmul.f32 %v63, %v63
  %70 = vadd.xlane.f32.xlu0 %v64
  %v71 = vpop.xlane.xlu0 %70
  %72 = vadd.xlane.f32.xlu0 %v65
  %v73 = vpop.xlane.xlu0 %72
  %74 = vadd.xlane.f32.xlu0 %v66
  %v75 = vpop.xlane.xlu0 %74
  %76 = vadd.xlane.f32.xlu0 %v67
  %v77 = vpop.xlane.xlu0 %76
  %78 = vadd.xlane.f32.xlu0 %v68
  %v79 = vpop.xlane.xlu0 %78
  %80 = vadd.xlane.f32.xlu0 %v69
  %v81 = vpop.xlane.xlu0 %80
  %v82 = vmul.f32 %v71, %v51
  %v83 = vmul.f32 %v73, %v51
  %v84 = vmul.f32 %v75, %v51
  %v85 = vmul.f32 %v77, %v51
  %v86 = vmul.f32 %v79, %v51
  %v87 = vmul.f32 %v81, %v51
  %v88 = vadd.f32 %v82, 1e-12
  %v89 = vadd.f32 %v83, 1e-12
  %v90 = vadd.f32 %v84, 1e-12
  %v91 = vadd.f32 %v85, 1e-12
  %v92 = vadd.f32 %v86, 1e-12
  %v93 = vadd.f32 %v87, 1e-12
  %v94 = vrsqrt.pop %v88
  %v95 = vrsqrt.pop %v89
  %v96 = vrsqrt.pop %v90
  %v97 = vrsqrt.pop %v91
  %v98 = vrsqrt.pop %v92
  %v99 = vrsqrt.pop %v93
  %v100 = vmul.f32 %v58, %v94
  %v101 = vmul.f32 %v59, %v95
  %v102 = vmul.f32 %v60, %v96
  %v103 = vmul.f32 %v61, %v97
  %v104 = vmul.f32 %v62, %v98
  %v105 = vmul.f32 %v63, %v99
  %v106 = vld [vmem:[%s1] sm:$0x1]
  %v108 = vlaneseq
  %v109 = vshrl.u32 %v108, 7
  %v110 = vsub.s32 0, %v109
  %v111 = vrot.slane %v106, %v110
  %v113 = vmul.f32 %v100, %v111
  %v114 = vmul.f32 %v101, %v111
  %v115 = vmul.f32 %v102, %v111
  %v116 = vmul.f32 %v103, %v111
  %v117 = vmul.f32 %v104, %v111
  %v118 = vmul.f32 %v105, %v111
  %v119 = vld [vmem:[%s2] sm:$0x1]
  %v121 = vlaneseq
  %v122 = vshrl.u32 %v121, 7
  %v123 = vsub.s32 0, %v122
  %v124 = vrot.slane %v119, %v123
  %v126 = vadd.f32 %v113, %v124
  %v127 = vadd.f32 %v114, %v124
  %v128 = vadd.f32 %v115, %v124
  %v129 = vadd.f32 %v116, %v124
  %v130 = vadd.f32 %v117, %v124
  %v131 = vadd.f32 %v118, %v124
  %v132 = vpack.c.bf16 %v127, %v126
  %v133 = vpack.c.bf16 %v129, %v128
  %v134 = vpack.c.bf16 %v131, %v130
  %v135 = vld [vmem:[%s3] sm:$0xff]
  %v136 = vld [vmem:[%s3 + $0x8] sm:$0xff]
  %v137 = vld [vmem:[%s3 + $0x10] sm:$0xff]
  %v138 = vld [vmem:[%s3 + $0x18] sm:$0xff]
  %v139 = vld [vmem:[%s3 + $0x20] sm:$0xff]
  %v140 = vld [vmem:[%s3 + $0x28] sm:$0xff]
  %v141 = vld [vmem:[%s3 + $0x30] sm:$0xff]
  %v142 = vld [vmem:[%s3 + $0x38] sm:$0xff]
  %v143 = vld [vmem:[%s3 + $0x40] sm:$0xff]
  %v144 = vld [vmem:[%s3 + $0x48] sm:$0xff]
  %v145 = vld [vmem:[%s3 + $0x50] sm:$0xff]
  %v146 = vld [vmem:[%s3 + $0x58] sm:$0xff]
  %v147 = vld [vmem:[%s3 + $0x60] sm:$0xff]
  %v148 = vld [vmem:[%s3 + $0x68] sm:$0xff]
  %v149 = vld [vmem:[%s3 + $0x70] sm:$0xff]
  %v150 = vld [vmem:[%s3 + $0x78] sm:$0xff]
  %v151 = vld [vmem:[%s3 + $0x80] sm:$0xff]
  %v152 = vld [vmem:[%s3 + $0x88] sm:$0xff]
  %v153 = vld [vmem:[%s3 + $0x90] sm:$0xff]
  %v154 = vld [vmem:[%s3 + $0x98] sm:$0xff]
  %v155 = vld [vmem:[%s3 + $0xa0] sm:$0xff]
  %v156 = vld [vmem:[%s3 + $0xa8] sm:$0xff]
  %v157 = vld [vmem:[%s3 + $0xb0] sm:$0xff]
  %v158 = vld [vmem:[%s3 + $0xb8] sm:$0xff]
  %v159 = vld [vmem:[%s3 + $0xc0] sm:$0xff]
  %v160 = vld [vmem:[%s3 + $0xc8] sm:$0xff]
  %v161 = vld [vmem:[%s3 + $0xd0] sm:$0xff]
  %v162 = vld [vmem:[%s3 + $0xd8] sm:$0xff]
  %v163 = vld [vmem:[%s3 + $0xe0] sm:$0xff]
  %v164 = vld [vmem:[%s3 + $0xe8] sm:$0xff]
  %v165 = vld [vmem:[%s3 + $0xf0] sm:$0xff]
  %v166 = vld [vmem:[%s3 + $0xf8] sm:$0xff]
  %v167 = vld [vmem:[%s4] sm:$0xf]
  %v169 = vlaneseq
  %v170 = vshrl.u32 %v169, 7
  %v171 = vsub.s32 0, %v170
  %v172 = vrot.slane %v167, %v171
  %v173 = vlaneseq
  %v174 = vshrl.u32 %v173, 7
  %v175 = vsub.s32 1, %v174
  %v176 = vrot.slane %v167, %v175
  %v177 = vlaneseq
  %v178 = vshrl.u32 %v177, 7
  %v179 = vsub.s32 2, %v178
  %v180 = vrot.slane %v167, %v179
  %v181 = vlaneseq
  %v182 = vshrl.u32 %v181, 7
  %v183 = vsub.s32 3, %v182
  %v184 = vrot.slane %v167, %v183
  %v221 = vunpack.c.l.b16 %v135
  %v222 = vunpack.c.h.b16 %v135
  %v223 = vunpack.c.l.b16 %v136
  %v224 = vunpack.c.h.b16 %v136
  %v225 = vunpack.c.l.b16 %v137
  %v226 = vunpack.c.h.b16 %v137
  %v227 = vunpack.c.l.b16 %v138
  %v228 = vunpack.c.h.b16 %v138
  %v229 = vunpack.c.l.b16 %v139
  %v230 = vunpack.c.h.b16 %v139
  %v231 = vunpack.c.l.b16 %v140
  %v232 = vunpack.c.h.b16 %v140
  %v233 = vunpack.c.l.b16 %v141
  %v234 = vunpack.c.h.b16 %v141
  %v235 = vunpack.c.l.b16 %v142
  %v236 = vunpack.c.h.b16 %v142
  %v237 = vunpack.c.l.b16 %v143
  %v238 = vunpack.c.h.b16 %v143
  %v239 = vunpack.c.l.b16 %v144
  %v240 = vunpack.c.h.b16 %v144
  %v241 = vunpack.c.l.b16 %v145
  %v242 = vunpack.c.h.b16 %v145
  %v243 = vunpack.c.l.b16 %v146
  %v244 = vunpack.c.h.b16 %v146
  %v245 = vunpack.c.l.b16 %v147
  %v246 = vunpack.c.h.b16 %v147
  %v247 = vunpack.c.l.b16 %v148
  %v248 = vunpack.c.h.b16 %v148
  %v249 = vunpack.c.l.b16 %v149
  %v250 = vunpack.c.h.b16 %v149
  %v251 = vunpack.c.l.b16 %v150
  %v252 = vunpack.c.h.b16 %v150
  %v253 = vunpack.c.l.b16 %v151
  %v254 = vunpack.c.h.b16 %v151
  %v255 = vunpack.c.l.b16 %v152
  %v256 = vunpack.c.h.b16 %v152
  %v257 = vunpack.c.l.b16 %v153
  %v258 = vunpack.c.h.b16 %v153
  %v259 = vunpack.c.l.b16 %v154
  %v260 = vunpack.c.h.b16 %v154
  %v261 = vunpack.c.l.b16 %v155
  %v262 = vunpack.c.h.b16 %v155
  %v263 = vunpack.c.l.b16 %v156
  %v264 = vunpack.c.h.b16 %v156
  %v265 = vunpack.c.l.b16 %v157
  %v266 = vunpack.c.h.b16 %v157
  %v267 = vunpack.c.l.b16 %v158
  %v268 = vunpack.c.h.b16 %v158
  %v269 = vunpack.c.l.b16 %v159
  %v270 = vunpack.c.h.b16 %v159
  %v271 = vunpack.c.l.b16 %v160
  %v272 = vunpack.c.h.b16 %v160
  %v273 = vunpack.c.l.b16 %v161
  %v274 = vunpack.c.h.b16 %v161
  %v275 = vunpack.c.l.b16 %v162
  %v276 = vunpack.c.h.b16 %v162
  %v277 = vunpack.c.l.b16 %v163
  %v278 = vunpack.c.h.b16 %v163
  %v279 = vunpack.c.l.b16 %v164
  %v280 = vunpack.c.h.b16 %v164
  %v281 = vunpack.c.l.b16 %v165
  %v282 = vunpack.c.h.b16 %v165
  %v283 = vunpack.c.l.b16 %v166
  %v284 = vunpack.c.h.b16 %v166
  %v285 = vpack.c.b16 %v225, %v221
  %v286 = vpack.c.b16 %v226, %v222
  %v287 = vpack.c.b16 %v227, %v223
  %v288 = vpack.c.b16 %v228, %v224
  %v289 = vpack.c.b16 %v233, %v229
  %v290 = vpack.c.b16 %v234, %v230
  %v291 = vpack.c.b16 %v235, %v231
  %v292 = vpack.c.b16 %v236, %v232
  %v293 = vpack.c.b16 %v241, %v237
  %v294 = vpack.c.b16 %v242, %v238
  %v295 = vpack.c.b16 %v243, %v239
  %v296 = vpack.c.b16 %v244, %v240
  %v297 = vpack.c.b16 %v249, %v245
  %v298 = vpack.c.b16 %v250, %v246
  %v299 = vpack.c.b16 %v251, %v247
  %v300 = vpack.c.b16 %v252, %v248
  %v301 = vpack.c.b16 %v257, %v253
  %v302 = vpack.c.b16 %v258, %v254
  %v303 = vpack.c.b16 %v259, %v255
  %v304 = vpack.c.b16 %v260, %v256
  %v305 = vpack.c.b16 %v265, %v261
  %v306 = vpack.c.b16 %v266, %v262
  %v307 = vpack.c.b16 %v267, %v263
  %v308 = vpack.c.b16 %v268, %v264
  %v309 = vpack.c.b16 %v273, %v269
  %v310 = vpack.c.b16 %v274, %v270
  %v311 = vpack.c.b16 %v275, %v271
  %v312 = vpack.c.b16 %v276, %v272
  %v313 = vpack.c.b16 %v281, %v277
  %v314 = vpack.c.b16 %v282, %v278
  %v315 = vpack.c.b16 %v283, %v279
  %v316 = vpack.c.b16 %v284, %v280
  %349 = vmatprep.subr.bf16.mxu0 %v286
  %350 = vmatpush1.bf16.msra.mxu0 %v285
  %351 = vmatprep.subr.bf16.mxu0 %v290
  %352 = vmatpush1.bf16.msra.mxu0 %v289
  %353 = vmatprep.subr.bf16.mxu0 %v294
  %354 = vmatpush1.bf16.msra.mxu0 %v293
  %355 = vmatprep.subr.bf16.mxu0 %v298
  %356 = vmatpush1.bf16.msra.mxu0 %v297
  %357 = vmatprep.subr.bf16.mxu0 %v302
  %358 = vmatpush1.bf16.msra.mxu0 %v301
  %359 = vmatprep.subr.bf16.mxu0 %v306
  %360 = vmatpush1.bf16.msra.mxu0 %v305
  %361 = vmatprep.subr.bf16.mxu0 %v310
  %362 = vmatpush1.bf16.msra.mxu0 %v309
  %363 = vmatprep.subr.bf16.mxu0 %v314
  %364 = vmatpush1.bf16.msra.mxu0 %v313
  %365 = vmatprep.subr.bf16.mxu0 0
  %366 = vmatpush1.bf16.msra.mxu0 0
  %367 = vmatprep.subr.bf16.mxu0 0
  %368 = vmatpush1.bf16.msra.mxu0 0
  %369 = vmatprep.subr.bf16.mxu0 0
  %370 = vmatpush1.bf16.msra.mxu0 0
  %371 = vmatprep.subr.bf16.mxu0 0
  %372 = vmatpush1.bf16.msra.mxu0 0
  %373 = vmatprep.subr.bf16.mxu0 0
  %374 = vmatpush1.bf16.msra.mxu0 0
  %375 = vmatprep.subr.bf16.mxu0 0
  %376 = vmatpush1.bf16.msra.mxu0 0
  %377 = vmatprep.subr.bf16.mxu0 0
  %378 = vmatpush1.bf16.msra.mxu0 0
  %379 = vmatprep.subr.bf16.mxu0 0
  %380 = vmatpush1.bf16.msra.mxu0 0
  %381 = vmatprep.mubr.bf16.mxu0 0
  %382 = vmatmul.mubr.bf16.gmra.mrb[0].mxu0 %v132
  %v383 = vpop.f32.mrb[0].mxu0
  %v384 = vadd.f32 %v172, %v383
  %v385 = vpop.f32.mrb[0].mxu0
  %v386 = vadd.f32 %v176, %v385
  %v387 = vpop.f32.mrb[0].mxu0
  %v388 = vadd.f32 %v172, %v387
  %v389 = vpop.f32.mrb[0].mxu0
  %v390 = vadd.f32 %v176, %v389
  %391 = vmatprep.mubr.bf16.mxu0 0
  %392 = vmatmul.mubr.bf16.gmra.mrb[0].mxu0 %v133
  %v393 = vpop.f32.mrb[0].mxu0
  %v394 = vadd.f32 %v172, %v393
  %v395 = vpop.f32.mrb[0].mxu0
  %v396 = vadd.f32 %v176, %v395
  %v397 = vpop.f32.mrb[0].mxu0
  %v398 = vadd.f32 %v172, %v397
  %v399 = vpop.f32.mrb[0].mxu0
  %v400 = vadd.f32 %v176, %v399
  %401 = vmatprep.mubr.bf16.mxu0 0
  %402 = vmatmul.mubr.bf16.gmra.mrb[0].mxu0 %v134
  %v403 = vpop.f32.mrb[0].mxu0
  %v404 = vadd.f32 %v172, %v403
  %v405 = vpop.f32.mrb[0].mxu0
  %v406 = vadd.f32 %v176, %v405
  %v407 = vpop.f32.mrb[0].mxu0
  %v408 = vadd.f32 %v172, %v407
  %v409 = vpop.f32.mrb[0].mxu0
  %v410 = vadd.f32 %v176, %v409
  %411 = vdwg.mxu0
  %412 = vmatprep.subr.bf16.mxu0 %v288
  %413 = vmatpush1.bf16.msra.mxu0 %v287
  %414 = vmatprep.subr.bf16.mxu0 %v292
  %415 = vmatpush1.bf16.msra.mxu0 %v291
  %416 = vmatprep.subr.bf16.mxu0 %v296
  %417 = vmatpush1.bf16.msra.mxu0 %v295
  %418 = vmatprep.subr.bf16.mxu0 %v300
  %419 = vmatpush1.bf16.msra.mxu0 %v299
  %420 = vmatprep.subr.bf16.mxu0 %v304
  %421 = vmatpush1.bf16.msra.mxu0 %v303
  %422 = vmatprep.subr.bf16.mxu0 %v308
  %423 = vmatpush1.bf16.msra.mxu0 %v307
  %424 = vmatprep.subr.bf16.mxu0 %v312
  %425 = vmatpush1.bf16.msra.mxu0 %v311
  %426 = vmatprep.subr.bf16.mxu0 %v316
  %427 = vmatpush1.bf16.msra.mxu0 %v315
  %428 = vmatprep.subr.bf16.mxu0 0
  %429 = vmatpush1.bf16.msra.mxu0 0
  %430 = vmatprep.subr.bf16.mxu0 0
  %431 = vmatpush1.bf16.msra.mxu0 0
  %432 = vmatprep.subr.bf16.mxu0 0
  %433 = vmatpush1.bf16.msra.mxu0 0
  %434 = vmatprep.subr.bf16.mxu0 0
  %435 = vmatpush1.bf16.msra.mxu0 0
  %436 = vmatprep.subr.bf16.mxu0 0
  %437 = vmatpush1.bf16.msra.mxu0 0
  %438 = vmatprep.subr.bf16.mxu0 0
  %439 = vmatpush1.bf16.msra.mxu0 0
  %440 = vmatprep.subr.bf16.mxu0 0
  %441 = vmatpush1.bf16.msra.mxu0 0
  %442 = vmatprep.subr.bf16.mxu0 0
  %443 = vmatpush1.bf16.msra.mxu0 0
  %444 = vmatprep.mubr.bf16.mxu0 0
  %445 = vmatmul.mubr.bf16.gmra.mrb[0].mxu0 %v132
  %v446 = vpop.f32.mrb[0].mxu0
  %v447 = vadd.f32 %v180, %v446
  %v448 = vpop.f32.mrb[0].mxu0
  %v449 = vadd.f32 %v184, %v448
  %v450 = vpop.f32.mrb[0].mxu0
  %v451 = vadd.f32 %v180, %v450
  %v452 = vpop.f32.mrb[0].mxu0
  %v453 = vadd.f32 %v184, %v452
  %454 = vmatprep.mubr.bf16.mxu0 0
  %455 = vmatmul.mubr.bf16.gmra.mrb[0].mxu0 %v133
  %v456 = vpop.f32.mrb[0].mxu0
  %v457 = vadd.f32 %v180, %v456
  %v458 = vpop.f32.mrb[0].mxu0
  %v459 = vadd.f32 %v184, %v458
  %v460 = vpop.f32.mrb[0].mxu0
  %v461 = vadd.f32 %v180, %v460
  %v462 = vpop.f32.mrb[0].mxu0
  %v463 = vadd.f32 %v184, %v462
  %464 = vmatprep.mubr.bf16.mxu0 0
  %465 = vmatmul.mubr.bf16.gmra.mrb[0].mxu0 %v134
  %v466 = vpop.f32.mrb[0].mxu0
  %v467 = vadd.f32 %v180, %v466
  %v468 = vpop.f32.mrb[0].mxu0
  %v469 = vadd.f32 %v184, %v468
  %v470 = vpop.f32.mrb[0].mxu0
  %v471 = vadd.f32 %v180, %v470
  %v472 = vpop.f32.mrb[0].mxu0
  %v473 = vadd.f32 %v184, %v472
  %474 = vdwg.mxu0
  %v475 = vmul.f32 %v384, 0.5
  %v476 = vmul.f32 %v386, 0.5
  %v477 = vmul.f32 %v447, 0.5
  %v478 = vmul.f32 %v449, 0.5
  %v479 = vmul.f32 %v388, 0.5
  %v480 = vmul.f32 %v390, 0.5
  %v481 = vmul.f32 %v451, 0.5
  %v482 = vmul.f32 %v453, 0.5
  %v483 = vmul.f32 %v394, 0.5
  %v484 = vmul.f32 %v396, 0.5
  %v485 = vmul.f32 %v457, 0.5
  %v486 = vmul.f32 %v459, 0.5
  %v487 = vmul.f32 %v398, 0.5
  %v488 = vmul.f32 %v400, 0.5
  %v489 = vmul.f32 %v461, 0.5
  %v490 = vmul.f32 %v463, 0.5
  %v491 = vmul.f32 %v404, 0.5
  %v492 = vmul.f32 %v406, 0.5
  %v493 = vmul.f32 %v467, 0.5
  %v494 = vmul.f32 %v469, 0.5
  %v495 = vmul.f32 %v408, 0.5
  %v496 = vmul.f32 %v410, 0.5
  %v497 = vmul.f32 %v471, 0.5
  %v498 = vmul.f32 %v473, 0.5
  %v499 = vmul.f32 %v384, 0.70710677
  %v500 = vmul.f32 %v386, 0.70710677
  %v501 = vmul.f32 %v447, 0.70710677
  %v502 = vmul.f32 %v449, 0.70710677
  %v503 = vmul.f32 %v388, 0.70710677
  %v504 = vmul.f32 %v390, 0.70710677
  %v505 = vmul.f32 %v451, 0.70710677
  %v506 = vmul.f32 %v453, 0.70710677
  %v507 = vmul.f32 %v394, 0.70710677
  %v508 = vmul.f32 %v396, 0.70710677
  %v509 = vmul.f32 %v457, 0.70710677
  %v510 = vmul.f32 %v459, 0.70710677
  %v511 = vmul.f32 %v398, 0.70710677
  %v512 = vmul.f32 %v400, 0.70710677
  %v513 = vmul.f32 %v461, 0.70710677
  %v514 = vmul.f32 %v463, 0.70710677
  %v515 = vmul.f32 %v404, 0.70710677
  %v516 = vmul.f32 %v406, 0.70710677
  %v517 = vmul.f32 %v467, 0.70710677
  %v518 = vmul.f32 %v469, 0.70710677
  %v519 = vmul.f32 %v408, 0.70710677
  %v520 = vmul.f32 %v410, 0.70710677
  %v521 = vmul.f32 %v471, 0.70710677
  %v522 = vmul.f32 %v473, 0.70710677
  %vm523 = vcmp.ge.f32.partialorder %v499, 0.0
  %vm524 = vcmp.ge.f32.partialorder %v500, 0.0
  %vm525 = vcmp.ge.f32.partialorder %v501, 0.0
  %vm526 = vcmp.ge.f32.partialorder %v502, 0.0
  %vm527 = vcmp.ge.f32.partialorder %v503, 0.0
  %vm528 = vcmp.ge.f32.partialorder %v504, 0.0
  %vm529 = vcmp.ge.f32.partialorder %v505, 0.0
  %vm530 = vcmp.ge.f32.partialorder %v506, 0.0
  %vm531 = vcmp.ge.f32.partialorder %v507, 0.0
  %vm532 = vcmp.ge.f32.partialorder %v508, 0.0
  %vm533 = vcmp.ge.f32.partialorder %v509, 0.0
  %vm534 = vcmp.ge.f32.partialorder %v510, 0.0
  %vm535 = vcmp.ge.f32.partialorder %v511, 0.0
  %vm536 = vcmp.ge.f32.partialorder %v512, 0.0
  %vm537 = vcmp.ge.f32.partialorder %v513, 0.0
  %vm538 = vcmp.ge.f32.partialorder %v514, 0.0
  %vm539 = vcmp.ge.f32.partialorder %v515, 0.0
  %vm540 = vcmp.ge.f32.partialorder %v516, 0.0
  %vm541 = vcmp.ge.f32.partialorder %v517, 0.0
  %vm542 = vcmp.ge.f32.partialorder %v518, 0.0
  %vm543 = vcmp.ge.f32.partialorder %v519, 0.0
  %vm544 = vcmp.ge.f32.partialorder %v520, 0.0
  %vm545 = vcmp.ge.f32.partialorder %v521, 0.0
  %vm546 = vcmp.ge.f32.partialorder %v522, 0.0
  %v547 = vsel %vm523, 1.0, -1.0
  %v548 = vsel %vm524, 1.0, -1.0
  %v549 = vsel %vm525, 1.0, -1.0
  %v550 = vsel %vm526, 1.0, -1.0
  %v551 = vsel %vm527, 1.0, -1.0
  %v552 = vsel %vm528, 1.0, -1.0
  %v553 = vsel %vm529, 1.0, -1.0
  %v554 = vsel %vm530, 1.0, -1.0
  %v555 = vsel %vm531, 1.0, -1.0
  %v556 = vsel %vm532, 1.0, -1.0
  %v557 = vsel %vm533, 1.0, -1.0
  %v558 = vsel %vm534, 1.0, -1.0
  %v559 = vsel %vm535, 1.0, -1.0
  %v560 = vsel %vm536, 1.0, -1.0
  %v561 = vsel %vm537, 1.0, -1.0
  %v562 = vsel %vm538, 1.0, -1.0
  %v563 = vsel %vm539, 1.0, -1.0
  %v564 = vsel %vm540, 1.0, -1.0
  %v565 = vsel %vm541, 1.0, -1.0
  %v566 = vsel %vm542, 1.0, -1.0
  %v567 = vsel %vm543, 1.0, -1.0
  %v568 = vsel %vm544, 1.0, -1.0
  %v569 = vsel %vm545, 1.0, -1.0
  %v570 = vsel %vm546, 1.0, -1.0
  %v571 = vand.u32 2147483647, %v499
  %v572 = vand.u32 2147483647, %v500
  %v573 = vand.u32 2147483647, %v501
  %v574 = vand.u32 2147483647, %v502
  %v575 = vand.u32 2147483647, %v503
  %v576 = vand.u32 2147483647, %v504
  %v577 = vand.u32 2147483647, %v505
  %v578 = vand.u32 2147483647, %v506
  %v579 = vand.u32 2147483647, %v507
  %v580 = vand.u32 2147483647, %v508
  %v581 = vand.u32 2147483647, %v509
  %v582 = vand.u32 2147483647, %v510
  %v583 = vand.u32 2147483647, %v511
  %v584 = vand.u32 2147483647, %v512
  %v585 = vand.u32 2147483647, %v513
  %v586 = vand.u32 2147483647, %v514
  %v587 = vand.u32 2147483647, %v515
  %v588 = vand.u32 2147483647, %v516
  %v589 = vand.u32 2147483647, %v517
  %v590 = vand.u32 2147483647, %v518
  %v591 = vand.u32 2147483647, %v519
  %v592 = vand.u32 2147483647, %v520
  %v593 = vand.u32 2147483647, %v521
  %v594 = vand.u32 2147483647, %v522
  %v595 = vmul.f32 %v571, 0.3275911
  %v596 = vmul.f32 %v572, 0.3275911
  %v597 = vmul.f32 %v573, 0.3275911
  %v598 = vmul.f32 %v574, 0.3275911
  %v599 = vmul.f32 %v575, 0.3275911
  %v600 = vmul.f32 %v576, 0.3275911
  %v601 = vmul.f32 %v577, 0.3275911
  %v602 = vmul.f32 %v578, 0.3275911
  %v603 = vmul.f32 %v579, 0.3275911
  %v604 = vmul.f32 %v580, 0.3275911
  %v605 = vmul.f32 %v581, 0.3275911
  %v606 = vmul.f32 %v582, 0.3275911
  %v607 = vmul.f32 %v583, 0.3275911
  %v608 = vmul.f32 %v584, 0.3275911
  %v609 = vmul.f32 %v585, 0.3275911
  %v610 = vmul.f32 %v586, 0.3275911
  %v611 = vmul.f32 %v587, 0.3275911
  %v612 = vmul.f32 %v588, 0.3275911
  %v613 = vmul.f32 %v589, 0.3275911
  %v614 = vmul.f32 %v590, 0.3275911
  %v615 = vmul.f32 %v591, 0.3275911
  %v616 = vmul.f32 %v592, 0.3275911
  %v617 = vmul.f32 %v593, 0.3275911
  %v618 = vmul.f32 %v594, 0.3275911
  %v619 = vadd.f32 %v595, 1.0
  %v620 = vadd.f32 %v596, 1.0
  %v621 = vadd.f32 %v597, 1.0
  %v622 = vadd.f32 %v598, 1.0
  %v623 = vadd.f32 %v599, 1.0
  %v624 = vadd.f32 %v600, 1.0
  %v625 = vadd.f32 %v601, 1.0
  %v626 = vadd.f32 %v602, 1.0
  %v627 = vadd.f32 %v603, 1.0
  %v628 = vadd.f32 %v604, 1.0
  %v629 = vadd.f32 %v605, 1.0
  %v630 = vadd.f32 %v606, 1.0
  %v631 = vadd.f32 %v607, 1.0
  %v632 = vadd.f32 %v608, 1.0
  %v633 = vadd.f32 %v609, 1.0
  %v634 = vadd.f32 %v610, 1.0
  %v635 = vadd.f32 %v611, 1.0
  %v636 = vadd.f32 %v612, 1.0
  %v637 = vadd.f32 %v613, 1.0
  %v638 = vadd.f32 %v614, 1.0
  %v639 = vadd.f32 %v615, 1.0
  %v640 = vadd.f32 %v616, 1.0
  %v641 = vadd.f32 %v617, 1.0
  %v642 = vadd.f32 %v618, 1.0
  %v643 = vrcp.pop %v619
  %v644 = vmul.f32 1.0, %v643
  %v645 = vrcp.pop %v620
  %v646 = vmul.f32 1.0, %v645
  %v647 = vrcp.pop %v621
  %v648 = vmul.f32 1.0, %v647
  %v649 = vrcp.pop %v622
  %v650 = vmul.f32 1.0, %v649
  %v651 = vrcp.pop %v623
  %v652 = vmul.f32 1.0, %v651
  %v653 = vrcp.pop %v624
  %v654 = vmul.f32 1.0, %v653
  %v655 = vrcp.pop %v625
  %v656 = vmul.f32 1.0, %v655
  %v657 = vrcp.pop %v626
  %v658 = vmul.f32 1.0, %v657
  %v659 = vrcp.pop %v627
  %v660 = vmul.f32 1.0, %v659
  %v661 = vrcp.pop %v628
  %v662 = vmul.f32 1.0, %v661
  %v663 = vrcp.pop %v629
  %v664 = vmul.f32 1.0, %v663
  %v665 = vrcp.pop %v630
  %v666 = vmul.f32 1.0, %v665
  %v667 = vrcp.pop %v631
  %v668 = vmul.f32 1.0, %v667
  %v669 = vrcp.pop %v632
  %v670 = vmul.f32 1.0, %v669
  %v671 = vrcp.pop %v633
  %v672 = vmul.f32 1.0, %v671
  %v673 = vrcp.pop %v634
  %v674 = vmul.f32 1.0, %v673
  %v675 = vrcp.pop %v635
  %v676 = vmul.f32 1.0, %v675
  %v677 = vrcp.pop %v636
  %v678 = vmul.f32 1.0, %v677
  %v679 = vrcp.pop %v637
  %v680 = vmul.f32 1.0, %v679
  %v681 = vrcp.pop %v638
  %v682 = vmul.f32 1.0, %v681
  %v683 = vrcp.pop %v639
  %v684 = vmul.f32 1.0, %v683
  %v685 = vrcp.pop %v640
  %v686 = vmul.f32 1.0, %v685
  %v687 = vrcp.pop %v641
  %v688 = vmul.f32 1.0, %v687
  %v689 = vrcp.pop %v642
  %v690 = vmul.f32 1.0, %v689
  %v691 = vmul.f32 %v644, 1.0614054
  %v692 = vmul.f32 %v646, 1.0614054
  %v693 = vmul.f32 %v648, 1.0614054
  %v694 = vmul.f32 %v650, 1.0614054
  %v695 = vmul.f32 %v652, 1.0614054
  %v696 = vmul.f32 %v654, 1.0614054
  %v697 = vmul.f32 %v656, 1.0614054
  %v698 = vmul.f32 %v658, 1.0614054
  %v699 = vmul.f32 %v660, 1.0614054
  %v700 = vmul.f32 %v662, 1.0614054
  %v701 = vmul.f32 %v664, 1.0614054
  %v702 = vmul.f32 %v666, 1.0614054
  %v703 = vmul.f32 %v668, 1.0614054
  %v704 = vmul.f32 %v670, 1.0614054
  %v705 = vmul.f32 %v672, 1.0614054
  %v706 = vmul.f32 %v674, 1.0614054
  %v707 = vmul.f32 %v676, 1.0614054
  %v708 = vmul.f32 %v678, 1.0614054
  %v709 = vmul.f32 %v680, 1.0614054
  %v710 = vmul.f32 %v682, 1.0614054
  %v711 = vmul.f32 %v684, 1.0614054
  %v712 = vmul.f32 %v686, 1.0614054
  %v713 = vmul.f32 %v688, 1.0614054
  %v714 = vmul.f32 %v690, 1.0614054
  %v715 = vadd.f32 %v691, -1.4531521
  %v716 = vadd.f32 %v692, -1.4531521
  %v717 = vadd.f32 %v693, -1.4531521
  %v718 = vadd.f32 %v694, -1.4531521
  %v719 = vadd.f32 %v695, -1.4531521
  %v720 = vadd.f32 %v696, -1.4531521
  %v721 = vadd.f32 %v697, -1.4531521
  %v722 = vadd.f32 %v698, -1.4531521
  %v723 = vadd.f32 %v699, -1.4531521
  %v724 = vadd.f32 %v700, -1.4531521
  %v725 = vadd.f32 %v701, -1.4531521
  %v726 = vadd.f32 %v702, -1.4531521
  %v727 = vadd.f32 %v703, -1.4531521
  %v728 = vadd.f32 %v704, -1.4531521
  %v729 = vadd.f32 %v705, -1.4531521
  %v730 = vadd.f32 %v706, -1.4531521
  %v731 = vadd.f32 %v707, -1.4531521
  %v732 = vadd.f32 %v708, -1.4531521
  %v733 = vadd.f32 %v709, -1.4531521
  %v734 = vadd.f32 %v710, -1.4531521
  %v735 = vadd.f32 %v711, -1.4531521
  %v736 = vadd.f32 %v712, -1.4531521
  %v737 = vadd.f32 %v713, -1.4531521
  %v738 = vadd.f32 %v714, -1.4531521
  %v739 = vmul.f32 %v715, %v644
  %v740 = vmul.f32 %v716, %v646
  %v741 = vmul.f32 %v717, %v648
  %v742 = vmul.f32 %v718, %v650
  %v743 = vmul.f32 %v719, %v652
  %v744 = vmul.f32 %v720, %v654
  %v745 = vmul.f32 %v721, %v656
  %v746 = vmul.f32 %v722, %v658
  %v747 = vmul.f32 %v723, %v660
  %v748 = vmul.f32 %v724, %v662
  %v749 = vmul.f32 %v725, %v664
  %v750 = vmul.f32 %v726, %v666
  %v751 = vmul.f32 %v727, %v668
  %v752 = vmul.f32 %v728, %v670
  %v753 = vmul.f32 %v729, %v672
  %v754 = vmul.f32 %v730, %v674
  %v755 = vmul.f32 %v731, %v676
  %v756 = vmul.f32 %v732, %v678
  %v757 = vmul.f32 %v733, %v680
  %v758 = vmul.f32 %v734, %v682
  %v759 = vmul.f32 %v735, %v684
  %v760 = vmul.f32 %v736, %v686
  %v761 = vmul.f32 %v737, %v688
  %v762 = vmul.f32 %v738, %v690
  %v763 = vadd.f32 %v739, 1.4214138
  %v764 = vadd.f32 %v740, 1.4214138
  %v765 = vadd.f32 %v741, 1.4214138
  %v766 = vadd.f32 %v742, 1.4214138
  %v767 = vadd.f32 %v743, 1.4214138
  %v768 = vadd.f32 %v744, 1.4214138
  %v769 = vadd.f32 %v745, 1.4214138
  %v770 = vadd.f32 %v746, 1.4214138
  %v771 = vadd.f32 %v747, 1.4214138
  %v772 = vadd.f32 %v748, 1.4214138
  %v773 = vadd.f32 %v749, 1.4214138
  %v774 = vadd.f32 %v750, 1.4214138
  %v775 = vadd.f32 %v751, 1.4214138
  %v776 = vadd.f32 %v752, 1.4214138
  %v777 = vadd.f32 %v753, 1.4214138
  %v778 = vadd.f32 %v754, 1.4214138
  %v779 = vadd.f32 %v755, 1.4214138
  %v780 = vadd.f32 %v756, 1.4214138
  %v781 = vadd.f32 %v757, 1.4214138
  %v782 = vadd.f32 %v758, 1.4214138
  %v783 = vadd.f32 %v759, 1.4214138
  %v784 = vadd.f32 %v760, 1.4214138
  %v785 = vadd.f32 %v761, 1.4214138
  %v786 = vadd.f32 %v762, 1.4214138
  %v787 = vmul.f32 %v763, %v644
  %v788 = vmul.f32 %v764, %v646
  %v789 = vmul.f32 %v765, %v648
  %v790 = vmul.f32 %v766, %v650
  %v791 = vmul.f32 %v767, %v652
  %v792 = vmul.f32 %v768, %v654
  %v793 = vmul.f32 %v769, %v656
  %v794 = vmul.f32 %v770, %v658
  %v795 = vmul.f32 %v771, %v660
  %v796 = vmul.f32 %v772, %v662
  %v797 = vmul.f32 %v773, %v664
  %v798 = vmul.f32 %v774, %v666
  %v799 = vmul.f32 %v775, %v668
  %v800 = vmul.f32 %v776, %v670
  %v801 = vmul.f32 %v777, %v672
  %v802 = vmul.f32 %v778, %v674
  %v803 = vmul.f32 %v779, %v676
  %v804 = vmul.f32 %v780, %v678
  %v805 = vmul.f32 %v781, %v680
  %v806 = vmul.f32 %v782, %v682
  %v807 = vmul.f32 %v783, %v684
  %v808 = vmul.f32 %v784, %v686
  %v809 = vmul.f32 %v785, %v688
  %v810 = vmul.f32 %v786, %v690
  %v811 = vadd.f32 %v787, -0.28449672
  %v812 = vadd.f32 %v788, -0.28449672
  %v813 = vadd.f32 %v789, -0.28449672
  %v814 = vadd.f32 %v790, -0.28449672
  %v815 = vadd.f32 %v791, -0.28449672
  %v816 = vadd.f32 %v792, -0.28449672
  %v817 = vadd.f32 %v793, -0.28449672
  %v818 = vadd.f32 %v794, -0.28449672
  %v819 = vadd.f32 %v795, -0.28449672
  %v820 = vadd.f32 %v796, -0.28449672
  %v821 = vadd.f32 %v797, -0.28449672
  %v822 = vadd.f32 %v798, -0.28449672
  %v823 = vadd.f32 %v799, -0.28449672
  %v824 = vadd.f32 %v800, -0.28449672
  %v825 = vadd.f32 %v801, -0.28449672
  %v826 = vadd.f32 %v802, -0.28449672
  %v827 = vadd.f32 %v803, -0.28449672
  %v828 = vadd.f32 %v804, -0.28449672
  %v829 = vadd.f32 %v805, -0.28449672
  %v830 = vadd.f32 %v806, -0.28449672
  %v831 = vadd.f32 %v807, -0.28449672
  %v832 = vadd.f32 %v808, -0.28449672
  %v833 = vadd.f32 %v809, -0.28449672
  %v834 = vadd.f32 %v810, -0.28449672
  %v835 = vmul.f32 %v811, %v644
  %v836 = vmul.f32 %v812, %v646
  %v837 = vmul.f32 %v813, %v648
  %v838 = vmul.f32 %v814, %v650
  %v839 = vmul.f32 %v815, %v652
  %v840 = vmul.f32 %v816, %v654
  %v841 = vmul.f32 %v817, %v656
  %v842 = vmul.f32 %v818, %v658
  %v843 = vmul.f32 %v819, %v660
  %v844 = vmul.f32 %v820, %v662
  %v845 = vmul.f32 %v821, %v664
  %v846 = vmul.f32 %v822, %v666
  %v847 = vmul.f32 %v823, %v668
  %v848 = vmul.f32 %v824, %v670
  %v849 = vmul.f32 %v825, %v672
  %v850 = vmul.f32 %v826, %v674
  %v851 = vmul.f32 %v827, %v676
  %v852 = vmul.f32 %v828, %v678
  %v853 = vmul.f32 %v829, %v680
  %v854 = vmul.f32 %v830, %v682
  %v855 = vmul.f32 %v831, %v684
  %v856 = vmul.f32 %v832, %v686
  %v857 = vmul.f32 %v833, %v688
  %v858 = vmul.f32 %v834, %v690
  %v859 = vadd.f32 %v835, 0.2548296
  %v860 = vadd.f32 %v836, 0.2548296
  %v861 = vadd.f32 %v837, 0.2548296
  %v862 = vadd.f32 %v838, 0.2548296
  %v863 = vadd.f32 %v839, 0.2548296
  %v864 = vadd.f32 %v840, 0.2548296
  %v865 = vadd.f32 %v841, 0.2548296
  %v866 = vadd.f32 %v842, 0.2548296
  %v867 = vadd.f32 %v843, 0.2548296
  %v868 = vadd.f32 %v844, 0.2548296
  %v869 = vadd.f32 %v845, 0.2548296
  %v870 = vadd.f32 %v846, 0.2548296
  %v871 = vadd.f32 %v847, 0.2548296
  %v872 = vadd.f32 %v848, 0.2548296
  %v873 = vadd.f32 %v849, 0.2548296
  %v874 = vadd.f32 %v850, 0.2548296
  %v875 = vadd.f32 %v851, 0.2548296
  %v876 = vadd.f32 %v852, 0.2548296
  %v877 = vadd.f32 %v853, 0.2548296
  %v878 = vadd.f32 %v854, 0.2548296
  %v879 = vadd.f32 %v855, 0.2548296
  %v880 = vadd.f32 %v856, 0.2548296
  %v881 = vadd.f32 %v857, 0.2548296
  %v882 = vadd.f32 %v858, 0.2548296
  %v883 = vmul.f32 %v859, %v644
  %v884 = vmul.f32 %v860, %v646
  %v885 = vmul.f32 %v861, %v648
  %v886 = vmul.f32 %v862, %v650
  %v887 = vmul.f32 %v863, %v652
  %v888 = vmul.f32 %v864, %v654
  %v889 = vmul.f32 %v865, %v656
  %v890 = vmul.f32 %v866, %v658
  %v891 = vmul.f32 %v867, %v660
  %v892 = vmul.f32 %v868, %v662
  %v893 = vmul.f32 %v869, %v664
  %v894 = vmul.f32 %v870, %v666
  %v895 = vmul.f32 %v871, %v668
  %v896 = vmul.f32 %v872, %v670
  %v897 = vmul.f32 %v873, %v672
  %v898 = vmul.f32 %v874, %v674
  %v899 = vmul.f32 %v875, %v676
  %v900 = vmul.f32 %v876, %v678
  %v901 = vmul.f32 %v877, %v680
  %v902 = vmul.f32 %v878, %v682
  %v903 = vmul.f32 %v879, %v684
  %v904 = vmul.f32 %v880, %v686
  %v905 = vmul.f32 %v881, %v688
  %v906 = vmul.f32 %v882, %v690
  %v907 = vsub.f32 0.0, %v571
  %v908 = vsub.f32 0.0, %v572
  %v909 = vsub.f32 0.0, %v573
  %v910 = vsub.f32 0.0, %v574
  %v911 = vsub.f32 0.0, %v575
  %v912 = vsub.f32 0.0, %v576
  %v913 = vsub.f32 0.0, %v577
  %v914 = vsub.f32 0.0, %v578
  %v915 = vsub.f32 0.0, %v579
  %v916 = vsub.f32 0.0, %v580
  %v917 = vsub.f32 0.0, %v581
  %v918 = vsub.f32 0.0, %v582
  %v919 = vsub.f32 0.0, %v583
  %v920 = vsub.f32 0.0, %v584
  %v921 = vsub.f32 0.0, %v585
  %v922 = vsub.f32 0.0, %v586
  %v923 = vsub.f32 0.0, %v587
  %v924 = vsub.f32 0.0, %v588
  %v925 = vsub.f32 0.0, %v589
  %v926 = vsub.f32 0.0, %v590
  %v927 = vsub.f32 0.0, %v591
  %v928 = vsub.f32 0.0, %v592
  %v929 = vsub.f32 0.0, %v593
  %v930 = vsub.f32 0.0, %v594
  %v931 = vmul.f32 %v907, %v571
  %v932 = vmul.f32 %v908, %v572
  %v933 = vmul.f32 %v909, %v573
  %v934 = vmul.f32 %v910, %v574
  %v935 = vmul.f32 %v911, %v575
  %v936 = vmul.f32 %v912, %v576
  %v937 = vmul.f32 %v913, %v577
  %v938 = vmul.f32 %v914, %v578
  %v939 = vmul.f32 %v915, %v579
  %v940 = vmul.f32 %v916, %v580
  %v941 = vmul.f32 %v917, %v581
  %v942 = vmul.f32 %v918, %v582
  %v943 = vmul.f32 %v919, %v583
  %v944 = vmul.f32 %v920, %v584
  %v945 = vmul.f32 %v921, %v585
  %v946 = vmul.f32 %v922, %v586
  %v947 = vmul.f32 %v923, %v587
  %v948 = vmul.f32 %v924, %v588
  %v949 = vmul.f32 %v925, %v589
  %v950 = vmul.f32 %v926, %v590
  %v951 = vmul.f32 %v927, %v591
  %v952 = vmul.f32 %v928, %v592
  %v953 = vmul.f32 %v929, %v593
  %v954 = vmul.f32 %v930, %v594
  %v955 = vmul.f32 %v931, 1.442695
  %v956 = vpow.pop %v955
  %v957 = vmul.f32 %v932, 1.442695
  %v958 = vpow.pop %v957
  %v959 = vmul.f32 %v933, 1.442695
  %v960 = vpow.pop %v959
  %v961 = vmul.f32 %v934, 1.442695
  %v962 = vpow.pop %v961
  %v963 = vmul.f32 %v935, 1.442695
  %v964 = vpow.pop %v963
  %v965 = vmul.f32 %v936, 1.442695
  %v966 = vpow.pop %v965
  %v967 = vmul.f32 %v937, 1.442695
  %v968 = vpow.pop %v967
  %v969 = vmul.f32 %v938, 1.442695
  %v970 = vpow.pop %v969
  %v971 = vmul.f32 %v939, 1.442695
  %v972 = vpow.pop %v971
  %v973 = vmul.f32 %v940, 1.442695
  %v974 = vpow.pop %v973
  %v975 = vmul.f32 %v941, 1.442695
  %v976 = vpow.pop %v975
  %v977 = vmul.f32 %v942, 1.442695
  %v978 = vpow.pop %v977
  %v979 = vmul.f32 %v943, 1.442695
  %v980 = vpow.pop %v979
  %v981 = vmul.f32 %v944, 1.442695
  %v982 = vpow.pop %v981
  %v983 = vmul.f32 %v945, 1.442695
  %v984 = vpow.pop %v983
  %v985 = vmul.f32 %v946, 1.442695
  %v986 = vpow.pop %v985
  %v987 = vmul.f32 %v947, 1.442695
  %v988 = vpow.pop %v987
  %v989 = vmul.f32 %v948, 1.442695
  %v990 = vpow.pop %v989
  %v991 = vmul.f32 %v949, 1.442695
  %v992 = vpow.pop %v991
  %v993 = vmul.f32 %v950, 1.442695
  %v994 = vpow.pop %v993
  %v995 = vmul.f32 %v951, 1.442695
  %v996 = vpow.pop %v995
  %v997 = vmul.f32 %v952, 1.442695
  %v998 = vpow.pop %v997
  %v999 = vmul.f32 %v953, 1.442695
  %v1000 = vpow.pop %v999
  %v1001 = vmul.f32 %v954, 1.442695
  %v1002 = vpow.pop %v1001
  %v1003 = vmul.f32 %v883, %v956
  %v1004 = vmul.f32 %v884, %v958
  %v1005 = vmul.f32 %v885, %v960
  %v1006 = vmul.f32 %v886, %v962
  %v1007 = vmul.f32 %v887, %v964
  %v1008 = vmul.f32 %v888, %v966
  %v1009 = vmul.f32 %v889, %v968
  %v1010 = vmul.f32 %v890, %v970
  %v1011 = vmul.f32 %v891, %v972
  %v1012 = vmul.f32 %v892, %v974
  %v1013 = vmul.f32 %v893, %v976
  %v1014 = vmul.f32 %v894, %v978
  %v1015 = vmul.f32 %v895, %v980
  %v1016 = vmul.f32 %v896, %v982
  %v1017 = vmul.f32 %v897, %v984
  %v1018 = vmul.f32 %v898, %v986
  %v1019 = vmul.f32 %v899, %v988
  %v1020 = vmul.f32 %v900, %v990
  %v1021 = vmul.f32 %v901, %v992
  %v1022 = vmul.f32 %v902, %v994
  %v1023 = vmul.f32 %v903, %v996
  %v1024 = vmul.f32 %v904, %v998
  %v1025 = vmul.f32 %v905, %v1000
  %v1026 = vmul.f32 %v906, %v1002
  %v1027 = vsub.f32 1.0, %v1003
  %v1028 = vsub.f32 1.0, %v1004
  %v1029 = vsub.f32 1.0, %v1005
  %v1030 = vsub.f32 1.0, %v1006
  %v1031 = vsub.f32 1.0, %v1007
  %v1032 = vsub.f32 1.0, %v1008
  %v1033 = vsub.f32 1.0, %v1009
  %v1034 = vsub.f32 1.0, %v1010
  %v1035 = vsub.f32 1.0, %v1011
  %v1036 = vsub.f32 1.0, %v1012
  %v1037 = vsub.f32 1.0, %v1013
  %v1038 = vsub.f32 1.0, %v1014
  %v1039 = vsub.f32 1.0, %v1015
  %v1040 = vsub.f32 1.0, %v1016
  %v1041 = vsub.f32 1.0, %v1017
  %v1042 = vsub.f32 1.0, %v1018
  %v1043 = vsub.f32 1.0, %v1019
  %v1044 = vsub.f32 1.0, %v1020
  %v1045 = vsub.f32 1.0, %v1021
  %v1046 = vsub.f32 1.0, %v1022
  %v1047 = vsub.f32 1.0, %v1023
  %v1048 = vsub.f32 1.0, %v1024
  %v1049 = vsub.f32 1.0, %v1025
  %v1050 = vsub.f32 1.0, %v1026
  %v1051 = vmul.f32 %v547, %v1027
  %v1052 = vmul.f32 %v548, %v1028
  %v1053 = vmul.f32 %v549, %v1029
  %v1054 = vmul.f32 %v550, %v1030
  %v1055 = vmul.f32 %v551, %v1031
  %v1056 = vmul.f32 %v552, %v1032
  %v1057 = vmul.f32 %v553, %v1033
  %v1058 = vmul.f32 %v554, %v1034
  %v1059 = vmul.f32 %v555, %v1035
  %v1060 = vmul.f32 %v556, %v1036
  %v1061 = vmul.f32 %v557, %v1037
  %v1062 = vmul.f32 %v558, %v1038
  %v1063 = vmul.f32 %v559, %v1039
  %v1064 = vmul.f32 %v560, %v1040
  %v1065 = vmul.f32 %v561, %v1041
  %v1066 = vmul.f32 %v562, %v1042
  %v1067 = vmul.f32 %v563, %v1043
  %v1068 = vmul.f32 %v564, %v1044
  %v1069 = vmul.f32 %v565, %v1045
  %v1070 = vmul.f32 %v566, %v1046
  %v1071 = vmul.f32 %v567, %v1047
  %v1072 = vmul.f32 %v568, %v1048
  %v1073 = vmul.f32 %v569, %v1049
  %v1074 = vmul.f32 %v570, %v1050
  %v1075 = vadd.f32 %v1051, 1.0
  %v1076 = vadd.f32 %v1052, 1.0
  %v1077 = vadd.f32 %v1053, 1.0
  %v1078 = vadd.f32 %v1054, 1.0
  %v1079 = vadd.f32 %v1055, 1.0
  %v1080 = vadd.f32 %v1056, 1.0
  %v1081 = vadd.f32 %v1057, 1.0
  %v1082 = vadd.f32 %v1058, 1.0
  %v1083 = vadd.f32 %v1059, 1.0
  %v1084 = vadd.f32 %v1060, 1.0
  %v1085 = vadd.f32 %v1061, 1.0
  %v1086 = vadd.f32 %v1062, 1.0
  %v1087 = vadd.f32 %v1063, 1.0
  %v1088 = vadd.f32 %v1064, 1.0
  %v1089 = vadd.f32 %v1065, 1.0
  %v1090 = vadd.f32 %v1066, 1.0
  %v1091 = vadd.f32 %v1067, 1.0
  %v1092 = vadd.f32 %v1068, 1.0
  %v1093 = vadd.f32 %v1069, 1.0
  %v1094 = vadd.f32 %v1070, 1.0
  %v1095 = vadd.f32 %v1071, 1.0
  %v1096 = vadd.f32 %v1072, 1.0
  %v1097 = vadd.f32 %v1073, 1.0
  %v1098 = vadd.f32 %v1074, 1.0
  %v1099 = vmul.f32 %v475, %v1075
  %v1100 = vmul.f32 %v476, %v1076
  %v1101 = vmul.f32 %v477, %v1077
  %v1102 = vmul.f32 %v478, %v1078
  %v1103 = vmul.f32 %v479, %v1079
  %v1104 = vmul.f32 %v480, %v1080
  %v1105 = vmul.f32 %v481, %v1081
  %v1106 = vmul.f32 %v482, %v1082
  %v1107 = vmul.f32 %v483, %v1083
  %v1108 = vmul.f32 %v484, %v1084
  %v1109 = vmul.f32 %v485, %v1085
  %v1110 = vmul.f32 %v486, %v1086
  %v1111 = vmul.f32 %v487, %v1087
  %v1112 = vmul.f32 %v488, %v1088
  %v1113 = vmul.f32 %v489, %v1089
  %v1114 = vmul.f32 %v490, %v1090
  %v1115 = vmul.f32 %v491, %v1091
  %v1116 = vmul.f32 %v492, %v1092
  %v1117 = vmul.f32 %v493, %v1093
  %v1118 = vmul.f32 %v494, %v1094
  %v1119 = vmul.f32 %v495, %v1095
  %v1120 = vmul.f32 %v496, %v1096
  %v1121 = vmul.f32 %v497, %v1097
  %v1122 = vmul.f32 %v498, %v1098
  %v1123 = vpack.c.bf16 %v1103, %v1099
  %v1124 = vpack.c.bf16 %v1104, %v1100
  %v1125 = vpack.c.bf16 %v1105, %v1101
  %v1126 = vpack.c.bf16 %v1106, %v1102
  %v1127 = vpack.c.bf16 %v1111, %v1107
  %v1128 = vpack.c.bf16 %v1112, %v1108
  %v1129 = vpack.c.bf16 %v1113, %v1109
  %v1130 = vpack.c.bf16 %v1114, %v1110
  %v1131 = vpack.c.bf16 %v1119, %v1115
  %v1132 = vpack.c.bf16 %v1120, %v1116
  %v1133 = vpack.c.bf16 %v1121, %v1117
  %v1134 = vpack.c.bf16 %v1122, %v1118
  %v1135 = vld [vmem:[%s5] sm:$0xf]
  %v1136 = vld [vmem:[%s5 + $0x4] sm:$0xf]
  %v1137 = vld [vmem:[%s5 + $0x8] sm:$0xf]
  %v1138 = vld [vmem:[%s5 + $0xc] sm:$0xf]
  %v1139 = vld [vmem:[%s5 + $0x10] sm:$0xf]
  %v1140 = vld [vmem:[%s5 + $0x14] sm:$0xf]
  %v1141 = vld [vmem:[%s5 + $0x18] sm:$0xf]
  %v1142 = vld [vmem:[%s5 + $0x1c] sm:$0xf]
  %v1143 = vld [vmem:[%s5 + $0x20] sm:$0xf]
  %v1144 = vld [vmem:[%s5 + $0x24] sm:$0xf]
  %v1145 = vld [vmem:[%s5 + $0x28] sm:$0xf]
  %v1146 = vld [vmem:[%s5 + $0x2c] sm:$0xf]
  %v1147 = vld [vmem:[%s5 + $0x30] sm:$0xf]
  %v1148 = vld [vmem:[%s5 + $0x34] sm:$0xf]
  %v1149 = vld [vmem:[%s5 + $0x38] sm:$0xf]
  %v1150 = vld [vmem:[%s5 + $0x3c] sm:$0xf]
  %v1151 = vld [vmem:[%s5 + $0x40] sm:$0xf]
  %v1152 = vld [vmem:[%s5 + $0x44] sm:$0xf]
  %v1153 = vld [vmem:[%s5 + $0x48] sm:$0xf]
  %v1154 = vld [vmem:[%s5 + $0x4c] sm:$0xf]
  %v1155 = vld [vmem:[%s5 + $0x50] sm:$0xf]
  %v1156 = vld [vmem:[%s5 + $0x54] sm:$0xf]
  %v1157 = vld [vmem:[%s5 + $0x58] sm:$0xf]
  %v1158 = vld [vmem:[%s5 + $0x5c] sm:$0xf]
  %v1159 = vld [vmem:[%s5 + $0x60] sm:$0xf]
  %v1160 = vld [vmem:[%s5 + $0x64] sm:$0xf]
  %v1161 = vld [vmem:[%s5 + $0x68] sm:$0xf]
  %v1162 = vld [vmem:[%s5 + $0x6c] sm:$0xf]
  %v1163 = vld [vmem:[%s5 + $0x70] sm:$0xf]
  %v1164 = vld [vmem:[%s5 + $0x74] sm:$0xf]
  %v1165 = vld [vmem:[%s5 + $0x78] sm:$0xf]
  %v1166 = vld [vmem:[%s5 + $0x7c] sm:$0xf]
  %v1167 = vld [vmem:[%s5 + $0x80] sm:$0xf]
  %v1168 = vld [vmem:[%s5 + $0x84] sm:$0xf]
  %v1169 = vld [vmem:[%s5 + $0x88] sm:$0xf]
  %v1170 = vld [vmem:[%s5 + $0x8c] sm:$0xf]
  %v1171 = vld [vmem:[%s5 + $0x90] sm:$0xf]
  %v1172 = vld [vmem:[%s5 + $0x94] sm:$0xf]
  %v1173 = vld [vmem:[%s5 + $0x98] sm:$0xf]
  %v1174 = vld [vmem:[%s5 + $0x9c] sm:$0xf]
  %v1175 = vld [vmem:[%s5 + $0xa0] sm:$0xf]
  %v1176 = vld [vmem:[%s5 + $0xa4] sm:$0xf]
  %v1177 = vld [vmem:[%s5 + $0xa8] sm:$0xf]
  %v1178 = vld [vmem:[%s5 + $0xac] sm:$0xf]
  %v1179 = vld [vmem:[%s5 + $0xb0] sm:$0xf]
  %v1180 = vld [vmem:[%s5 + $0xb4] sm:$0xf]
  %v1181 = vld [vmem:[%s5 + $0xb8] sm:$0xf]
  %v1182 = vld [vmem:[%s5 + $0xbc] sm:$0xf]
  %v1183 = vld [vmem:[%s5 + $0xc0] sm:$0xf]
  %v1184 = vld [vmem:[%s5 + $0xc4] sm:$0xf]
  %v1185 = vld [vmem:[%s5 + $0xc8] sm:$0xf]
  %v1186 = vld [vmem:[%s5 + $0xcc] sm:$0xf]
  %v1187 = vld [vmem:[%s5 + $0xd0] sm:$0xf]
  %v1188 = vld [vmem:[%s5 + $0xd4] sm:$0xf]
  %v1189 = vld [vmem:[%s5 + $0xd8] sm:$0xf]
  %v1190 = vld [vmem:[%s5 + $0xdc] sm:$0xf]
  %v1191 = vld [vmem:[%s5 + $0xe0] sm:$0xf]
  %v1192 = vld [vmem:[%s5 + $0xe4] sm:$0xf]
  %v1193 = vld [vmem:[%s5 + $0xe8] sm:$0xf]
  %v1194 = vld [vmem:[%s5 + $0xec] sm:$0xf]
  %v1195 = vld [vmem:[%s5 + $0xf0] sm:$0xf]
  %v1196 = vld [vmem:[%s5 + $0xf4] sm:$0xf]
  %v1197 = vld [vmem:[%s5 + $0xf8] sm:$0xf]
  %v1198 = vld [vmem:[%s5 + $0xfc] sm:$0xf]
  %v1199 = vld [vmem:[%s6] sm:$0x1]
  %v1201 = vlaneseq
  %v1202 = vshrl.u32 %v1201, 7
  %v1203 = vsub.s32 0, %v1202
  %v1204 = vrot.slane %v1199, %v1203
  %v1270 = vunpack.c.l.b16 %v1135
  %v1271 = vunpack.c.l.b16 %v1136
  %v1272 = vunpack.c.l.b16 %v1137
  %v1273 = vunpack.c.l.b16 %v1138
  %v1274 = vunpack.c.l.b16 %v1139
  %v1275 = vunpack.c.l.b16 %v1140
  %v1276 = vunpack.c.l.b16 %v1141
  %v1277 = vunpack.c.l.b16 %v1142
  %v1278 = vunpack.c.l.b16 %v1143
  %v1279 = vunpack.c.l.b16 %v1144
  %v1280 = vunpack.c.l.b16 %v1145
  %v1281 = vunpack.c.l.b16 %v1146
  %v1282 = vunpack.c.l.b16 %v1147
  %v1283 = vunpack.c.l.b16 %v1148
  %v1284 = vunpack.c.l.b16 %v1149
  %v1285 = vunpack.c.l.b16 %v1150
  %v1286 = vunpack.c.l.b16 %v1151
  %v1287 = vunpack.c.l.b16 %v1152
  %v1288 = vunpack.c.l.b16 %v1153
  %v1289 = vunpack.c.l.b16 %v1154
  %v1290 = vunpack.c.l.b16 %v1155
  %v1291 = vunpack.c.l.b16 %v1156
  %v1292 = vunpack.c.l.b16 %v1157
  %v1293 = vunpack.c.l.b16 %v1158
  %v1294 = vunpack.c.l.b16 %v1159
  %v1295 = vunpack.c.l.b16 %v1160
  %v1296 = vunpack.c.l.b16 %v1161
  %v1297 = vunpack.c.l.b16 %v1162
  %v1298 = vunpack.c.l.b16 %v1163
  %v1299 = vunpack.c.l.b16 %v1164
  %v1300 = vunpack.c.l.b16 %v1165
  %v1301 = vunpack.c.l.b16 %v1166
  %v1302 = vunpack.c.l.b16 %v1167
  %v1303 = vunpack.c.l.b16 %v1168
  %v1304 = vunpack.c.l.b16 %v1169
  %v1305 = vunpack.c.l.b16 %v1170
  %v1306 = vunpack.c.l.b16 %v1171
  %v1307 = vunpack.c.l.b16 %v1172
  %v1308 = vunpack.c.l.b16 %v1173
  %v1309 = vunpack.c.l.b16 %v1174
  %v1310 = vunpack.c.l.b16 %v1175
  %v1311 = vunpack.c.l.b16 %v1176
  %v1312 = vunpack.c.l.b16 %v1177
  %v1313 = vunpack.c.l.b16 %v1178
  %v1314 = vunpack.c.l.b16 %v1179
  %v1315 = vunpack.c.l.b16 %v1180
  %v1316 = vunpack.c.l.b16 %v1181
  %v1317 = vunpack.c.l.b16 %v1182
  %v1318 = vunpack.c.l.b16 %v1183
  %v1319 = vunpack.c.l.b16 %v1184
  %v1320 = vunpack.c.l.b16 %v1185
  %v1321 = vunpack.c.l.b16 %v1186
  %v1322 = vunpack.c.l.b16 %v1187
  %v1323 = vunpack.c.l.b16 %v1188
  %v1324 = vunpack.c.l.b16 %v1189
  %v1325 = vunpack.c.l.b16 %v1190
  %v1326 = vunpack.c.l.b16 %v1191
  %v1327 = vunpack.c.l.b16 %v1192
  %v1328 = vunpack.c.l.b16 %v1193
  %v1329 = vunpack.c.l.b16 %v1194
  %v1330 = vunpack.c.l.b16 %v1195
  %v1331 = vunpack.c.l.b16 %v1196
  %v1332 = vunpack.c.l.b16 %v1197
  %v1333 = vunpack.c.l.b16 %v1198
  %v1334 = vpack.c.b16 %v1271, %v1270
  %v1335 = vpack.c.b16 %v1273, %v1272
  %v1336 = vpack.c.b16 %v1275, %v1274
  %v1337 = vpack.c.b16 %v1277, %v1276
  %v1338 = vpack.c.b16 %v1279, %v1278
  %v1339 = vpack.c.b16 %v1281, %v1280
  %v1340 = vpack.c.b16 %v1283, %v1282
  %v1341 = vpack.c.b16 %v1285, %v1284
  %v1342 = vpack.c.b16 %v1287, %v1286
  %v1343 = vpack.c.b16 %v1289, %v1288
  %v1344 = vpack.c.b16 %v1291, %v1290
  %v1345 = vpack.c.b16 %v1293, %v1292
  %v1346 = vpack.c.b16 %v1295, %v1294
  %v1347 = vpack.c.b16 %v1297, %v1296
  %v1348 = vpack.c.b16 %v1299, %v1298
  %v1349 = vpack.c.b16 %v1301, %v1300
  %v1350 = vpack.c.b16 %v1303, %v1302
  %v1351 = vpack.c.b16 %v1305, %v1304
  %v1352 = vpack.c.b16 %v1307, %v1306
  %v1353 = vpack.c.b16 %v1309, %v1308
  %v1354 = vpack.c.b16 %v1311, %v1310
  %v1355 = vpack.c.b16 %v1313, %v1312
  %v1356 = vpack.c.b16 %v1315, %v1314
  %v1357 = vpack.c.b16 %v1317, %v1316
  %v1358 = vpack.c.b16 %v1319, %v1318
  %v1359 = vpack.c.b16 %v1321, %v1320
  %v1360 = vpack.c.b16 %v1323, %v1322
  %v1361 = vpack.c.b16 %v1325, %v1324
  %v1362 = vpack.c.b16 %v1327, %v1326
  %v1363 = vpack.c.b16 %v1329, %v1328
  %v1364 = vpack.c.b16 %v1331, %v1330
  %v1365 = vpack.c.b16 %v1333, %v1332
  %1398 = vmatprep.subr.bf16.mxu0 0
  %1399 = vmatpush1.bf16.msra.mxu0 %v1334
  %1400 = vmatprep.subr.bf16.mxu0 0
  %1401 = vmatpush1.bf16.msra.mxu0 %v1335
  %1402 = vmatprep.subr.bf16.mxu0 0
  %1403 = vmatpush1.bf16.msra.mxu0 %v1336
  %1404 = vmatprep.subr.bf16.mxu0 0
  %1405 = vmatpush1.bf16.msra.mxu0 %v1337
  %1406 = vmatprep.subr.bf16.mxu0 0
  %1407 = vmatpush1.bf16.msra.mxu0 %v1338
  %1408 = vmatprep.subr.bf16.mxu0 0
  %1409 = vmatpush1.bf16.msra.mxu0 %v1339
  %1410 = vmatprep.subr.bf16.mxu0 0
  %1411 = vmatpush1.bf16.msra.mxu0 %v1340
  %1412 = vmatprep.subr.bf16.mxu0 0
  %1413 = vmatpush1.bf16.msra.mxu0 %v1341
  %1414 = vmatprep.subr.bf16.mxu0 0
  %1415 = vmatpush1.bf16.msra.mxu0 %v1342
  %1416 = vmatprep.subr.bf16.mxu0 0
  %1417 = vmatpush1.bf16.msra.mxu0 %v1343
  %1418 = vmatprep.subr.bf16.mxu0 0
  %1419 = vmatpush1.bf16.msra.mxu0 %v1344
  %1420 = vmatprep.subr.bf16.mxu0 0
  %1421 = vmatpush1.bf16.msra.mxu0 %v1345
  %1422 = vmatprep.subr.bf16.mxu0 0
  %1423 = vmatpush1.bf16.msra.mxu0 %v1346
  %1424 = vmatprep.subr.bf16.mxu0 0
  %1425 = vmatpush1.bf16.msra.mxu0 %v1347
  %1426 = vmatprep.subr.bf16.mxu0 0
  %1427 = vmatpush1.bf16.msra.mxu0 %v1348
  %1428 = vmatprep.subr.bf16.mxu0 0
  %1429 = vmatpush1.bf16.msra.mxu0 %v1349
  %1430 = vmatprep.mubr.bf16.mxu0 %v1124
  %1431 = vmatmul.mubr.bf16.gmra.mrb[0].mxu0 %v1123
  %v1432 = vpop.f32.mrb[0].mxu0
  %v1433 = vadd.f32 %v1204, %v1432
  %v1434 = vpop.f32.mrb[0].mxu0
  %v1435 = vpop.f32.mrb[0].mxu0
  %v1436 = vadd.f32 %v1204, %v1435
  %v1437 = vpop.f32.mrb[0].mxu0
  %1438 = vmatprep.mubr.bf16.mxu0 %v1128
  %1439 = vmatmul.mubr.bf16.gmra.mrb[0].mxu0 %v1127
  %v1440 = vpop.f32.mrb[0].mxu0
  %v1441 = vadd.f32 %v1204, %v1440
  %v1442 = vpop.f32.mrb[0].mxu0
  %v1443 = vpop.f32.mrb[0].mxu0
  %v1444 = vadd.f32 %v1204, %v1443
  %v1445 = vpop.f32.mrb[0].mxu0
  %1446 = vmatprep.mubr.bf16.mxu0 %v1132
  %1447 = vmatmul.mubr.bf16.gmra.mrb[0].mxu0 %v1131
  %v1448 = vpop.f32.mrb[0].mxu0
  %v1449 = vadd.f32 %v1204, %v1448
  %v1450 = vpop.f32.mrb[0].mxu0
  %v1451 = vpop.f32.mrb[0].mxu0
  %v1452 = vadd.f32 %v1204, %v1451
  %v1453 = vpop.f32.mrb[0].mxu0
  %1454 = vdwg.mxu0
  %1455 = vmatprep.subr.bf16.mxu0 0
  %1456 = vmatpush1.bf16.msra.mxu0 %v1350
  %1457 = vmatprep.subr.bf16.mxu0 0
  %1458 = vmatpush1.bf16.msra.mxu0 %v1351
  %1459 = vmatprep.subr.bf16.mxu0 0
  %1460 = vmatpush1.bf16.msra.mxu0 %v1352
  %1461 = vmatprep.subr.bf16.mxu0 0
  %1462 = vmatpush1.bf16.msra.mxu0 %v1353
  %1463 = vmatprep.subr.bf16.mxu0 0
  %1464 = vmatpush1.bf16.msra.mxu0 %v1354
  %1465 = vmatprep.subr.bf16.mxu0 0
  %1466 = vmatpush1.bf16.msra.mxu0 %v1355
  %1467 = vmatprep.subr.bf16.mxu0 0
  %1468 = vmatpush1.bf16.msra.mxu0 %v1356
  %1469 = vmatprep.subr.bf16.mxu0 0
  %1470 = vmatpush1.bf16.msra.mxu0 %v1357
  %1471 = vmatprep.subr.bf16.mxu0 0
  %1472 = vmatpush1.bf16.msra.mxu0 %v1358
  %1473 = vmatprep.subr.bf16.mxu0 0
  %1474 = vmatpush1.bf16.msra.mxu0 %v1359
  %1475 = vmatprep.subr.bf16.mxu0 0
  %1476 = vmatpush1.bf16.msra.mxu0 %v1360
  %1477 = vmatprep.subr.bf16.mxu0 0
  %1478 = vmatpush1.bf16.msra.mxu0 %v1361
  %1479 = vmatprep.subr.bf16.mxu0 0
  %1480 = vmatpush1.bf16.msra.mxu0 %v1362
  %1481 = vmatprep.subr.bf16.mxu0 0
  %1482 = vmatpush1.bf16.msra.mxu0 %v1363
  %1483 = vmatprep.subr.bf16.mxu0 0
  %1484 = vmatpush1.bf16.msra.mxu0 %v1364
  %1485 = vmatprep.subr.bf16.mxu0 0
  %1486 = vmatpush1.bf16.msra.mxu0 %v1365
  %1487 = vmatprep.mubr.bf16.mxu0 %v1126
  %1488 = vmatmul.mubr.bf16.gmra.mrb[0].mxu0 %v1125
  %v1489 = vpop.f32.mrb[0].mxu0
  %v1490 = vadd.f32 %v1433, %v1489
  %v1491 = vpop.f32.mrb[0].mxu0
  %v1492 = vpop.f32.mrb[0].mxu0
  %v1493 = vadd.f32 %v1436, %v1492
  %v1494 = vpop.f32.mrb[0].mxu0
  %1495 = vmatprep.mubr.bf16.mxu0 %v1130
  %1496 = vmatmul.mubr.bf16.gmra.mrb[0].mxu0 %v1129
  %v1497 = vpop.f32.mrb[0].mxu0
  %v1498 = vadd.f32 %v1441, %v1497
  %v1499 = vpop.f32.mrb[0].mxu0
  %v1500 = vpop.f32.mrb[0].mxu0
  %v1501 = vadd.f32 %v1444, %v1500
  %v1502 = vpop.f32.mrb[0].mxu0
  %1503 = vmatprep.mubr.bf16.mxu0 %v1134
  %1504 = vmatmul.mubr.bf16.gmra.mrb[0].mxu0 %v1133
  %v1505 = vpop.f32.mrb[0].mxu0
  %v1506 = vadd.f32 %v1449, %v1505
  %v1507 = vpop.f32.mrb[0].mxu0
  %v1508 = vpop.f32.mrb[0].mxu0
  %v1509 = vadd.f32 %v1452, %v1508
  %v1510 = vpop.f32.mrb[0].mxu0
  %1511 = vdwg.mxu0
  %v1512 = vadd.f32 %v1490, %v33
  %v1513 = vadd.f32 %v1493, %v34
  %v1514 = vadd.f32 %v1498, %v35
  %v1515 = vadd.f32 %v1501, %v36
  %v1516 = vadd.f32 %v1506, %v37
  %v1517 = vadd.f32 %v1509, %v38
  %v1518 = vpack.c.bf16 %v1513, %v1512
  %v1519 = vpack.c.bf16 %v1515, %v1514
  %v1520 = vpack.c.bf16 %v1517, %v1516
  %v1524 = vunpack.c.l.b16 %v1518
  %v1525 = vunpack.c.h.b16 %v1518
  %v1526 = vunpack.c.l.b16 %v1519
  %v1527 = vunpack.c.h.b16 %v1519
  %v1528 = vunpack.c.l.b16 %v1520
  %v1529 = vunpack.c.h.b16 %v1520
  %v1530 = vpack.c.b16 %v1524, %v1524
  %v1531 = vpack.c.b16 %v1525, %v1525
  %v1532 = vpack.c.b16 %v1526, %v1526
  %v1533 = vpack.c.b16 %v1527, %v1527
  %v1534 = vpack.c.b16 %v1528, %v1528
  %v1535 = vpack.c.b16 %v1529, %v1529
  %1542 = vst [vmem:[%s7] sm:$0xf] %v1530
  %1543 = vst [vmem:[%s7 + $0x4] sm:$0xf] %v1531
  %1544 = vst [vmem:[%s7 + $0x8] sm:$0xf] %v1532
  %1545 = vst [vmem:[%s7 + $0xc] sm:$0xf] %v1533
  %1546 = vst [vmem:[%s7 + $0x10] sm:$0xf] %v1534
  %1547 = vst [vmem:[%s7 + $0x14] sm:$0xf] %v1535
  // Predicated region
  $region30: #{vit_encoder_forward.14} parent=0 // pred_check
    _
  $region31: #{vit_encoder_forward.14} parent=0 // pred_check_branch
    %1549 = sbr.rel (0) target = $region33
  $region32: #{vit_encoder_forward.14} parent=0 // pred_region
    _
  $region33: #{vit_encoder_forward.14} parent=0 // pred_fallthru
    _
  // Predicated region
  $region34: #{vit_encoder_forward.14} parent=0 // pred_check
    _
  $region35: #{vit_encoder_forward.14} parent=0 // pred_check_branch
    %1551 = sbr.rel (0) target = $region37
  $region36: #{vit_encoder_forward.14} parent=0 // pred_region
    _
  $region37: #{vit_encoder_forward.14} parent=0 // pred_fallthru
    _

</llo_original>
